<compile_context>
chip_gen: v6e
topology: v6e:2x2x1
jax: 0.10.0
libtpu: 0.0.40
codegen_flags: <defaults>
</compile_context>

<pallas_src>
import functools
from typing import NamedTuple

import jax
import jax.numpy as jnp
from jax import lax
from jax.experimental import pallas as pl
from jax.experimental.pallas import tpu as pltpu


def _round_up(x, m):
    return (x + m - 1) // m * m


def _vmem_capacity_bytes():
    """Generation-aware VMEM capacity (conservative fallback = 64 MiB v7x)."""
    try:
        cap = int(pltpu.get_tpu_info().vmem_capacity_bytes)
        if cap > 0:
            return cap
    except Exception:
        pass
    return 64 << 20


def _run_loop(body, n, full_unroll, loop_unroll):
    """Run `body(t, 0)` for t in [0, n): static unroll or partially-unrolled fori."""
    if full_unroll:
        for t in range(n):
            body(t, 0)
    else:
        try:
            lax.fori_loop(0, n, body, 0, unroll=loop_unroll)
        except TypeError:  # very old jax without the unroll kwarg
            lax.fori_loop(0, n, body, 0)


# ---------------------------------------------------------------------------
# One-time weight prepacking (gate-blocked, lane-padded, pre-transposed)
# ---------------------------------------------------------------------------
class PackedLSTMWeights(NamedTuple):
    w_ih_p: jax.Array      # (D, 4*Hp)  input->gates, gate-block padded
    w_hh_p: jax.Array      # (Hp, 4*Hp) hidden->gates
    bias_p: jax.Array      # (1, 4*Hp)  f32, b_ih + b_hh
    hidden_size: int
    input_size: int


def prepack_lstm_weights(w_ih, w_hh, b_ih, b_hh, *, compute_dtype=jnp.float32):
    """Pack PyTorch-layout LSTM weights once (NOT per forward call).

    w_ih: (4H, D), w_hh: (4H, H), b_ih/b_hh: (4H,) with gate order i, f, g, o.
    Zero padding of the gate blocks keeps padded hidden lanes exactly zero
    through the recurrence, so slicing at the end recovers the exact result.
    """
    fourH, D = w_ih.shape
    H = fourH // 4
    Hp = _round_up(H, 128)       # lane-dense gate blocks, unmasked stores
    G = 4 * Hp

    def pack(w):                 # (4H, K) -> (K, 4*Hp)
        K = w.shape[1]
        w4 = jnp.transpose(w.reshape(4, H, K), (2, 0, 1))        # (K, 4, H)
        w4 = jnp.pad(w4, ((0, 0), (0, 0), (0, Hp - H)))          # (K, 4, Hp)
        return w4.reshape(K, G).astype(compute_dtype)

    w_ih_p = pack(w_ih)                                           # (D, G)
    w_hh_p = jnp.pad(pack(w_hh), ((0, Hp - H), (0, 0)))           # (Hp, G)
    bias = (b_ih + b_hh).astype(jnp.float32).reshape(4, H)
    bias_p = jnp.pad(bias, ((0, 0), (0, Hp - H))).reshape(1, G)
    return PackedLSTMWeights(w_ih_p, w_hh_p, bias_p, H, D)


# ---------------------------------------------------------------------------
# Fused kernel: per-chunk input projection + streamed LSTM recurrence
# ---------------------------------------------------------------------------
def _lstm_fused_kernel(x_ref, w_ih_ref, w_hh_ref, b_ref,
                       out_ref, hn_ref, cn_ref,
                       xp_scr, h_scr, c_scr, *,
                       hidden_pad, seq_len, time_chunk, has_time_pad,
                       full_unroll, loop_unroll):
    """Grid = (batch_splits, n_time_chunks).

    x_ref   : (Tc, Bb, D)    input slice for this (batch block, time chunk)
    w_ih_ref: (D, 4Hp)       constant across the grid
    w_hh_ref: (Hp, 4Hp)      constant across the grid
    b_ref   : (1, 4Hp)       f32 bias (b_ih + b_hh), constant
    out_ref : (Tc, Bb, Hp)   per-step hidden states for this chunk
    hn_ref/cn_ref: (1, Bb, Hp) final states (resident across the time axis)
    xp_scr  : (Tc, Bb, 4Hp)  f32 chunk input projection (VMEM scratch)
    h_scr/c_scr: (Bb, Hp)    f32 carries, persistent across time chunks
    """
    Hp = hidden_pad
    Tc = time_chunk
    t_idx = pl.program_id(1)
    n_t = pl.num_programs(1)

    @pl.when(t_idx == 0)
    def _init():
        h_scr[...] = jnp.zeros_like(h_scr)
        c_scr[...] = jnp.zeros_like(c_scr)

    # --- chunk prologue: input projection for all Tc steps, hoisted off the
    #     serial recurrence path (independent matmuls pipeline on the MXU). ---
    w_ih = w_ih_ref[...]
    bias = b_ref[...]

    def proj_step(t, carry):
        xp_scr[t] = (jnp.dot(x_ref[t], w_ih,
                             preferred_element_type=jnp.float32) + bias)
        return carry

    _run_loop(proj_step, Tc, full_unroll, loop_unroll)

    # --- serial recurrence over the chunk ---
    w_hh = w_hh_ref[...]

    def gate_sigmoid(z):
        # sigmoid(z) = 0.5*(1 + tanh(z/2)): 1 EUP push instead of exp+recip;
        # the extra mul/add goes to the VPU, which has slack.
        return 0.5 * (jnp.tanh(0.5 * z) + 1.0)

    def make_step(masked):
        def step(t, carry):
            h_prev = h_scr[...]
            c_prev = c_scr[...]
            gates = xp_scr[t] + jnp.dot(h_prev.astype(w_hh.dtype), w_hh,
                                        preferred_element_type=jnp.float32)
            i_g = gate_sigmoid(gates[:, 0 * Hp:1 * Hp])
            f_g = gate_sigmoid(gates[:, 1 * Hp:2 * Hp])
            g_g = jnp.tanh(gates[:, 2 * Hp:3 * Hp])
            o_g = gate_sigmoid(gates[:, 3 * Hp:4 * Hp])
            c_new = f_g * c_prev + i_g * g_g
            h_new = o_g * jnp.tanh(c_new)
            if masked:                       # only traced for the last chunk
                valid = (t_idx * Tc + t) < seq_len
                c_new = jnp.where(valid, c_new, c_prev)
                h_new = jnp.where(valid, h_new, h_prev)
            c_scr[...] = c_new
            h_scr[...] = h_new
            out_ref[t] = h_new.astype(out_ref.dtype)
            return carry
        return step

    if has_time_pad:
        # Tail-validity masking is paid only on the final time chunk.
        @pl.when(t_idx < n_t - 1)
        def _plain():
            _run_loop(make_step(False), Tc, full_unroll, loop_unroll)

        @pl.when(t_idx == n_t - 1)
        def _masked():
            _run_loop(make_step(True), Tc, full_unroll, loop_unroll)
    else:
        _run_loop(make_step(False), Tc, full_unroll, loop_unroll)

    @pl.when(t_idx == n_t - 1)
    def _final():
        hn_ref[0] = h_scr[...].astype(hn_ref.dtype)
        cn_ref[0] = c_scr[...].astype(cn_ref.dtype)


# ---------------------------------------------------------------------------
# Public wrapper: MultiRNN('LSTM', D, H).forward(x) with zero initial state
# ---------------------------------------------------------------------------
def multi_rnn_lstm_forward(x, packed: PackedLSTMWeights, *,
                           time_chunk=None, batch_splits=1):
    """x: (B, T, D) f32.  Returns (output (B,T,H), (h_n (1,B,H), c_n (1,B,H))).

    `packed` comes from prepack_lstm_weights (compute_dtype=jnp.bfloat16 is the
    recommended matmul-operand dtype on v6e/v7x; accumulation and gate math
    stay f32).  `batch_splits=2` splits the batch across TensorCores (v7x).
    """
    B, T, D = x.shape
    assert D == packed.input_size
    H = packed.hidden_size
    Hp = packed.w_hh_p.shape[0]
    G = 4 * Hp
    compute_dtype = packed.w_ih_p.dtype
    isz = jnp.dtype(compute_dtype).itemsize

    nb = max(1, int(batch_splits))
    Bp = _round_up(B, 8 * nb)            # full f32 sublanes per batch block
    Bb = Bp // nb

    # ---- generation-aware VMEM budgeting ----
    vmem_cap = _vmem_capacity_bytes()
    per_t = Bb * (2 * D * isz + 2 * Hp * 4 + G * 4)     # x + out streams + xp scratch
    fixed = (2 * D * G * isz + 2 * Hp * G * isz + 2 * G * 4   # weights + bias
             + 4 * Bb * Hp * 4                                # resident h_n / c_n
             + 2 * Bb * Hp * 4)                               # h / c carries
    if time_chunk is None:
        budget = vmem_cap // 6
        time_chunk = max(1, min(T, (budget - fixed) // per_t, 256))
    Tc = max(1, int(time_chunk))
    T_pad = _round_up(T, Tc)
    n_chunks = T_pad // Tc
    vmem_limit = int(min(max(2 * (fixed + Tc * per_t), 32 << 20),
                         (vmem_cap * 3) // 4))

    # Time-major padded input (x is the smallest tensor involved; the big
    # x_proj round trip of the old design is gone entirely).
    x_tm = jnp.zeros((T_pad, Bp, D), dtype=compute_dtype)
    x_tm = x_tm.at[:T, :B].set(jnp.transpose(x, (1, 0, 2)).astype(compute_dtype))

    kernel = functools.partial(
        _lstm_fused_kernel, hidden_pad=Hp, seq_len=T, time_chunk=Tc,
        has_time_pad=(T_pad != T), full_unroll=(Tc <= 64), loop_unroll=8)

    out_tm, h_n_p, c_n_p = pl.pallas_call(
        kernel,
        out_shape=(
            jax.ShapeDtypeStruct((T_pad, Bp, Hp), jnp.float32),
            jax.ShapeDtypeStruct((1, Bp, Hp), jnp.float32),
            jax.ShapeDtypeStruct((1, Bp, Hp), jnp.float32),
        ),
        grid=(nb, n_chunks),
        in_specs=[
            pl.BlockSpec((Tc, Bb, D), lambda b, t: (t, b, 0)),
            pl.BlockSpec((D, G), lambda b, t: (0, 0)),
            pl.BlockSpec((Hp, G), lambda b, t: (0, 0)),
            pl.BlockSpec((1, G), lambda b, t: (0, 0)),
        ],
        out_specs=(
            pl.BlockSpec((Tc, Bb, Hp), lambda b, t: (t, b, 0)),
            pl.BlockSpec((1, Bb, Hp), lambda b, t: (0, b, 0)),
            pl.BlockSpec((1, Bb, Hp), lambda b, t: (0, b, 0)),
        ),
        scratch_shapes=[
            pltpu.VMEM((Tc, Bb, G), jnp.float32),   # per-chunk input projection
            pltpu.VMEM((Bb, Hp), jnp.float32),      # h carry
            pltpu.VMEM((Bb, Hp), jnp.float32),      # c carry
        ],
        compiler_params=pltpu.CompilerParams(
            dimension_semantics=("parallel", "arbitrary"),
            vmem_limit_bytes=vmem_limit,
        ),
    )(x_tm, packed.w_ih_p, packed.w_hh_p, packed.bias_p)

    # TODO(synk): emit the output directly in (B, T, H) layout from the kernel
    # (needs Tc % 8 == 0 blocks + per-step sublane scatter); a single wrapper
    # transpose is kept instead.
    output = jnp.transpose(out_tm[:T, :B, :H], (1, 0, 2))
    h_n = h_n_p[:, :B, :H]
    c_n = c_n_p[:, :B, :H]
    return output, (h_n, c_n)


# ---------------------------------------------------------------------------
# Pure-JAX reference (same math as torch.nn.LSTM, batch_first, 1 layer)
# ---------------------------------------------------------------------------
def _lstm_reference(x, w_ih, w_hh, b_ih, b_hh):
    B, T, D = x.shape
    H = w_hh.shape[1]
    bias = b_ih + b_hh

    def step(carry, x_t):
        h, c = carry
        gates = x_t @ w_ih.T + h @ w_hh.T + bias
        i = jax.nn.sigmoid(gates[:, 0 * H:1 * H])
        f = jax.nn.sigmoid(gates[:, 1 * H:2 * H])
        g = jnp.tanh(gates[:, 2 * H:3 * H])
        o = jax.nn.sigmoid(gates[:, 3 * H:4 * H])
        c_new = f * c + i * g
        h_new = o * jnp.tanh(c_new)
        return (h_new, c_new), h_new

    h0 = jnp.zeros((B, H), jnp.float32)
    c0 = jnp.zeros((B, H), jnp.float32)
    (h_n, c_n), out_tm = lax.scan(step, (h0, c0), jnp.transpose(x, (1, 0, 2)))
    return jnp.transpose(out_tm, (1, 0, 2)), (h_n[None], c_n[None])


if __name__ == "__main__":
    B, T, D, H = 2, 8, 16, 32   # batch, seq_len, input_size, hidden_size

    key = jax.random.PRNGKey(0)
    kx, k1, k2, k3, k4 = jax.random.split(key, 5)
    x = jax.random.normal(kx, (B, T, D), dtype=jnp.float32)

    # Parameter init mirroring PyTorch LSTM: U(-1/sqrt(H), 1/sqrt(H))
    bound = 1.0 / jnp.sqrt(jnp.float32(H))
    w_ih = jax.random.uniform(k1, (4 * H, D), jnp.float32, -bound, bound)
    w_hh = jax.random.uniform(k2, (4 * H, H), jnp.float32, -bound, bound)
    b_ih = jax.random.uniform(k3, (4 * H,), jnp.float32, -bound, bound)
    b_hh = jax.random.uniform(k4, (4 * H,), jnp.float32, -bound, bound)

    ref_out, (ref_h, ref_c) = _lstm_reference(x, w_ih, w_hh, b_ih, b_hh)

    # One-time weight prepack (f32 path keeps the reference check tight).
    packed_f32 = prepack_lstm_weights(w_ih, w_hh, b_ih, b_hh)

    # (a) auto chunk size (single chunk, no time padding)
    out, (h_n, c_n) = multi_rnn_lstm_forward(x, packed_f32)
    jax.block_until_ready((out, h_n, c_n))
    assert out.shape == (B, T, H)
    assert h_n.shape == (1, B, H) and c_n.shape == (1, B, H)
    assert jnp.allclose(out, ref_out, atol=2e-5, rtol=2e-5)
    assert jnp.allclose(h_n, ref_h, atol=2e-5, rtol=2e-5)
    assert jnp.allclose(c_n, ref_c, atol=2e-5, rtol=2e-5)

    # (b) chunk that does not divide T (exercises last-chunk-only tail masking)
    out2, (h_n2, c_n2) = multi_rnn_lstm_forward(x, packed_f32, time_chunk=3)
    jax.block_until_ready((out2, h_n2, c_n2))
    assert jnp.allclose(out2, ref_out, atol=2e-5, rtol=2e-5)
    assert jnp.allclose(h_n2, ref_h, atol=2e-5, rtol=2e-5)
    assert jnp.allclose(c_n2, ref_c, atol=2e-5, rtol=2e-5)

    # (c) batch split across TensorCores (v7x); also correct on 1-core parts
    out3, (h_n3, c_n3) = multi_rnn_lstm_forward(x, packed_f32,
                                                time_chunk=4, batch_splits=2)
    jax.block_until_ready((out3, h_n3, c_n3))
    assert jnp.allclose(out3, ref_out, atol=2e-5, rtol=2e-5)
    assert jnp.allclose(h_n3, ref_h, atol=2e-5, rtol=2e-5)

    # (d) bf16 matmul operands (recommended on v6e/v7x); f32 accumulation/gates
    packed_bf16 = prepack_lstm_weights(w_ih, w_hh, b_ih, b_hh,
                                       compute_dtype=jnp.bfloat16)
    out4, (h_n4, c_n4) = multi_rnn_lstm_forward(x, packed_bf16)
    jax.block_until_ready((out4, h_n4, c_n4))
    assert jnp.allclose(out4, ref_out, atol=5e-2, rtol=5e-2)
    assert jnp.allclose(h_n4, ref_h, atol=5e-2, rtol=5e-2)
    assert jnp.allclose(c_n4, ref_c, atol=5e-2, rtol=5e-2)

    # TODO(synk): 'RNN'/'GRU' cell variants, num_layers>1, bidirectional
    # stacking and dropout of MultiRNN are not instantiated here; this
    # implements the default LSTM / 1-layer / unidirectional path.
    print("KERNEL_OK")
</pallas_src>

<mosaic_0001>
module attributes {stable_mosaic.version = 11 : i64} {
  func.func @_lstm_fused_kernel(%arg0: i32, %arg1: i32, %arg2: memref<8x8x16xf32, #tpu.memory_space<vmem>>, %arg3: memref<16x512xf32, #tpu.memory_space<vmem>>, %arg4: memref<128x512xf32, #tpu.memory_space<vmem>>, %arg5: memref<1x512xf32, #tpu.memory_space<vmem>>, %arg6: memref<8x8x128xf32, #tpu.memory_space<vmem>>, %arg7: memref<1x8x128xf32, #tpu.memory_space<vmem>>, %arg8: memref<1x8x128xf32, #tpu.memory_space<vmem>>, %arg9: memref<8x8x512xf32, #tpu.memory_space<vmem>>, %arg10: memref<8x128xf32, #tpu.memory_space<vmem>>, %arg11: memref<8x128xf32, #tpu.memory_space<vmem>>) attributes {dimension_semantics = [#tpu.dimension_semantics<parallel>, #tpu.dimension_semantics<arbitrary>], iteration_bounds = array<i64: 1, 1>, scalar_prefetch = 0 : i64, scratch_operands = 3 : i64, tpu.core_type = #tpu.core_type<tc>, window_params = [{transform_indices = @transform_0, window_bounds = array<i64: 8, 8, 16>}, {pipeline_mode = #tpu.pipeline_mode<synchronous>, transform_indices = @transform_1, window_bounds = array<i64: 16, 512>}, {pipeline_mode = #tpu.pipeline_mode<synchronous>, transform_indices = @transform_2, window_bounds = array<i64: 128, 512>}, {pipeline_mode = #tpu.pipeline_mode<synchronous>, transform_indices = @transform_3, window_bounds = array<i64: 1, 512>}, {transform_indices = @transform_4, window_bounds = array<i64: 8, 8, 128>}, {transform_indices = @transform_5, window_bounds = array<i64: 1, 8, 128>}, {transform_indices = @transform_6, window_bounds = array<i64: 1, 8, 128>}]} {
    %c0_i32 = arith.constant 0 : i32
    %0 = arith.cmpi eq, %arg1, %c0_i32 : i32
    %1 = arith.extui %0 : i1 to i32
    %c0_i32_0 = arith.constant 0 : i32
    %2 = arith.cmpi ne, %1, %c0_i32_0 : i32
    scf.if %2 {
      %cst_248 = arith.constant 0.000000e+00 : f32
      %409 = vector.broadcast %cst_248 : f32 to vector<8x128xf32>
      %c0_249 = arith.constant 0 : index
      %c0_250 = arith.constant 0 : index
      %410 = vector.load %arg10[%c0_249, %c0_250] : memref<8x128xf32, #tpu.memory_space<vmem>>, vector<8x128xf32>
      tpu.vector_store %arg10[%c0_249, %c0_250], %409 {strides = array<i32>} : memref<8x128xf32, #tpu.memory_space<vmem>>, vector<8x128xf32>,
      %cst_251 = arith.constant 0.000000e+00 : f32
      %411 = vector.broadcast %cst_251 : f32 to vector<8x128xf32>
      %c0_252 = arith.constant 0 : index
      %c0_253 = arith.constant 0 : index
      %412 = vector.load %arg11[%c0_252, %c0_253] : memref<8x128xf32, #tpu.memory_space<vmem>>, vector<8x128xf32>
      tpu.vector_store %arg11[%c0_252, %c0_253], %411 {strides = array<i32>} : memref<8x128xf32, #tpu.memory_space<vmem>>, vector<8x128xf32>,
    } else {
    }
    %c0 = arith.constant 0 : index
    %c0_1 = arith.constant 0 : index
    %3 = vector.load %arg3[%c0, %c0_1] : memref<16x512xf32, #tpu.memory_space<vmem>>, vector<16x512xf32>
    %c0_2 = arith.constant 0 : index
    %c0_3 = arith.constant 0 : index
    %4 = vector.load %arg5[%c0_2, %c0_3] : memref<1x512xf32, #tpu.memory_space<vmem>>, vector<1x512xf32>
    %c0_4 = arith.constant 0 : index
    %c0_5 = arith.constant 0 : index
    %c0_6 = arith.constant 0 : index
    %5 = vector.load %arg2[%c0_4, %c0_5, %c0_6] : memref<8x8x16xf32, #tpu.memory_space<vmem>>, vector<1x8x16xf32>
    %6 = vector.shape_cast %5 : vector<1x8x16xf32> to vector<8x16xf32>
    %cst = arith.constant dense<0.000000e+00> : vector<8x512xf32>
    %7 = tpu.matmul %6, %3, %cst {dimension_numbers = #tpu.dot_dimension_numbers<[1], [0], [0], [1], [0, 0, 1, 1], [], []>} : vector<8x16xf32>, vector<16x512xf32>, vector<8x512xf32> -> vector<8x512xf32>
    %8 = vector.broadcast %4 : vector<1x512xf32> to vector<8x512xf32>
    %9 = arith.addf %7, %8 : vector<8x512xf32>
    %c0_7 = arith.constant 0 : index
    %c0_8 = arith.constant 0 : index
    %c0_9 = arith.constant 0 : index
    %10 = vector.load %arg9[%c0_7, %c0_8, %c0_9] : memref<8x8x512xf32, #tpu.memory_space<vmem>>, vector<1x8x512xf32>
    %11 = vector.shape_cast %10 : vector<1x8x512xf32> to vector<8x512xf32>
    %12 = vector.shape_cast %9 : vector<8x512xf32> to vector<1x8x512xf32>
    tpu.vector_store %arg9[%c0_7, %c0_8, %c0_9], %12 {strides = array<i32>} : memref<8x8x512xf32, #tpu.memory_space<vmem>>, vector<1x8x512xf32>,
    %c1 = arith.constant 1 : index
    %c0_10 = arith.constant 0 : index
    %c0_11 = arith.constant 0 : index
    %13 = vector.load %arg2[%c1, %c0_10, %c0_11] : memref<8x8x16xf32, #tpu.memory_space<vmem>>, vector<1x8x16xf32>
    %14 = vector.shape_cast %13 : vector<1x8x16xf32> to vector<8x16xf32>
    %cst_12 = arith.constant dense<0.000000e+00> : vector<8x512xf32>
    %15 = tpu.matmul %14, %3, %cst_12 {dimension_numbers = #tpu.dot_dimension_numbers<[1], [0], [0], [1], [0, 0, 1, 1], [], []>} : vector<8x16xf32>, vector<16x512xf32>, vector<8x512xf32> -> vector<8x512xf32>
    %16 = vector.broadcast %4 : vector<1x512xf32> to vector<8x512xf32>
    %17 = arith.addf %15, %16 : vector<8x512xf32>
    %c1_13 = arith.constant 1 : index
    %c0_14 = arith.constant 0 : index
    %c0_15 = arith.constant 0 : index
    %18 = vector.load %arg9[%c1_13, %c0_14, %c0_15] : memref<8x8x512xf32, #tpu.memory_space<vmem>>, vector<1x8x512xf32>
    %19 = vector.shape_cast %18 : vector<1x8x512xf32> to vector<8x512xf32>
    %20 = vector.shape_cast %17 : vector<8x512xf32> to vector<1x8x512xf32>
    tpu.vector_store %arg9[%c1_13, %c0_14, %c0_15], %20 {strides = array<i32>} : memref<8x8x512xf32, #tpu.memory_space<vmem>>, vector<1x8x512xf32>,
    %c2 = arith.constant 2 : index
    %c0_16 = arith.constant 0 : index
    %c0_17 = arith.constant 0 : index
    %21 = vector.load %arg2[%c2, %c0_16, %c0_17] : memref<8x8x16xf32, #tpu.memory_space<vmem>>, vector<1x8x16xf32>
    %22 = vector.shape_cast %21 : vector<1x8x16xf32> to vector<8x16xf32>
    %cst_18 = arith.constant dense<0.000000e+00> : vector<8x512xf32>
    %23 = tpu.matmul %22, %3, %cst_18 {dimension_numbers = #tpu.dot_dimension_numbers<[1], [0], [0], [1], [0, 0, 1, 1], [], []>} : vector<8x16xf32>, vector<16x512xf32>, vector<8x512xf32> -> vector<8x512xf32>
    %24 = vector.broadcast %4 : vector<1x512xf32> to vector<8x512xf32>
    %25 = arith.addf %23, %24 : vector<8x512xf32>
    %c2_19 = arith.constant 2 : index
    %c0_20 = arith.constant 0 : index
    %c0_21 = arith.constant 0 : index
    %26 = vector.load %arg9[%c2_19, %c0_20, %c0_21] : memref<8x8x512xf32, #tpu.memory_space<vmem>>, vector<1x8x512xf32>
    %27 = vector.shape_cast %26 : vector<1x8x512xf32> to vector<8x512xf32>
    %28 = vector.shape_cast %25 : vector<8x512xf32> to vector<1x8x512xf32>
    tpu.vector_store %arg9[%c2_19, %c0_20, %c0_21], %28 {strides = array<i32>} : memref<8x8x512xf32, #tpu.memory_space<vmem>>, vector<1x8x512xf32>,
    %c3 = arith.constant 3 : index
    %c0_22 = arith.constant 0 : index
    %c0_23 = arith.constant 0 : index
    %29 = vector.load %arg2[%c3, %c0_22, %c0_23] : memref<8x8x16xf32, #tpu.memory_space<vmem>>, vector<1x8x16xf32>
    %30 = vector.shape_cast %29 : vector<1x8x16xf32> to vector<8x16xf32>
    %cst_24 = arith.constant dense<0.000000e+00> : vector<8x512xf32>
    %31 = tpu.matmul %30, %3, %cst_24 {dimension_numbers = #tpu.dot_dimension_numbers<[1], [0], [0], [1], [0, 0, 1, 1], [], []>} : vector<8x16xf32>, vector<16x512xf32>, vector<8x512xf32> -> vector<8x512xf32>
    %32 = vector.broadcast %4 : vector<1x512xf32> to vector<8x512xf32>
    %33 = arith.addf %31, %32 : vector<8x512xf32>
    %c3_25 = arith.constant 3 : index
    %c0_26 = arith.constant 0 : index
    %c0_27 = arith.constant 0 : index
    %34 = vector.load %arg9[%c3_25, %c0_26, %c0_27] : memref<8x8x512xf32, #tpu.memory_space<vmem>>, vector<1x8x512xf32>
    %35 = vector.shape_cast %34 : vector<1x8x512xf32> to vector<8x512xf32>
    %36 = vector.shape_cast %33 : vector<8x512xf32> to vector<1x8x512xf32>
    tpu.vector_store %arg9[%c3_25, %c0_26, %c0_27], %36 {strides = array<i32>} : memref<8x8x512xf32, #tpu.memory_space<vmem>>, vector<1x8x512xf32>,
    %c4 = arith.constant 4 : index
    %c0_28 = arith.constant 0 : index
    %c0_29 = arith.constant 0 : index
    %37 = vector.load %arg2[%c4, %c0_28, %c0_29] : memref<8x8x16xf32, #tpu.memory_space<vmem>>, vector<1x8x16xf32>
    %38 = vector.shape_cast %37 : vector<1x8x16xf32> to vector<8x16xf32>
    %cst_30 = arith.constant dense<0.000000e+00> : vector<8x512xf32>
    %39 = tpu.matmul %38, %3, %cst_30 {dimension_numbers = #tpu.dot_dimension_numbers<[1], [0], [0], [1], [0, 0, 1, 1], [], []>} : vector<8x16xf32>, vector<16x512xf32>, vector<8x512xf32> -> vector<8x512xf32>
    %40 = vector.broadcast %4 : vector<1x512xf32> to vector<8x512xf32>
    %41 = arith.addf %39, %40 : vector<8x512xf32>
    %c4_31 = arith.constant 4 : index
    %c0_32 = arith.constant 0 : index
    %c0_33 = arith.constant 0 : index
    %42 = vector.load %arg9[%c4_31, %c0_32, %c0_33] : memref<8x8x512xf32, #tpu.memory_space<vmem>>, vector<1x8x512xf32>
    %43 = vector.shape_cast %42 : vector<1x8x512xf32> to vector<8x512xf32>
    %44 = vector.shape_cast %41 : vector<8x512xf32> to vector<1x8x512xf32>
    tpu.vector_store %arg9[%c4_31, %c0_32, %c0_33], %44 {strides = array<i32>} : memref<8x8x512xf32, #tpu.memory_space<vmem>>, vector<1x8x512xf32>,
    %c5 = arith.constant 5 : index
    %c0_34 = arith.constant 0 : index
    %c0_35 = arith.constant 0 : index
    %45 = vector.load %arg2[%c5, %c0_34, %c0_35] : memref<8x8x16xf32, #tpu.memory_space<vmem>>, vector<1x8x16xf32>
    %46 = vector.shape_cast %45 : vector<1x8x16xf32> to vector<8x16xf32>
    %cst_36 = arith.constant dense<0.000000e+00> : vector<8x512xf32>
    %47 = tpu.matmul %46, %3, %cst_36 {dimension_numbers = #tpu.dot_dimension_numbers<[1], [0], [0], [1], [0, 0, 1, 1], [], []>} : vector<8x16xf32>, vector<16x512xf32>, vector<8x512xf32> -> vector<8x512xf32>
    %48 = vector.broadcast %4 : vector<1x512xf32> to vector<8x512xf32>
    %49 = arith.addf %47, %48 : vector<8x512xf32>
    %c5_37 = arith.constant 5 : index
    %c0_38 = arith.constant 0 : index
    %c0_39 = arith.constant 0 : index
    %50 = vector.load %arg9[%c5_37, %c0_38, %c0_39] : memref<8x8x512xf32, #tpu.memory_space<vmem>>, vector<1x8x512xf32>
    %51 = vector.shape_cast %50 : vector<1x8x512xf32> to vector<8x512xf32>
    %52 = vector.shape_cast %49 : vector<8x512xf32> to vector<1x8x512xf32>
    tpu.vector_store %arg9[%c5_37, %c0_38, %c0_39], %52 {strides = array<i32>} : memref<8x8x512xf32, #tpu.memory_space<vmem>>, vector<1x8x512xf32>,
    %c6 = arith.constant 6 : index
    %c0_40 = arith.constant 0 : index
    %c0_41 = arith.constant 0 : index
    %53 = vector.load %arg2[%c6, %c0_40, %c0_41] : memref<8x8x16xf32, #tpu.memory_space<vmem>>, vector<1x8x16xf32>
    %54 = vector.shape_cast %53 : vector<1x8x16xf32> to vector<8x16xf32>
    %cst_42 = arith.constant dense<0.000000e+00> : vector<8x512xf32>
    %55 = tpu.matmul %54, %3, %cst_42 {dimension_numbers = #tpu.dot_dimension_numbers<[1], [0], [0], [1], [0, 0, 1, 1], [], []>} : vector<8x16xf32>, vector<16x512xf32>, vector<8x512xf32> -> vector<8x512xf32>
    %56 = vector.broadcast %4 : vector<1x512xf32> to vector<8x512xf32>
    %57 = arith.addf %55, %56 : vector<8x512xf32>
    %c6_43 = arith.constant 6 : index
    %c0_44 = arith.constant 0 : index
    %c0_45 = arith.constant 0 : index
    %58 = vector.load %arg9[%c6_43, %c0_44, %c0_45] : memref<8x8x512xf32, #tpu.memory_space<vmem>>, vector<1x8x512xf32>
    %59 = vector.shape_cast %58 : vector<1x8x512xf32> to vector<8x512xf32>
    %60 = vector.shape_cast %57 : vector<8x512xf32> to vector<1x8x512xf32>
    tpu.vector_store %arg9[%c6_43, %c0_44, %c0_45], %60 {strides = array<i32>} : memref<8x8x512xf32, #tpu.memory_space<vmem>>, vector<1x8x512xf32>,
    %c7 = arith.constant 7 : index
    %c0_46 = arith.constant 0 : index
    %c0_47 = arith.constant 0 : index
    %61 = vector.load %arg2[%c7, %c0_46, %c0_47] : memref<8x8x16xf32, #tpu.memory_space<vmem>>, vector<1x8x16xf32>
    %62 = vector.shape_cast %61 : vector<1x8x16xf32> to vector<8x16xf32>
    %cst_48 = arith.constant dense<0.000000e+00> : vector<8x512xf32>
    %63 = tpu.matmul %62, %3, %cst_48 {dimension_numbers = #tpu.dot_dimension_numbers<[1], [0], [0], [1], [0, 0, 1, 1], [], []>} : vector<8x16xf32>, vector<16x512xf32>, vector<8x512xf32> -> vector<8x512xf32>
    %64 = vector.broadcast %4 : vector<1x512xf32> to vector<8x512xf32>
    %65 = arith.addf %63, %64 : vector<8x512xf32>
    %c7_49 = arith.constant 7 : index
    %c0_50 = arith.constant 0 : index
    %c0_51 = arith.constant 0 : index
    %66 = vector.load %arg9[%c7_49, %c0_50, %c0_51] : memref<8x8x512xf32, #tpu.memory_space<vmem>>, vector<1x8x512xf32>
    %67 = vector.shape_cast %66 : vector<1x8x512xf32> to vector<8x512xf32>
    %68 = vector.shape_cast %65 : vector<8x512xf32> to vector<1x8x512xf32>
    tpu.vector_store %arg9[%c7_49, %c0_50, %c0_51], %68 {strides = array<i32>} : memref<8x8x512xf32, #tpu.memory_space<vmem>>, vector<1x8x512xf32>,
    %c0_52 = arith.constant 0 : index
    %c0_53 = arith.constant 0 : index
    %69 = vector.load %arg4[%c0_52, %c0_53] : memref<128x512xf32, #tpu.memory_space<vmem>>, vector<128x512xf32>
    %c0_54 = arith.constant 0 : index
    %c0_55 = arith.constant 0 : index
    %70 = vector.load %arg10[%c0_54, %c0_55] : memref<8x128xf32, #tpu.memory_space<vmem>>, vector<8x128xf32>
    %c0_56 = arith.constant 0 : index
    %c0_57 = arith.constant 0 : index
    %71 = vector.load %arg11[%c0_56, %c0_57] : memref<8x128xf32, #tpu.memory_space<vmem>>, vector<8x128xf32>
    %c0_58 = arith.constant 0 : index
    %c0_59 = arith.constant 0 : index
    %c0_60 = arith.constant 0 : index
    %72 = vector.load %arg9[%c0_58, %c0_59, %c0_60] : memref<8x8x512xf32, #tpu.memory_space<vmem>>, vector<1x8x512xf32>
    %73 = vector.shape_cast %72 : vector<1x8x512xf32> to vector<8x512xf32>
    %cst_61 = arith.constant dense<0.000000e+00> : vector<8x512xf32>
    %74 = tpu.matmul %70, %69, %cst_61 {dimension_numbers = #tpu.dot_dimension_numbers<[1], [0], [0], [1], [0, 0, 1, 1], [], []>} : vector<8x128xf32>, vector<128x512xf32>, vector<8x512xf32> -> vector<8x512xf32>
    %75 = arith.addf %73, %74 : vector<8x512xf32>
    %76 = vector.extract_strided_slice %75 {offsets = [0, 0], sizes = [8, 128], strides = [1, 1]} : vector<8x512xf32> to vector<8x128xf32>
    %cst_62 = arith.constant 5.000000e-01 : f32
    %77 = vector.broadcast %cst_62 : f32 to vector<8x128xf32>
    %78 = arith.mulf %77, %76 : vector<8x128xf32>
    %79 = math.tanh %78 : vector<8x128xf32>
    %cst_63 = arith.constant 1.000000e+00 : f32
    %80 = vector.broadcast %cst_63 : f32 to vector<8x128xf32>
    %81 = arith.addf %79, %80 : vector<8x128xf32>
    %cst_64 = arith.constant 5.000000e-01 : f32
    %82 = vector.broadcast %cst_64 : f32 to vector<8x128xf32>
    %83 = arith.mulf %82, %81 : vector<8x128xf32>
    %84 = vector.extract_strided_slice %75 {offsets = [0, 128], sizes = [8, 128], strides = [1, 1]} : vector<8x512xf32> to vector<8x128xf32>
    %cst_65 = arith.constant 5.000000e-01 : f32
    %85 = vector.broadcast %cst_65 : f32 to vector<8x128xf32>
    %86 = arith.mulf %85, %84 : vector<8x128xf32>
    %87 = math.tanh %86 : vector<8x128xf32>
    %cst_66 = arith.constant 1.000000e+00 : f32
    %88 = vector.broadcast %cst_66 : f32 to vector<8x128xf32>
    %89 = arith.addf %87, %88 : vector<8x128xf32>
    %cst_67 = arith.constant 5.000000e-01 : f32
    %90 = vector.broadcast %cst_67 : f32 to vector<8x128xf32>
    %91 = arith.mulf %90, %89 : vector<8x128xf32>
    %92 = vector.extract_strided_slice %75 {offsets = [0, 256], sizes = [8, 128], strides = [1, 1]} : vector<8x512xf32> to vector<8x128xf32>
    %93 = math.tanh %92 : vector<8x128xf32>
    %94 = vector.extract_strided_slice %75 {offsets = [0, 384], sizes = [8, 128], strides = [1, 1]} : vector<8x512xf32> to vector<8x128xf32>
    %cst_68 = arith.constant 5.000000e-01 : f32
    %95 = vector.broadcast %cst_68 : f32 to vector<8x128xf32>
    %96 = arith.mulf %95, %94 : vector<8x128xf32>
    %97 = math.tanh %96 : vector<8x128xf32>
    %cst_69 = arith.constant 1.000000e+00 : f32
    %98 = vector.broadcast %cst_69 : f32 to vector<8x128xf32>
    %99 = arith.addf %97, %98 : vector<8x128xf32>
    %cst_70 = arith.constant 5.000000e-01 : f32
    %100 = vector.broadcast %cst_70 : f32 to vector<8x128xf32>
    %101 = arith.mulf %100, %99 : vector<8x128xf32>
    %102 = arith.mulf %91, %71 : vector<8x128xf32>
    %103 = arith.mulf %83, %93 : vector<8x128xf32>
    %104 = arith.addf %102, %103 : vector<8x128xf32>
    %105 = math.tanh %104 : vector<8x128xf32>
    %106 = arith.mulf %101, %105 : vector<8x128xf32>
    %c0_71 = arith.constant 0 : index
    %c0_72 = arith.constant 0 : index
    %107 = vector.load %arg11[%c0_71, %c0_72] : memref<8x128xf32, #tpu.memory_space<vmem>>, vector<8x128xf32>
    tpu.vector_store %arg11[%c0_71, %c0_72], %104 {strides = array<i32>} : memref<8x128xf32, #tpu.memory_space<vmem>>, vector<8x128xf32>,
    %c0_73 = arith.constant 0 : index
    %c0_74 = arith.constant 0 : index
    %108 = vector.load %arg10[%c0_73, %c0_74] : memref<8x128xf32, #tpu.memory_space<vmem>>, vector<8x128xf32>
    tpu.vector_store %arg10[%c0_73, %c0_74], %106 {strides = array<i32>} : memref<8x128xf32, #tpu.memory_space<vmem>>, vector<8x128xf32>,
    %c0_75 = arith.constant 0 : index
    %c0_76 = arith.constant 0 : index
    %c0_77 = arith.constant 0 : index
    %109 = vector.load %arg6[%c0_75, %c0_76, %c0_77] : memref<8x8x128xf32, #tpu.memory_space<vmem>>, vector<1x8x128xf32>
    %110 = vector.shape_cast %109 : vector<1x8x128xf32> to vector<8x128xf32>
    %111 = vector.shape_cast %106 : vector<8x128xf32> to vector<1x8x128xf32>
    tpu.vector_store %arg6[%c0_75, %c0_76, %c0_77], %111 {strides = array<i32>} : memref<8x8x128xf32, #tpu.memory_space<vmem>>, vector<1x8x128xf32>,
    %c0_78 = arith.constant 0 : index
    %c0_79 = arith.constant 0 : index
    %112 = vector.load %arg10[%c0_78, %c0_79] : memref<8x128xf32, #tpu.memory_space<vmem>>, vector<8x128xf32>
    %c0_80 = arith.constant 0 : index
    %c0_81 = arith.constant 0 : index
    %113 = vector.load %arg11[%c0_80, %c0_81] : memref<8x128xf32, #tpu.memory_space<vmem>>, vector<8x128xf32>
    %c1_82 = arith.constant 1 : index
    %c0_83 = arith.constant 0 : index
    %c0_84 = arith.constant 0 : index
    %114 = vector.load %arg9[%c1_82, %c0_83, %c0_84] : memref<8x8x512xf32, #tpu.memory_space<vmem>>, vector<1x8x512xf32>
    %115 = vector.shape_cast %114 : vector<1x8x512xf32> to vector<8x512xf32>
    %cst_85 = arith.constant dense<0.000000e+00> : vector<8x512xf32>
    %116 = tpu.matmul %112, %69, %cst_85 {dimension_numbers = #tpu.dot_dimension_numbers<[1], [0], [0], [1], [0, 0, 1, 1], [], []>} : vector<8x128xf32>, vector<128x512xf32>, vector<8x512xf32> -> vector<8x512xf32>
    %117 = arith.addf %115, %116 : vector<8x512xf32>
    %118 = vector.extract_strided_slice %117 {offsets = [0, 0], sizes = [8, 128], strides = [1, 1]} : vector<8x512xf32> to vector<8x128xf32>
    %cst_86 = arith.constant 5.000000e-01 : f32
    %119 = vector.broadcast %cst_86 : f32 to vector<8x128xf32>
    %120 = arith.mulf %119, %118 : vector<8x128xf32>
    %121 = math.tanh %120 : vector<8x128xf32>
    %cst_87 = arith.constant 1.000000e+00 : f32
    %122 = vector.broadcast %cst_87 : f32 to vector<8x128xf32>
    %123 = arith.addf %121, %122 : vector<8x128xf32>
    %cst_88 = arith.constant 5.000000e-01 : f32
    %124 = vector.broadcast %cst_88 : f32 to vector<8x128xf32>
    %125 = arith.mulf %124, %123 : vector<8x128xf32>
    %126 = vector.extract_strided_slice %117 {offsets = [0, 128], sizes = [8, 128], strides = [1, 1]} : vector<8x512xf32> to vector<8x128xf32>
    %cst_89 = arith.constant 5.000000e-01 : f32
    %127 = vector.broadcast %cst_89 : f32 to vector<8x128xf32>
    %128 = arith.mulf %127, %126 : vector<8x128xf32>
    %129 = math.tanh %128 : vector<8x128xf32>
    %cst_90 = arith.constant 1.000000e+00 : f32
    %130 = vector.broadcast %cst_90 : f32 to vector<8x128xf32>
    %131 = arith.addf %129, %130 : vector<8x128xf32>
    %cst_91 = arith.constant 5.000000e-01 : f32
    %132 = vector.broadcast %cst_91 : f32 to vector<8x128xf32>
    %133 = arith.mulf %132, %131 : vector<8x128xf32>
    %134 = vector.extract_strided_slice %117 {offsets = [0, 256], sizes = [8, 128], strides = [1, 1]} : vector<8x512xf32> to vector<8x128xf32>
    %135 = math.tanh %134 : vector<8x128xf32>
    %136 = vector.extract_strided_slice %117 {offsets = [0, 384], sizes = [8, 128], strides = [1, 1]} : vector<8x512xf32> to vector<8x128xf32>
    %cst_92 = arith.constant 5.000000e-01 : f32
    %137 = vector.broadcast %cst_92 : f32 to vector<8x128xf32>
    %138 = arith.mulf %137, %136 : vector<8x128xf32>
    %139 = math.tanh %138 : vector<8x128xf32>
    %cst_93 = arith.constant 1.000000e+00 : f32
    %140 = vector.broadcast %cst_93 : f32 to vector<8x128xf32>
    %141 = arith.addf %139, %140 : vector<8x128xf32>
    %cst_94 = arith.constant 5.000000e-01 : f32
    %142 = vector.broadcast %cst_94 : f32 to vector<8x128xf32>
    %143 = arith.mulf %142, %141 : vector<8x128xf32>
    %144 = arith.mulf %133, %113 : vector<8x128xf32>
    %145 = arith.mulf %125, %135 : vector<8x128xf32>
    %146 = arith.addf %144, %145 : vector<8x128xf32>
    %147 = math.tanh %146 : vector<8x128xf32>
    %148 = arith.mulf %143, %147 : vector<8x128xf32>
    %c0_95 = arith.constant 0 : index
    %c0_96 = arith.constant 0 : index
    %149 = vector.load %arg11[%c0_95, %c0_96] : memref<8x128xf32, #tpu.memory_space<vmem>>, vector<8x128xf32>
    tpu.vector_store %arg11[%c0_95, %c0_96], %146 {strides = array<i32>} : memref<8x128xf32, #tpu.memory_space<vmem>>, vector<8x128xf32>,
    %c0_97 = arith.constant 0 : index
    %c0_98 = arith.constant 0 : index
    %150 = vector.load %arg10[%c0_97, %c0_98] : memref<8x128xf32, #tpu.memory_space<vmem>>, vector<8x128xf32>
    tpu.vector_store %arg10[%c0_97, %c0_98], %148 {strides = array<i32>} : memref<8x128xf32, #tpu.memory_space<vmem>>, vector<8x128xf32>,
    %c1_99 = arith.constant 1 : index
    %c0_100 = arith.constant 0 : index
    %c0_101 = arith.constant 0 : index
    %151 = vector.load %arg6[%c1_99, %c0_100, %c0_101] : memref<8x8x128xf32, #tpu.memory_space<vmem>>, vector<1x8x128xf32>
    %152 = vector.shape_cast %151 : vector<1x8x128xf32> to vector<8x128xf32>
    %153 = vector.shape_cast %148 : vector<8x128xf32> to vector<1x8x128xf32>
    tpu.vector_store %arg6[%c1_99, %c0_100, %c0_101], %153 {strides = array<i32>} : memref<8x8x128xf32, #tpu.memory_space<vmem>>, vector<1x8x128xf32>,
    %c0_102 = arith.constant 0 : index
    %c0_103 = arith.constant 0 : index
    %154 = vector.load %arg10[%c0_102, %c0_103] : memref<8x128xf32, #tpu.memory_space<vmem>>, vector<8x128xf32>
    %c0_104 = arith.constant 0 : index
    %c0_105 = arith.constant 0 : index
    %155 = vector.load %arg11[%c0_104, %c0_105] : memref<8x128xf32, #tpu.memory_space<vmem>>, vector<8x128xf32>
    %c2_106 = arith.constant 2 : index
    %c0_107 = arith.constant 0 : index
    %c0_108 = arith.constant 0 : index
    %156 = vector.load %arg9[%c2_106, %c0_107, %c0_108] : memref<8x8x512xf32, #tpu.memory_space<vmem>>, vector<1x8x512xf32>
    %157 = vector.shape_cast %156 : vector<1x8x512xf32> to vector<8x512xf32>
    %cst_109 = arith.constant dense<0.000000e+00> : vector<8x512xf32>
    %158 = tpu.matmul %154, %69, %cst_109 {dimension_numbers = #tpu.dot_dimension_numbers<[1], [0], [0], [1], [0, 0, 1, 1], [], []>} : vector<8x128xf32>, vector<128x512xf32>, vector<8x512xf32> -> vector<8x512xf32>
    %159 = arith.addf %157, %158 : vector<8x512xf32>
    %160 = vector.extract_strided_slice %159 {offsets = [0, 0], sizes = [8, 128], strides = [1, 1]} : vector<8x512xf32> to vector<8x128xf32>
    %cst_110 = arith.constant 5.000000e-01 : f32
    %161 = vector.broadcast %cst_110 : f32 to vector<8x128xf32>
    %162 = arith.mulf %161, %160 : vector<8x128xf32>
    %163 = math.tanh %162 : vector<8x128xf32>
    %cst_111 = arith.constant 1.000000e+00 : f32
    %164 = vector.broadcast %cst_111 : f32 to vector<8x128xf32>
    %165 = arith.addf %163, %164 : vector<8x128xf32>
    %cst_112 = arith.constant 5.000000e-01 : f32
    %166 = vector.broadcast %cst_112 : f32 to vector<8x128xf32>
    %167 = arith.mulf %166, %165 : vector<8x128xf32>
    %168 = vector.extract_strided_slice %159 {offsets = [0, 128], sizes = [8, 128], strides = [1, 1]} : vector<8x512xf32> to vector<8x128xf32>
    %cst_113 = arith.constant 5.000000e-01 : f32
    %169 = vector.broadcast %cst_113 : f32 to vector<8x128xf32>
    %170 = arith.mulf %169, %168 : vector<8x128xf32>
    %171 = math.tanh %170 : vector<8x128xf32>
    %cst_114 = arith.constant 1.000000e+00 : f32
    %172 = vector.broadcast %cst_114 : f32 to vector<8x128xf32>
    %173 = arith.addf %171, %172 : vector<8x128xf32>
    %cst_115 = arith.constant 5.000000e-01 : f32
    %174 = vector.broadcast %cst_115 : f32 to vector<8x128xf32>
    %175 = arith.mulf %174, %173 : vector<8x128xf32>
    %176 = vector.extract_strided_slice %159 {offsets = [0, 256], sizes = [8, 128], strides = [1, 1]} : vector<8x512xf32> to vector<8x128xf32>
    %177 = math.tanh %176 : vector<8x128xf32>
    %178 = vector.extract_strided_slice %159 {offsets = [0, 384], sizes = [8, 128], strides = [1, 1]} : vector<8x512xf32> to vector<8x128xf32>
    %cst_116 = arith.constant 5.000000e-01 : f32
    %179 = vector.broadcast %cst_116 : f32 to vector<8x128xf32>
    %180 = arith.mulf %179, %178 : vector<8x128xf32>
    %181 = math.tanh %180 : vector<8x128xf32>
    %cst_117 = arith.constant 1.000000e+00 : f32
    %182 = vector.broadcast %cst_117 : f32 to vector<8x128xf32>
    %183 = arith.addf %181, %182 : vector<8x128xf32>
    %cst_118 = arith.constant 5.000000e-01 : f32
    %184 = vector.broadcast %cst_118 : f32 to vector<8x128xf32>
    %185 = arith.mulf %184, %183 : vector<8x128xf32>
    %186 = arith.mulf %175, %155 : vector<8x128xf32>
    %187 = arith.mulf %167, %177 : vector<8x128xf32>
    %188 = arith.addf %186, %187 : vector<8x128xf32>
    %189 = math.tanh %188 : vector<8x128xf32>
    %190 = arith.mulf %185, %189 : vector<8x128xf32>
    %c0_119 = arith.constant 0 : index
    %c0_120 = arith.constant 0 : index
    %191 = vector.load %arg11[%c0_119, %c0_120] : memref<8x128xf32, #tpu.memory_space<vmem>>, vector<8x128xf32>
    tpu.vector_store %arg11[%c0_119, %c0_120], %188 {strides = array<i32>} : memref<8x128xf32, #tpu.memory_space<vmem>>, vector<8x128xf32>,
    %c0_121 = arith.constant 0 : index
    %c0_122 = arith.constant 0 : index
    %192 = vector.load %arg10[%c0_121, %c0_122] : memref<8x128xf32, #tpu.memory_space<vmem>>, vector<8x128xf32>
    tpu.vector_store %arg10[%c0_121, %c0_122], %190 {strides = array<i32>} : memref<8x128xf32, #tpu.memory_space<vmem>>, vector<8x128xf32>,
    %c2_123 = arith.constant 2 : index
    %c0_124 = arith.constant 0 : index
    %c0_125 = arith.constant 0 : index
    %193 = vector.load %arg6[%c2_123, %c0_124, %c0_125] : memref<8x8x128xf32, #tpu.memory_space<vmem>>, vector<1x8x128xf32>
    %194 = vector.shape_cast %193 : vector<1x8x128xf32> to vector<8x128xf32>
    %195 = vector.shape_cast %190 : vector<8x128xf32> to vector<1x8x128xf32>
    tpu.vector_store %arg6[%c2_123, %c0_124, %c0_125], %195 {strides = array<i32>} : memref<8x8x128xf32, #tpu.memory_space<vmem>>, vector<1x8x128xf32>,
    %c0_126 = arith.constant 0 : index
    %c0_127 = arith.constant 0 : index
    %196 = vector.load %arg10[%c0_126, %c0_127] : memref<8x128xf32, #tpu.memory_space<vmem>>, vector<8x128xf32>
    %c0_128 = arith.constant 0 : index
    %c0_129 = arith.constant 0 : index
    %197 = vector.load %arg11[%c0_128, %c0_129] : memref<8x128xf32, #tpu.memory_space<vmem>>, vector<8x128xf32>
    %c3_130 = arith.constant 3 : index
    %c0_131 = arith.constant 0 : index
    %c0_132 = arith.constant 0 : index
    %198 = vector.load %arg9[%c3_130, %c0_131, %c0_132] : memref<8x8x512xf32, #tpu.memory_space<vmem>>, vector<1x8x512xf32>
    %199 = vector.shape_cast %198 : vector<1x8x512xf32> to vector<8x512xf32>
    %cst_133 = arith.constant dense<0.000000e+00> : vector<8x512xf32>
    %200 = tpu.matmul %196, %69, %cst_133 {dimension_numbers = #tpu.dot_dimension_numbers<[1], [0], [0], [1], [0, 0, 1, 1], [], []>} : vector<8x128xf32>, vector<128x512xf32>, vector<8x512xf32> -> vector<8x512xf32>
    %201 = arith.addf %199, %200 : vector<8x512xf32>
    %202 = vector.extract_strided_slice %201 {offsets = [0, 0], sizes = [8, 128], strides = [1, 1]} : vector<8x512xf32> to vector<8x128xf32>
    %cst_134 = arith.constant 5.000000e-01 : f32
    %203 = vector.broadcast %cst_134 : f32 to vector<8x128xf32>
    %204 = arith.mulf %203, %202 : vector<8x128xf32>
    %205 = math.tanh %204 : vector<8x128xf32>
    %cst_135 = arith.constant 1.000000e+00 : f32
    %206 = vector.broadcast %cst_135 : f32 to vector<8x128xf32>
    %207 = arith.addf %205, %206 : vector<8x128xf32>
    %cst_136 = arith.constant 5.000000e-01 : f32
    %208 = vector.broadcast %cst_136 : f32 to vector<8x128xf32>
    %209 = arith.mulf %208, %207 : vector<8x128xf32>
    %210 = vector.extract_strided_slice %201 {offsets = [0, 128], sizes = [8, 128], strides = [1, 1]} : vector<8x512xf32> to vector<8x128xf32>
    %cst_137 = arith.constant 5.000000e-01 : f32
    %211 = vector.broadcast %cst_137 : f32 to vector<8x128xf32>
    %212 = arith.mulf %211, %210 : vector<8x128xf32>
    %213 = math.tanh %212 : vector<8x128xf32>
    %cst_138 = arith.constant 1.000000e+00 : f32
    %214 = vector.broadcast %cst_138 : f32 to vector<8x128xf32>
    %215 = arith.addf %213, %214 : vector<8x128xf32>
    %cst_139 = arith.constant 5.000000e-01 : f32
    %216 = vector.broadcast %cst_139 : f32 to vector<8x128xf32>
    %217 = arith.mulf %216, %215 : vector<8x128xf32>
    %218 = vector.extract_strided_slice %201 {offsets = [0, 256], sizes = [8, 128], strides = [1, 1]} : vector<8x512xf32> to vector<8x128xf32>
    %219 = math.tanh %218 : vector<8x128xf32>
    %220 = vector.extract_strided_slice %201 {offsets = [0, 384], sizes = [8, 128], strides = [1, 1]} : vector<8x512xf32> to vector<8x128xf32>
    %cst_140 = arith.constant 5.000000e-01 : f32
    %221 = vector.broadcast %cst_140 : f32 to vector<8x128xf32>
    %222 = arith.mulf %221, %220 : vector<8x128xf32>
    %223 = math.tanh %222 : vector<8x128xf32>
    %cst_141 = arith.constant 1.000000e+00 : f32
    %224 = vector.broadcast %cst_141 : f32 to vector<8x128xf32>
    %225 = arith.addf %223, %224 : vector<8x128xf32>
    %cst_142 = arith.constant 5.000000e-01 : f32
    %226 = vector.broadcast %cst_142 : f32 to vector<8x128xf32>
    %227 = arith.mulf %226, %225 : vector<8x128xf32>
    %228 = arith.mulf %217, %197 : vector<8x128xf32>
    %229 = arith.mulf %209, %219 : vector<8x128xf32>
    %230 = arith.addf %228, %229 : vector<8x128xf32>
    %231 = math.tanh %230 : vector<8x128xf32>
    %232 = arith.mulf %227, %231 : vector<8x128xf32>
    %c0_143 = arith.constant 0 : index
    %c0_144 = arith.constant 0 : index
    %233 = vector.load %arg11[%c0_143, %c0_144] : memref<8x128xf32, #tpu.memory_space<vmem>>, vector<8x128xf32>
    tpu.vector_store %arg11[%c0_143, %c0_144], %230 {strides = array<i32>} : memref<8x128xf32, #tpu.memory_space<vmem>>, vector<8x128xf32>,
    %c0_145 = arith.constant 0 : index
    %c0_146 = arith.constant 0 : index
    %234 = vector.load %arg10[%c0_145, %c0_146] : memref<8x128xf32, #tpu.memory_space<vmem>>, vector<8x128xf32>
    tpu.vector_store %arg10[%c0_145, %c0_146], %232 {strides = array<i32>} : memref<8x128xf32, #tpu.memory_space<vmem>>, vector<8x128xf32>,
    %c3_147 = arith.constant 3 : index
    %c0_148 = arith.constant 0 : index
    %c0_149 = arith.constant 0 : index
    %235 = vector.load %arg6[%c3_147, %c0_148, %c0_149] : memref<8x8x128xf32, #tpu.memory_space<vmem>>, vector<1x8x128xf32>
    %236 = vector.shape_cast %235 : vector<1x8x128xf32> to vector<8x128xf32>
    %237 = vector.shape_cast %232 : vector<8x128xf32> to vector<1x8x128xf32>
    tpu.vector_store %arg6[%c3_147, %c0_148, %c0_149], %237 {strides = array<i32>} : memref<8x8x128xf32, #tpu.memory_space<vmem>>, vector<1x8x128xf32>,
    %c0_150 = arith.constant 0 : index
    %c0_151 = arith.constant 0 : index
    %238 = vector.load %arg10[%c0_150, %c0_151] : memref<8x128xf32, #tpu.memory_space<vmem>>, vector<8x128xf32>
    %c0_152 = arith.constant 0 : index
    %c0_153 = arith.constant 0 : index
    %239 = vector.load %arg11[%c0_152, %c0_153] : memref<8x128xf32, #tpu.memory_space<vmem>>, vector<8x128xf32>
    %c4_154 = arith.constant 4 : index
    %c0_155 = arith.constant 0 : index
    %c0_156 = arith.constant 0 : index
    %240 = vector.load %arg9[%c4_154, %c0_155, %c0_156] : memref<8x8x512xf32, #tpu.memory_space<vmem>>, vector<1x8x512xf32>
    %241 = vector.shape_cast %240 : vector<1x8x512xf32> to vector<8x512xf32>
    %cst_157 = arith.constant dense<0.000000e+00> : vector<8x512xf32>
    %242 = tpu.matmul %238, %69, %cst_157 {dimension_numbers = #tpu.dot_dimension_numbers<[1], [0], [0], [1], [0, 0, 1, 1], [], []>} : vector<8x128xf32>, vector<128x512xf32>, vector<8x512xf32> -> vector<8x512xf32>
    %243 = arith.addf %241, %242 : vector<8x512xf32>
    %244 = vector.extract_strided_slice %243 {offsets = [0, 0], sizes = [8, 128], strides = [1, 1]} : vector<8x512xf32> to vector<8x128xf32>
    %cst_158 = arith.constant 5.000000e-01 : f32
    %245 = vector.broadcast %cst_158 : f32 to vector<8x128xf32>
    %246 = arith.mulf %245, %244 : vector<8x128xf32>
    %247 = math.tanh %246 : vector<8x128xf32>
    %cst_159 = arith.constant 1.000000e+00 : f32
    %248 = vector.broadcast %cst_159 : f32 to vector<8x128xf32>
    %249 = arith.addf %247, %248 : vector<8x128xf32>
    %cst_160 = arith.constant 5.000000e-01 : f32
    %250 = vector.broadcast %cst_160 : f32 to vector<8x128xf32>
    %251 = arith.mulf %250, %249 : vector<8x128xf32>
    %252 = vector.extract_strided_slice %243 {offsets = [0, 128], sizes = [8, 128], strides = [1, 1]} : vector<8x512xf32> to vector<8x128xf32>
    %cst_161 = arith.constant 5.000000e-01 : f32
    %253 = vector.broadcast %cst_161 : f32 to vector<8x128xf32>
    %254 = arith.mulf %253, %252 : vector<8x128xf32>
    %255 = math.tanh %254 : vector<8x128xf32>
    %cst_162 = arith.constant 1.000000e+00 : f32
    %256 = vector.broadcast %cst_162 : f32 to vector<8x128xf32>
    %257 = arith.addf %255, %256 : vector<8x128xf32>
    %cst_163 = arith.constant 5.000000e-01 : f32
    %258 = vector.broadcast %cst_163 : f32 to vector<8x128xf32>
    %259 = arith.mulf %258, %257 : vector<8x128xf32>
    %260 = vector.extract_strided_slice %243 {offsets = [0, 256], sizes = [8, 128], strides = [1, 1]} : vector<8x512xf32> to vector<8x128xf32>
    %261 = math.tanh %260 : vector<8x128xf32>
    %262 = vector.extract_strided_slice %243 {offsets = [0, 384], sizes = [8, 128], strides = [1, 1]} : vector<8x512xf32> to vector<8x128xf32>
    %cst_164 = arith.constant 5.000000e-01 : f32
    %263 = vector.broadcast %cst_164 : f32 to vector<8x128xf32>
    %264 = arith.mulf %263, %262 : vector<8x128xf32>
    %265 = math.tanh %264 : vector<8x128xf32>
    %cst_165 = arith.constant 1.000000e+00 : f32
    %266 = vector.broadcast %cst_165 : f32 to vector<8x128xf32>
    %267 = arith.addf %265, %266 : vector<8x128xf32>
    %cst_166 = arith.constant 5.000000e-01 : f32
    %268 = vector.broadcast %cst_166 : f32 to vector<8x128xf32>
    %269 = arith.mulf %268, %267 : vector<8x128xf32>
    %270 = arith.mulf %259, %239 : vector<8x128xf32>
    %271 = arith.mulf %251, %261 : vector<8x128xf32>
    %272 = arith.addf %270, %271 : vector<8x128xf32>
    %273 = math.tanh %272 : vector<8x128xf32>
    %274 = arith.mulf %269, %273 : vector<8x128xf32>
    %c0_167 = arith.constant 0 : index
    %c0_168 = arith.constant 0 : index
    %275 = vector.load %arg11[%c0_167, %c0_168] : memref<8x128xf32, #tpu.memory_space<vmem>>, vector<8x128xf32>
    tpu.vector_store %arg11[%c0_167, %c0_168], %272 {strides = array<i32>} : memref<8x128xf32, #tpu.memory_space<vmem>>, vector<8x128xf32>,
    %c0_169 = arith.constant 0 : index
    %c0_170 = arith.constant 0 : index
    %276 = vector.load %arg10[%c0_169, %c0_170] : memref<8x128xf32, #tpu.memory_space<vmem>>, vector<8x128xf32>
    tpu.vector_store %arg10[%c0_169, %c0_170], %274 {strides = array<i32>} : memref<8x128xf32, #tpu.memory_space<vmem>>, vector<8x128xf32>,
    %c4_171 = arith.constant 4 : index
    %c0_172 = arith.constant 0 : index
    %c0_173 = arith.constant 0 : index
    %277 = vector.load %arg6[%c4_171, %c0_172, %c0_173] : memref<8x8x128xf32, #tpu.memory_space<vmem>>, vector<1x8x128xf32>
    %278 = vector.shape_cast %277 : vector<1x8x128xf32> to vector<8x128xf32>
    %279 = vector.shape_cast %274 : vector<8x128xf32> to vector<1x8x128xf32>
    tpu.vector_store %arg6[%c4_171, %c0_172, %c0_173], %279 {strides = array<i32>} : memref<8x8x128xf32, #tpu.memory_space<vmem>>, vector<1x8x128xf32>,
    %c0_174 = arith.constant 0 : index
    %c0_175 = arith.constant 0 : index
    %280 = vector.load %arg10[%c0_174, %c0_175] : memref<8x128xf32, #tpu.memory_space<vmem>>, vector<8x128xf32>
    %c0_176 = arith.constant 0 : index
    %c0_177 = arith.constant 0 : index
    %281 = vector.load %arg11[%c0_176, %c0_177] : memref<8x128xf32, #tpu.memory_space<vmem>>, vector<8x128xf32>
    %c5_178 = arith.constant 5 : index
    %c0_179 = arith.constant 0 : index
    %c0_180 = arith.constant 0 : index
    %282 = vector.load %arg9[%c5_178, %c0_179, %c0_180] : memref<8x8x512xf32, #tpu.memory_space<vmem>>, vector<1x8x512xf32>
    %283 = vector.shape_cast %282 : vector<1x8x512xf32> to vector<8x512xf32>
    %cst_181 = arith.constant dense<0.000000e+00> : vector<8x512xf32>
    %284 = tpu.matmul %280, %69, %cst_181 {dimension_numbers = #tpu.dot_dimension_numbers<[1], [0], [0], [1], [0, 0, 1, 1], [], []>} : vector<8x128xf32>, vector<128x512xf32>, vector<8x512xf32> -> vector<8x512xf32>
    %285 = arith.addf %283, %284 : vector<8x512xf32>
    %286 = vector.extract_strided_slice %285 {offsets = [0, 0], sizes = [8, 128], strides = [1, 1]} : vector<8x512xf32> to vector<8x128xf32>
    %cst_182 = arith.constant 5.000000e-01 : f32
    %287 = vector.broadcast %cst_182 : f32 to vector<8x128xf32>
    %288 = arith.mulf %287, %286 : vector<8x128xf32>
    %289 = math.tanh %288 : vector<8x128xf32>
    %cst_183 = arith.constant 1.000000e+00 : f32
    %290 = vector.broadcast %cst_183 : f32 to vector<8x128xf32>
    %291 = arith.addf %289, %290 : vector<8x128xf32>
    %cst_184 = arith.constant 5.000000e-01 : f32
    %292 = vector.broadcast %cst_184 : f32 to vector<8x128xf32>
    %293 = arith.mulf %292, %291 : vector<8x128xf32>
    %294 = vector.extract_strided_slice %285 {offsets = [0, 128], sizes = [8, 128], strides = [1, 1]} : vector<8x512xf32> to vector<8x128xf32>
    %cst_185 = arith.constant 5.000000e-01 : f32
    %295 = vector.broadcast %cst_185 : f32 to vector<8x128xf32>
    %296 = arith.mulf %295, %294 : vector<8x128xf32>
    %297 = math.tanh %296 : vector<8x128xf32>
    %cst_186 = arith.constant 1.000000e+00 : f32
    %298 = vector.broadcast %cst_186 : f32 to vector<8x128xf32>
    %299 = arith.addf %297, %298 : vector<8x128xf32>
    %cst_187 = arith.constant 5.000000e-01 : f32
    %300 = vector.broadcast %cst_187 : f32 to vector<8x128xf32>
    %301 = arith.mulf %300, %299 : vector<8x128xf32>
    %302 = vector.extract_strided_slice %285 {offsets = [0, 256], sizes = [8, 128], strides = [1, 1]} : vector<8x512xf32> to vector<8x128xf32>
    %303 = math.tanh %302 : vector<8x128xf32>
    %304 = vector.extract_strided_slice %285 {offsets = [0, 384], sizes = [8, 128], strides = [1, 1]} : vector<8x512xf32> to vector<8x128xf32>
    %cst_188 = arith.constant 5.000000e-01 : f32
    %305 = vector.broadcast %cst_188 : f32 to vector<8x128xf32>
    %306 = arith.mulf %305, %304 : vector<8x128xf32>
    %307 = math.tanh %306 : vector<8x128xf32>
    %cst_189 = arith.constant 1.000000e+00 : f32
    %308 = vector.broadcast %cst_189 : f32 to vector<8x128xf32>
    %309 = arith.addf %307, %308 : vector<8x128xf32>
    %cst_190 = arith.constant 5.000000e-01 : f32
    %310 = vector.broadcast %cst_190 : f32 to vector<8x128xf32>
    %311 = arith.mulf %310, %309 : vector<8x128xf32>
    %312 = arith.mulf %301, %281 : vector<8x128xf32>
    %313 = arith.mulf %293, %303 : vector<8x128xf32>
    %314 = arith.addf %312, %313 : vector<8x128xf32>
    %315 = math.tanh %314 : vector<8x128xf32>
    %316 = arith.mulf %311, %315 : vector<8x128xf32>
    %c0_191 = arith.constant 0 : index
    %c0_192 = arith.constant 0 : index
    %317 = vector.load %arg11[%c0_191, %c0_192] : memref<8x128xf32, #tpu.memory_space<vmem>>, vector<8x128xf32>
    tpu.vector_store %arg11[%c0_191, %c0_192], %314 {strides = array<i32>} : memref<8x128xf32, #tpu.memory_space<vmem>>, vector<8x128xf32>,
    %c0_193 = arith.constant 0 : index
    %c0_194 = arith.constant 0 : index
    %318 = vector.load %arg10[%c0_193, %c0_194] : memref<8x128xf32, #tpu.memory_space<vmem>>, vector<8x128xf32>
    tpu.vector_store %arg10[%c0_193, %c0_194], %316 {strides = array<i32>} : memref<8x128xf32, #tpu.memory_space<vmem>>, vector<8x128xf32>,
    %c5_195 = arith.constant 5 : index
    %c0_196 = arith.constant 0 : index
    %c0_197 = arith.constant 0 : index
    %319 = vector.load %arg6[%c5_195, %c0_196, %c0_197] : memref<8x8x128xf32, #tpu.memory_space<vmem>>, vector<1x8x128xf32>
    %320 = vector.shape_cast %319 : vector<1x8x128xf32> to vector<8x128xf32>
    %321 = vector.shape_cast %316 : vector<8x128xf32> to vector<1x8x128xf32>
    tpu.vector_store %arg6[%c5_195, %c0_196, %c0_197], %321 {strides = array<i32>} : memref<8x8x128xf32, #tpu.memory_space<vmem>>, vector<1x8x128xf32>,
    %c0_198 = arith.constant 0 : index
    %c0_199 = arith.constant 0 : index
    %322 = vector.load %arg10[%c0_198, %c0_199] : memref<8x128xf32, #tpu.memory_space<vmem>>, vector<8x128xf32>
    %c0_200 = arith.constant 0 : index
    %c0_201 = arith.constant 0 : index
    %323 = vector.load %arg11[%c0_200, %c0_201] : memref<8x128xf32, #tpu.memory_space<vmem>>, vector<8x128xf32>
    %c6_202 = arith.constant 6 : index
    %c0_203 = arith.constant 0 : index
    %c0_204 = arith.constant 0 : index
    %324 = vector.load %arg9[%c6_202, %c0_203, %c0_204] : memref<8x8x512xf32, #tpu.memory_space<vmem>>, vector<1x8x512xf32>
    %325 = vector.shape_cast %324 : vector<1x8x512xf32> to vector<8x512xf32>
    %cst_205 = arith.constant dense<0.000000e+00> : vector<8x512xf32>
    %326 = tpu.matmul %322, %69, %cst_205 {dimension_numbers = #tpu.dot_dimension_numbers<[1], [0], [0], [1], [0, 0, 1, 1], [], []>} : vector<8x128xf32>, vector<128x512xf32>, vector<8x512xf32> -> vector<8x512xf32>
    %327 = arith.addf %325, %326 : vector<8x512xf32>
    %328 = vector.extract_strided_slice %327 {offsets = [0, 0], sizes = [8, 128], strides = [1, 1]} : vector<8x512xf32> to vector<8x128xf32>
    %cst_206 = arith.constant 5.000000e-01 : f32
    %329 = vector.broadcast %cst_206 : f32 to vector<8x128xf32>
    %330 = arith.mulf %329, %328 : vector<8x128xf32>
    %331 = math.tanh %330 : vector<8x128xf32>
    %cst_207 = arith.constant 1.000000e+00 : f32
    %332 = vector.broadcast %cst_207 : f32 to vector<8x128xf32>
    %333 = arith.addf %331, %332 : vector<8x128xf32>
    %cst_208 = arith.constant 5.000000e-01 : f32
    %334 = vector.broadcast %cst_208 : f32 to vector<8x128xf32>
    %335 = arith.mulf %334, %333 : vector<8x128xf32>
    %336 = vector.extract_strided_slice %327 {offsets = [0, 128], sizes = [8, 128], strides = [1, 1]} : vector<8x512xf32> to vector<8x128xf32>
    %cst_209 = arith.constant 5.000000e-01 : f32
    %337 = vector.broadcast %cst_209 : f32 to vector<8x128xf32>
    %338 = arith.mulf %337, %336 : vector<8x128xf32>
    %339 = math.tanh %338 : vector<8x128xf32>
    %cst_210 = arith.constant 1.000000e+00 : f32
    %340 = vector.broadcast %cst_210 : f32 to vector<8x128xf32>
    %341 = arith.addf %339, %340 : vector<8x128xf32>
    %cst_211 = arith.constant 5.000000e-01 : f32
    %342 = vector.broadcast %cst_211 : f32 to vector<8x128xf32>
    %343 = arith.mulf %342, %341 : vector<8x128xf32>
    %344 = vector.extract_strided_slice %327 {offsets = [0, 256], sizes = [8, 128], strides = [1, 1]} : vector<8x512xf32> to vector<8x128xf32>
    %345 = math.tanh %344 : vector<8x128xf32>
    %346 = vector.extract_strided_slice %327 {offsets = [0, 384], sizes = [8, 128], strides = [1, 1]} : vector<8x512xf32> to vector<8x128xf32>
    %cst_212 = arith.constant 5.000000e-01 : f32
    %347 = vector.broadcast %cst_212 : f32 to vector<8x128xf32>
    %348 = arith.mulf %347, %346 : vector<8x128xf32>
    %349 = math.tanh %348 : vector<8x128xf32>
    %cst_213 = arith.constant 1.000000e+00 : f32
    %350 = vector.broadcast %cst_213 : f32 to vector<8x128xf32>
    %351 = arith.addf %349, %350 : vector<8x128xf32>
    %cst_214 = arith.constant 5.000000e-01 : f32
    %352 = vector.broadcast %cst_214 : f32 to vector<8x128xf32>
    %353 = arith.mulf %352, %351 : vector<8x128xf32>
    %354 = arith.mulf %343, %323 : vector<8x128xf32>
    %355 = arith.mulf %335, %345 : vector<8x128xf32>
    %356 = arith.addf %354, %355 : vector<8x128xf32>
    %357 = math.tanh %356 : vector<8x128xf32>
    %358 = arith.mulf %353, %357 : vector<8x128xf32>
    %c0_215 = arith.constant 0 : index
    %c0_216 = arith.constant 0 : index
    %359 = vector.load %arg11[%c0_215, %c0_216] : memref<8x128xf32, #tpu.memory_space<vmem>>, vector<8x128xf32>
    tpu.vector_store %arg11[%c0_215, %c0_216], %356 {strides = array<i32>} : memref<8x128xf32, #tpu.memory_space<vmem>>, vector<8x128xf32>,
    %c0_217 = arith.constant 0 : index
    %c0_218 = arith.constant 0 : index
    %360 = vector.load %arg10[%c0_217, %c0_218] : memref<8x128xf32, #tpu.memory_space<vmem>>, vector<8x128xf32>
    tpu.vector_store %arg10[%c0_217, %c0_218], %358 {strides = array<i32>} : memref<8x128xf32, #tpu.memory_space<vmem>>, vector<8x128xf32>,
    %c6_219 = arith.constant 6 : index
    %c0_220 = arith.constant 0 : index
    %c0_221 = arith.constant 0 : index
    %361 = vector.load %arg6[%c6_219, %c0_220, %c0_221] : memref<8x8x128xf32, #tpu.memory_space<vmem>>, vector<1x8x128xf32>
    %362 = vector.shape_cast %361 : vector<1x8x128xf32> to vector<8x128xf32>
    %363 = vector.shape_cast %358 : vector<8x128xf32> to vector<1x8x128xf32>
    tpu.vector_store %arg6[%c6_219, %c0_220, %c0_221], %363 {strides = array<i32>} : memref<8x8x128xf32, #tpu.memory_space<vmem>>, vector<1x8x128xf32>,
    %c0_222 = arith.constant 0 : index
    %c0_223 = arith.constant 0 : index
    %364 = vector.load %arg10[%c0_222, %c0_223] : memref<8x128xf32, #tpu.memory_space<vmem>>, vector<8x128xf32>
    %c0_224 = arith.constant 0 : index
    %c0_225 = arith.constant 0 : index
    %365 = vector.load %arg11[%c0_224, %c0_225] : memref<8x128xf32, #tpu.memory_space<vmem>>, vector<8x128xf32>
    %c7_226 = arith.constant 7 : index
    %c0_227 = arith.constant 0 : index
    %c0_228 = arith.constant 0 : index
    %366 = vector.load %arg9[%c7_226, %c0_227, %c0_228] : memref<8x8x512xf32, #tpu.memory_space<vmem>>, vector<1x8x512xf32>
    %367 = vector.shape_cast %366 : vector<1x8x512xf32> to vector<8x512xf32>
    %cst_229 = arith.constant dense<0.000000e+00> : vector<8x512xf32>
    %368 = tpu.matmul %364, %69, %cst_229 {dimension_numbers = #tpu.dot_dimension_numbers<[1], [0], [0], [1], [0, 0, 1, 1], [], []>} : vector<8x128xf32>, vector<128x512xf32>, vector<8x512xf32> -> vector<8x512xf32>
    %369 = arith.addf %367, %368 : vector<8x512xf32>
    %370 = vector.extract_strided_slice %369 {offsets = [0, 0], sizes = [8, 128], strides = [1, 1]} : vector<8x512xf32> to vector<8x128xf32>
    %cst_230 = arith.constant 5.000000e-01 : f32
    %371 = vector.broadcast %cst_230 : f32 to vector<8x128xf32>
    %372 = arith.mulf %371, %370 : vector<8x128xf32>
    %373 = math.tanh %372 : vector<8x128xf32>
    %cst_231 = arith.constant 1.000000e+00 : f32
    %374 = vector.broadcast %cst_231 : f32 to vector<8x128xf32>
    %375 = arith.addf %373, %374 : vector<8x128xf32>
    %cst_232 = arith.constant 5.000000e-01 : f32
    %376 = vector.broadcast %cst_232 : f32 to vector<8x128xf32>
    %377 = arith.mulf %376, %375 : vector<8x128xf32>
    %378 = vector.extract_strided_slice %369 {offsets = [0, 128], sizes = [8, 128], strides = [1, 1]} : vector<8x512xf32> to vector<8x128xf32>
    %cst_233 = arith.constant 5.000000e-01 : f32
    %379 = vector.broadcast %cst_233 : f32 to vector<8x128xf32>
    %380 = arith.mulf %379, %378 : vector<8x128xf32>
    %381 = math.tanh %380 : vector<8x128xf32>
    %cst_234 = arith.constant 1.000000e+00 : f32
    %382 = vector.broadcast %cst_234 : f32 to vector<8x128xf32>
    %383 = arith.addf %381, %382 : vector<8x128xf32>
    %cst_235 = arith.constant 5.000000e-01 : f32
    %384 = vector.broadcast %cst_235 : f32 to vector<8x128xf32>
    %385 = arith.mulf %384, %383 : vector<8x128xf32>
    %386 = vector.extract_strided_slice %369 {offsets = [0, 256], sizes = [8, 128], strides = [1, 1]} : vector<8x512xf32> to vector<8x128xf32>
    %387 = math.tanh %386 : vector<8x128xf32>
    %388 = vector.extract_strided_slice %369 {offsets = [0, 384], sizes = [8, 128], strides = [1, 1]} : vector<8x512xf32> to vector<8x128xf32>
    %cst_236 = arith.constant 5.000000e-01 : f32
    %389 = vector.broadcast %cst_236 : f32 to vector<8x128xf32>
    %390 = arith.mulf %389, %388 : vector<8x128xf32>
    %391 = math.tanh %390 : vector<8x128xf32>
    %cst_237 = arith.constant 1.000000e+00 : f32
    %392 = vector.broadcast %cst_237 : f32 to vector<8x128xf32>
    %393 = arith.addf %391, %392 : vector<8x128xf32>
    %cst_238 = arith.constant 5.000000e-01 : f32
    %394 = vector.broadcast %cst_238 : f32 to vector<8x128xf32>
    %395 = arith.mulf %394, %393 : vector<8x128xf32>
    %396 = arith.mulf %385, %365 : vector<8x128xf32>
    %397 = arith.mulf %377, %387 : vector<8x128xf32>
    %398 = arith.addf %396, %397 : vector<8x128xf32>
    %399 = math.tanh %398 : vector<8x128xf32>
    %400 = arith.mulf %395, %399 : vector<8x128xf32>
    %c0_239 = arith.constant 0 : index
    %c0_240 = arith.constant 0 : index
    %401 = vector.load %arg11[%c0_239, %c0_240] : memref<8x128xf32, #tpu.memory_space<vmem>>, vector<8x128xf32>
    tpu.vector_store %arg11[%c0_239, %c0_240], %398 {strides = array<i32>} : memref<8x128xf32, #tpu.memory_space<vmem>>, vector<8x128xf32>,
    %c0_241 = arith.constant 0 : index
    %c0_242 = arith.constant 0 : index
    %402 = vector.load %arg10[%c0_241, %c0_242] : memref<8x128xf32, #tpu.memory_space<vmem>>, vector<8x128xf32>
    tpu.vector_store %arg10[%c0_241, %c0_242], %400 {strides = array<i32>} : memref<8x128xf32, #tpu.memory_space<vmem>>, vector<8x128xf32>,
    %c7_243 = arith.constant 7 : index
    %c0_244 = arith.constant 0 : index
    %c0_245 = arith.constant 0 : index
    %403 = vector.load %arg6[%c7_243, %c0_244, %c0_245] : memref<8x8x128xf32, #tpu.memory_space<vmem>>, vector<1x8x128xf32>
    %404 = vector.shape_cast %403 : vector<1x8x128xf32> to vector<8x128xf32>
    %405 = vector.shape_cast %400 : vector<8x128xf32> to vector<1x8x128xf32>
    tpu.vector_store %arg6[%c7_243, %c0_244, %c0_245], %405 {strides = array<i32>} : memref<8x8x128xf32, #tpu.memory_space<vmem>>, vector<1x8x128xf32>,
    %c0_i32_246 = arith.constant 0 : i32
    %406 = arith.cmpi eq, %arg1, %c0_i32_246 : i32
    %407 = arith.extui %406 : i1 to i32
    %c0_i32_247 = arith.constant 0 : i32
    %408 = arith.cmpi ne, %407, %c0_i32_247 : i32
    scf.if %408 {
      %c0_248 = arith.constant 0 : index
      %c0_249 = arith.constant 0 : index
      %409 = vector.load %arg10[%c0_248, %c0_249] : memref<8x128xf32, #tpu.memory_space<vmem>>, vector<8x128xf32>
      %c0_250 = arith.constant 0 : index
      %c0_251 = arith.constant 0 : index
      %c0_252 = arith.constant 0 : index
      %410 = vector.load %arg7[%c0_250, %c0_251, %c0_252] : memref<1x8x128xf32, #tpu.memory_space<vmem>>, vector<1x8x128xf32>
      %411 = vector.shape_cast %410 : vector<1x8x128xf32> to vector<8x128xf32>
      %412 = vector.shape_cast %409 : vector<8x128xf32> to vector<1x8x128xf32>
      tpu.vector_store %arg7[%c0_250, %c0_251, %c0_252], %412 {strides = array<i32>} : memref<1x8x128xf32, #tpu.memory_space<vmem>>, vector<1x8x128xf32>,
      %c0_253 = arith.constant 0 : index
      %c0_254 = arith.constant 0 : index
      %413 = vector.load %arg11[%c0_253, %c0_254] : memref<8x128xf32, #tpu.memory_space<vmem>>, vector<8x128xf32>
      %c0_255 = arith.constant 0 : index
      %c0_256 = arith.constant 0 : index
      %c0_257 = arith.constant 0 : index
      %414 = vector.load %arg8[%c0_255, %c0_256, %c0_257] : memref<1x8x128xf32, #tpu.memory_space<vmem>>, vector<1x8x128xf32>
      %415 = vector.shape_cast %414 : vector<1x8x128xf32> to vector<8x128xf32>
      %416 = vector.shape_cast %413 : vector<8x128xf32> to vector<1x8x128xf32>
      tpu.vector_store %arg8[%c0_255, %c0_256, %c0_257], %416 {strides = array<i32>} : memref<1x8x128xf32, #tpu.memory_space<vmem>>, vector<1x8x128xf32>,
    } else {
    }
    return
  }
  func.func @transform_0(%arg0: i32, %arg1: i32) -> (i32, i32, i32) {
    %c0_i32 = arith.constant 0 : i32
    %c0_i32_0 = arith.constant 0 : i32
    return %arg1, %arg0, %c0_i32 : i32, i32, i32
  }
  func.func @transform_1(%arg0: i32, %arg1: i32) -> (i32, i32) {
    %c0_i32 = arith.constant 0 : i32
    %c0_i32_0 = arith.constant 0 : i32
    %c0_i32_1 = arith.constant 0 : i32
    return %c0_i32, %c0_i32_0 : i32, i32
  }
  func.func @transform_2(%arg0: i32, %arg1: i32) -> (i32, i32) {
    %c0_i32 = arith.constant 0 : i32
    %c0_i32_0 = arith.constant 0 : i32
    %c0_i32_1 = arith.constant 0 : i32
    return %c0_i32, %c0_i32_0 : i32, i32
  }
  func.func @transform_3(%arg0: i32, %arg1: i32) -> (i32, i32) {
    %c0_i32 = arith.constant 0 : i32
    %c0_i32_0 = arith.constant 0 : i32
    %c0_i32_1 = arith.constant 0 : i32
    return %c0_i32, %c0_i32_0 : i32, i32
  }
  func.func @transform_4(%arg0: i32, %arg1: i32) -> (i32, i32, i32) {
    %c0_i32 = arith.constant 0 : i32
    %c0_i32_0 = arith.constant 0 : i32
    return %arg1, %arg0, %c0_i32 : i32, i32, i32
  }
  func.func @transform_5(%arg0: i32, %arg1: i32) -> (i32, i32, i32) {
    %c0_i32 = arith.constant 0 : i32
    %c0_i32_0 = arith.constant 0 : i32
    %c0_i32_1 = arith.constant 0 : i32
    return %c0_i32, %arg0, %c0_i32_0 : i32, i32, i32
  }
  func.func @transform_6(%arg0: i32, %arg1: i32) -> (i32, i32, i32) {
    %c0_i32 = arith.constant 0 : i32
    %c0_i32_0 = arith.constant 0 : i32
    %c0_i32_1 = arith.constant 0 : i32
    return %c0_i32, %arg0, %c0_i32_0 : i32, i32, i32
  }
}

</mosaic_0001>

<llo_original>
// kernel: tpu_custom_call.1
$region0: #{tpu_custom_call.1}
  #allocation0 [shape = 'u32[]', space=smem, size = 0x4, offset = 0x4, fixed_abs, tag = 'smem constant byte address 0x4 - core index']
  #allocation1 [shape = 'u32[144,128]{1,0:T(1,128)}', space=vmem, size = 0x12000, scoped, tag = 'internal scratch']
  #allocation2 [shape = 'f32[8,8,512]{2,1,0:T(8,128)}', space=vmem, size = 0x20000, scoped, tag = 'scratch operand']
  #allocation3 [shape = 'f32[8,128]{1,0:T(8,128)}', space=vmem, size = 0x1000, scoped, tag = 'scratch operand']
  #allocation4 [shape = 'f32[8,128]{1,0:T(8,128)}', space=vmem, size = 0x1000, scoped, tag = 'scratch operand']
  %s0 = inlined_call_operand.hbm [shape: f32[8,8,16], index: 0, kind: input, shape index: {}]
  %s1 = inlined_call_operand.hbm [shape: f32[16,512], index: 1, kind: input, shape index: {}]
  %s2 = inlined_call_operand.hbm [shape: f32[128,512], index: 2, kind: input, shape index: {}]
  %s3 = inlined_call_operand.vmem [shape: f32[1,512], index: 3, kind: input, shape index: {}]
  %s4 = inlined_call_operand.hbm [shape: f32[8,8,128], index: 4, kind: output, shape index: {0}]
  %s5 = inlined_call_operand.hbm [shape: f32[1,8,128], index: 5, kind: output, shape index: {1}]
  %s6 = inlined_call_operand.hbm [shape: f32[1,8,128], index: 6, kind: output, shape index: {2}]
  %7 = xla_tuple %s4, %s5, %s6
  %s8 = sld [smem:[#allocation0]]
  $region62: #{tpu_custom_call.1} parent=0
    _
  %s10 = ssub.s32 1, %s8
  %s11 = scalar_select 0, %s10, %s8
  $region1: #{tpu_custom_call.1} parent=0
    #allocation5 [shape = 'u8[32768]{0}', space=vmem, size = 0x8000, scoped, tag = 'input window, operand 0, single buffered']
    #allocation6 [shape = 's32[1]{0}', space=sflag, size = 0x4, scoped, tag = 'scoped memory for tpu_custom_call.1']
    #allocation7 [shape = 's32[1]{0}', space=sflag, size = 0x4, scoped, tag = 'scoped memory for tpu_custom_call.1']
    #allocation8 [shape = 'u8[32768]{0}', space=vmem, size = 0x8000, scoped, tag = 'input window, operand 1, single buffered']
    #allocation9 [shape = 's32[1]{0}', space=sflag, size = 0x4, scoped, tag = 'scoped memory for tpu_custom_call.1']
    #allocation10 [shape = 'u8[262144]{0}', space=vmem, size = 0x40000, scoped, tag = 'input window, operand 2, single buffered']
    #allocation11 [shape = 'u8[32768]{0}', space=vmem, size = 0x8000, scoped, tag = 'output window, operand 0, single buffered']
    #allocation12 [shape = 'u8[4096]{0}', space=vmem, size = 0x1000, scoped, tag = 'output window, operand 1, single buffered']
    #allocation13 [shape = 's32[1]{0}', space=sflag, size = 0x4, scoped, tag = 'scoped memory for tpu_custom_call.1']
    #allocation14 [shape = 'u8[4096]{0}', space=vmem, size = 0x1000, scoped, tag = 'output window, operand 2, single buffered']
    %12 = vsyncpa [#allocation6], 0
    %13 = vsyncpa [#allocation9], 0
    %14 = vsyncpa [#allocation7], 0
    %15 = vsyncpa [#allocation13], 0
    // Predicated region
    $region2: #{tpu_custom_call.1} parent=1 // pred_check
      _
    $region3: #{tpu_custom_call.1} parent=1 // pred_check_branch
      %17 = sbr.rel (0) target = $region5
    $region4: #{tpu_custom_call.1} parent=1 // pred_region
      %s19 = ssub.s32 1024, 1024
      %20 = vsyncadd [#allocation6], %s19
      %s21 = sshll.u32 [#allocation5], 4
      %s22 = int_to_ptr.vmem [resolvable:$true] %s21
      %27 = dma.hbm_to_vmem [thread:$0]  %s0, 1024, %s22, [#allocation6], 128, 128, 8
    $region5: #{tpu_custom_call.1} parent=1 // pred_fallthru
      _
    // Predicated region
    $region6: #{tpu_custom_call.1} parent=1 // pred_check
      _
    $region7: #{tpu_custom_call.1} parent=1 // pred_check_branch
      %29 = sbr.rel (0) target = $region9
    $region8: #{tpu_custom_call.1} parent=1 // pred_region
      %s31 = ssub.s32 1024, 1024
      %32 = vsyncadd [#allocation9], %s31
      %s33 = sshll.u32 [#allocation8], 4
      %s34 = int_to_ptr.vmem [resolvable:$true] %s33
      %39 = dma.hbm_to_vmem [thread:$0]  %s1, 1024, %s34, [#allocation9], 512, 512, 32
    $region9: #{tpu_custom_call.1} parent=1 // pred_fallthru
      _
    // Predicated region
    $region10: #{tpu_custom_call.1} parent=1 // pred_check
      _
    $region11: #{tpu_custom_call.1} parent=1 // pred_check_branch
      %41 = sbr.rel (0) target = $region13
    $region12: #{tpu_custom_call.1} parent=1 // pred_region
      %s43 = ssub.s32 8192, 8192
      %44 = vsyncadd [#allocation9], %s43
      %s45 = sshll.u32 [#allocation10], 4
      %s46 = int_to_ptr.vmem [resolvable:$true] %s45
      %51 = dma.hbm_to_vmem [thread:$0]  %s2, 8192, %s46, [#allocation9], 512, 512, 32
    $region13: #{tpu_custom_call.1} parent=1 // pred_fallthru
      _
    // Predicated region
    $region14: #{tpu_custom_call.1} parent=1 // pred_check
      _
    $region15: #{tpu_custom_call.1} parent=1 // pred_check_branch
      %53 = sbr.rel (0) target = $region17
    $region16: #{tpu_custom_call.1} parent=1 // pred_region
      _
    $region17: #{tpu_custom_call.1} parent=1 // pred_fallthru
      _
    // Predicated region
    $region18: #{tpu_custom_call.1} parent=1 // pred_check
      _
    $region19: #{tpu_custom_call.1} parent=1 // pred_check_branch
      %55 = sbr.rel (0) target = $region21
    $region20: #{tpu_custom_call.1} parent=1 // pred_region
      %56 = dma.done [#allocation6], 1024
    $region21: #{tpu_custom_call.1} parent=1 // pred_fallthru
      _
    // Predicated region
    $region22: #{tpu_custom_call.1} parent=1 // pred_check
      _
    $region23: #{tpu_custom_call.1} parent=1 // pred_check_branch
      %58 = sbr.rel (0) target = $region25
    $region24: #{tpu_custom_call.1} parent=1 // pred_region
      %59 = dma.done [#allocation9], 1024
    $region25: #{tpu_custom_call.1} parent=1 // pred_fallthru
      _
    // Predicated region
    $region26: #{tpu_custom_call.1} parent=1 // pred_check
      _
    $region27: #{tpu_custom_call.1} parent=1 // pred_check_branch
      %61 = sbr.rel (0) target = $region29
    $region28: #{tpu_custom_call.1} parent=1 // pred_region
      %62 = dma.done [#allocation9], 8192
    $region29: #{tpu_custom_call.1} parent=1 // pred_fallthru
      _
    %p63 = scmp.eq.s32.totalorder 0, 0
    // Predicated region
    $region30: #{tpu_custom_call.1} parent=1 // pred_check
      %p64 = pneg %p63
    $region31: #{tpu_custom_call.1} parent=1 // pred_check_branch
      %66 = sbr.rel (%p64) target = $region33
    $region32: #{tpu_custom_call.1} parent=1 // pred_region
      %67 = vst [vmem:[#allocation3] sm:$0xff] 0.0
      %68 = vst [vmem:[#allocation4] sm:$0xff] 0.0
    $region33: #{tpu_custom_call.1} parent=1 // pred_fallthru
      _
    %v69 = vld [vmem:[#allocation8] sm:$0xff]
    %v70 = vld [vmem:[#allocation8 + $0x8] sm:$0xff]
    %v71 = vld [vmem:[#allocation8 + $0x10] sm:$0xff]
    %v72 = vld [vmem:[#allocation8 + $0x18] sm:$0xff]
    %v73 = vld [vmem:[#allocation8 + $0x20] sm:$0xff]
    %v74 = vld [vmem:[#allocation8 + $0x28] sm:$0xff]
    %v75 = vld [vmem:[#allocation8 + $0x30] sm:$0xff]
    %v76 = vld [vmem:[#allocation8 + $0x38] sm:$0xff]
    %v77 = vld [vmem:[%s3] sm:$0xf]
    %v78 = vld [vmem:[#allocation5] sm:$0xff]
    %v80 = vlaneseq
    %v81 = vshrl.u32 %v80, 7
    %v82 = vsub.s32 0, %v81
    %v83 = vrot.slane %v77, %v82
    %v84 = vlaneseq
    %v85 = vshrl.u32 %v84, 7
    %v86 = vsub.s32 1, %v85
    %v87 = vrot.slane %v77, %v86
    %v88 = vlaneseq
    %v89 = vshrl.u32 %v88, 7
    %v90 = vsub.s32 2, %v89
    %v91 = vrot.slane %v77, %v90
    %v92 = vlaneseq
    %v93 = vshrl.u32 %v92, 7
    %v94 = vsub.s32 3, %v93
    %v95 = vrot.slane %v77, %v94
    %vm100 = vcmask 130048
    %v102 = vsel %vm100, %v78, 0
    %104 = vmatprep.subr.mxu0 0.0
    %105 = vmatpush1.msra.mxu0 0.0
    %106 = vmatprep.subr.mxu0 0.0
    %107 = vmatpush1.msra.mxu0 0.0
    %108 = vmatprep.subr.mxu0 0.0
    %109 = vmatpush1.msra.mxu0 0.0
    %110 = vmatprep.subr.mxu0 0.0
    %111 = vmatpush1.msra.mxu0 0.0
    %112 = vmatprep.subr.mxu0 0.0
    %113 = vmatpush1.msra.mxu0 0.0
    %114 = vmatprep.subr.mxu0 0.0
    %115 = vmatpush1.msra.mxu0 0.0
    %116 = vmatprep.subr.mxu0 0.0
    %117 = vmatpush1.msra.mxu0 0.0
    %118 = vmatprep.subr.mxu0 0.0
    %119 = vmatpush1.msra.mxu0 0.0
    %120 = vmatprep.subr.mxu0 0.0
    %121 = vmatpush1.msra.mxu0 0.0
    %122 = vmatprep.subr.mxu0 0.0
    %123 = vmatpush1.msra.mxu0 0.0
    %124 = vmatprep.subr.mxu0 0.0
    %125 = vmatpush1.msra.mxu0 0.0
    %126 = vmatprep.subr.mxu0 0.0
    %127 = vmatpush1.msra.mxu0 0.0
    %128 = vmatprep.subr.mxu0 0.0
    %129 = vmatpush1.msra.mxu0 0.0
    %130 = vmatprep.subr.mxu0 0.0
    %131 = vmatpush1.msra.mxu0 0.0
    %132 = vmatprep.subr.mxu0 %v74
    %133 = vmatpush1.msra.mxu0 %v73
    %134 = vmatprep.subr.mxu0 %v70
    %135 = vmatpush1.msra.mxu0 %v69
    %136 = vmatprep.subr.mxu0 0.0
    %137 = vmatpush2.msra.mxu0 0.0
    %138 = vmatprep.subr.mxu0 0.0
    %139 = vmatpush2.msra.mxu0 0.0
    %140 = vmatprep.subr.mxu0 0.0
    %141 = vmatpush2.msra.mxu0 0.0
    %142 = vmatprep.subr.mxu0 0.0
    %143 = vmatpush2.msra.mxu0 0.0
    %144 = vmatprep.subr.mxu0 0.0
    %145 = vmatpush2.msra.mxu0 0.0
    %146 = vmatprep.subr.mxu0 0.0
    %147 = vmatpush2.msra.mxu0 0.0
    %148 = vmatprep.subr.mxu0 0.0
    %149 = vmatpush2.msra.mxu0 0.0
    %150 = vmatprep.subr.mxu0 0.0
    %151 = vmatpush2.msra.mxu0 0.0
    %152 = vmatprep.subr.mxu0 0.0
    %153 = vmatpush2.msra.mxu0 0.0
    %154 = vmatprep.subr.mxu0 0.0
    %155 = vmatpush2.msra.mxu0 0.0
    %156 = vmatprep.subr.mxu0 0.0
    %157 = vmatpush2.msra.mxu0 0.0
    %158 = vmatprep.subr.mxu0 0.0
    %159 = vmatpush2.msra.mxu0 0.0
    %160 = vmatprep.subr.mxu0 0.0
    %161 = vmatpush2.msra.mxu0 0.0
    %162 = vmatprep.subr.mxu0 0.0
    %163 = vmatpush2.msra.mxu0 0.0
    %164 = vmatprep.subr.mxu0 0.0
    %165 = vmatpush2.msra.mxu0 0.0
    %166 = vmatprep.subr.mxu0 0.0
    %167 = vmatpush2.msra.mxu0 0.0
    %168 = vmatprep.mubr.f32.mxu0 0.0
    %169 = vmatmul.mubr.f32.gmra.mxu0 %v102
    %v170 = vpop.f32.mrf.mxu0
    %v171 = vadd.f32 %v83, %v170
    %v172 = vpop.f32.mrf.mxu0
    %v173 = vadd.f32 %v87, %v172
    %174 = vdwg.mxu0
    %175 = vmatprep.subr.mxu0 0.0
    %176 = vmatpush1.msra.mxu0 0.0
    %177 = vmatprep.subr.mxu0 0.0
    %178 = vmatpush1.msra.mxu0 0.0
    %179 = vmatprep.subr.mxu0 0.0
    %180 = vmatpush1.msra.mxu0 0.0
    %181 = vmatprep.subr.mxu0 0.0
    %182 = vmatpush1.msra.mxu0 0.0
    %183 = vmatprep.subr.mxu0 0.0
    %184 = vmatpush1.msra.mxu0 0.0
    %185 = vmatprep.subr.mxu0 0.0
    %186 = vmatpush1.msra.mxu0 0.0
    %187 = vmatprep.subr.mxu0 0.0
    %188 = vmatpush1.msra.mxu0 0.0
    %189 = vmatprep.subr.mxu0 0.0
    %190 = vmatpush1.msra.mxu0 0.0
    %191 = vmatprep.subr.mxu0 0.0
    %192 = vmatpush1.msra.mxu0 0.0
    %193 = vmatprep.subr.mxu0 0.0
    %194 = vmatpush1.msra.mxu0 0.0
    %195 = vmatprep.subr.mxu0 0.0
    %196 = vmatpush1.msra.mxu0 0.0
    %197 = vmatprep.subr.mxu0 0.0
    %198 = vmatpush1.msra.mxu0 0.0
    %199 = vmatprep.subr.mxu0 0.0
    %200 = vmatpush1.msra.mxu0 0.0
    %201 = vmatprep.subr.mxu0 0.0
    %202 = vmatpush1.msra.mxu0 0.0
    %203 = vmatprep.subr.mxu0 %v76
    %204 = vmatpush1.msra.mxu0 %v75
    %205 = vmatprep.subr.mxu0 %v72
    %206 = vmatpush1.msra.mxu0 %v71
    %207 = vmatprep.subr.mxu0 0.0
    %208 = vmatpush2.msra.mxu0 0.0
    %209 = vmatprep.subr.mxu0 0.0
    %210 = vmatpush2.msra.mxu0 0.0
    %211 = vmatprep.subr.mxu0 0.0
    %212 = vmatpush2.msra.mxu0 0.0
    %213 = vmatprep.subr.mxu0 0.0
    %214 = vmatpush2.msra.mxu0 0.0
    %215 = vmatprep.subr.mxu0 0.0
    %216 = vmatpush2.msra.mxu0 0.0
    %217 = vmatprep.subr.mxu0 0.0
    %218 = vmatpush2.msra.mxu0 0.0
    %219 = vmatprep.subr.mxu0 0.0
    %220 = vmatpush2.msra.mxu0 0.0
    %221 = vmatprep.subr.mxu0 0.0
    %222 = vmatpush2.msra.mxu0 0.0
    %223 = vmatprep.subr.mxu0 0.0
    %224 = vmatpush2.msra.mxu0 0.0
    %225 = vmatprep.subr.mxu0 0.0
    %226 = vmatpush2.msra.mxu0 0.0
    %227 = vmatprep.subr.mxu0 0.0
    %228 = vmatpush2.msra.mxu0 0.0
    %229 = vmatprep.subr.mxu0 0.0
    %230 = vmatpush2.msra.mxu0 0.0
    %231 = vmatprep.subr.mxu0 0.0
    %232 = vmatpush2.msra.mxu0 0.0
    %233 = vmatprep.subr.mxu0 0.0
    %234 = vmatpush2.msra.mxu0 0.0
    %235 = vmatprep.subr.mxu0 0.0
    %236 = vmatpush2.msra.mxu0 0.0
    %237 = vmatprep.subr.mxu0 0.0
    %238 = vmatpush2.msra.mxu0 0.0
    %239 = vmatprep.mubr.f32.mxu0 0.0
    %240 = vmatmul.mubr.f32.gmra.mxu0 %v102
    %v241 = vpop.f32.mrf.mxu0
    %v242 = vadd.f32 %v91, %v241
    %v243 = vpop.f32.mrf.mxu0
    %v244 = vadd.f32 %v95, %v243
    %245 = vdwg.mxu0
    %246 = vst [vmem:[#allocation2] sm:$0xff] %v171
    %247 = vst [vmem:[#allocation2 + $0x8] sm:$0xff] %v173
    %248 = vst [vmem:[#allocation2 + $0x10] sm:$0xff] %v242
    %249 = vst [vmem:[#allocation2 + $0x18] sm:$0xff] %v244
    %s250 = scalar_lea.vmem [#allocation5], 8
    %v251 = vld [vmem:[%s250] sm:$0xff]
    %v253 = vsel %vm100, %v251, 0
    %255 = vmatprep.subr.mxu0 0.0
    %256 = vmatpush1.msra.mxu0 0.0
    %257 = vmatprep.subr.mxu0 0.0
    %258 = vmatpush1.msra.mxu0 0.0
    %259 = vmatprep.subr.mxu0 0.0
    %260 = vmatpush1.msra.mxu0 0.0
    %261 = vmatprep.subr.mxu0 0.0
    %262 = vmatpush1.msra.mxu0 0.0
    %263 = vmatprep.subr.mxu0 0.0
    %264 = vmatpush1.msra.mxu0 0.0
    %265 = vmatprep.subr.mxu0 0.0
    %266 = vmatpush1.msra.mxu0 0.0
    %267 = vmatprep.subr.mxu0 0.0
    %268 = vmatpush1.msra.mxu0 0.0
    %269 = vmatprep.subr.mxu0 0.0
    %270 = vmatpush1.msra.mxu0 0.0
    %271 = vmatprep.subr.mxu0 0.0
    %272 = vmatpush1.msra.mxu0 0.0
    %273 = vmatprep.subr.mxu0 0.0
    %274 = vmatpush1.msra.mxu0 0.0
    %275 = vmatprep.subr.mxu0 0.0
    %276 = vmatpush1.msra.mxu0 0.0
    %277 = vmatprep.subr.mxu0 0.0
    %278 = vmatpush1.msra.mxu0 0.0
    %279 = vmatprep.subr.mxu0 0.0
    %280 = vmatpush1.msra.mxu0 0.0
    %281 = vmatprep.subr.mxu0 0.0
    %282 = vmatpush1.msra.mxu0 0.0
    %283 = vmatprep.subr.mxu0 %v74
    %284 = vmatpush1.msra.mxu0 %v73
    %285 = vmatprep.subr.mxu0 %v70
    %286 = vmatpush1.msra.mxu0 %v69
    %287 = vmatprep.subr.mxu0 0.0
    %288 = vmatpush2.msra.mxu0 0.0
    %289 = vmatprep.subr.mxu0 0.0
    %290 = vmatpush2.msra.mxu0 0.0
    %291 = vmatprep.subr.mxu0 0.0
    %292 = vmatpush2.msra.mxu0 0.0
    %293 = vmatprep.subr.mxu0 0.0
    %294 = vmatpush2.msra.mxu0 0.0
    %295 = vmatprep.subr.mxu0 0.0
    %296 = vmatpush2.msra.mxu0 0.0
    %297 = vmatprep.subr.mxu0 0.0
    %298 = vmatpush2.msra.mxu0 0.0
    %299 = vmatprep.subr.mxu0 0.0
    %300 = vmatpush2.msra.mxu0 0.0
    %301 = vmatprep.subr.mxu0 0.0
    %302 = vmatpush2.msra.mxu0 0.0
    %303 = vmatprep.subr.mxu0 0.0
    %304 = vmatpush2.msra.mxu0 0.0
    %305 = vmatprep.subr.mxu0 0.0
    %306 = vmatpush2.msra.mxu0 0.0
    %307 = vmatprep.subr.mxu0 0.0
    %308 = vmatpush2.msra.mxu0 0.0
    %309 = vmatprep.subr.mxu0 0.0
    %310 = vmatpush2.msra.mxu0 0.0
    %311 = vmatprep.subr.mxu0 0.0
    %312 = vmatpush2.msra.mxu0 0.0
    %313 = vmatprep.subr.mxu0 0.0
    %314 = vmatpush2.msra.mxu0 0.0
    %315 = vmatprep.subr.mxu0 0.0
    %316 = vmatpush2.msra.mxu0 0.0
    %317 = vmatprep.subr.mxu0 0.0
    %318 = vmatpush2.msra.mxu0 0.0
    %319 = vmatprep.mubr.f32.mxu0 0.0
    %320 = vmatmul.mubr.f32.gmra.mxu0 %v253
    %v321 = vpop.f32.mrf.mxu0
    %v322 = vadd.f32 %v83, %v321
    %v323 = vpop.f32.mrf.mxu0
    %v324 = vadd.f32 %v87, %v323
    %325 = vdwg.mxu0
    %326 = vmatprep.subr.mxu0 0.0
    %327 = vmatpush1.msra.mxu0 0.0
    %328 = vmatprep.subr.mxu0 0.0
    %329 = vmatpush1.msra.mxu0 0.0
    %330 = vmatprep.subr.mxu0 0.0
    %331 = vmatpush1.msra.mxu0 0.0
    %332 = vmatprep.subr.mxu0 0.0
    %333 = vmatpush1.msra.mxu0 0.0
    %334 = vmatprep.subr.mxu0 0.0
    %335 = vmatpush1.msra.mxu0 0.0
    %336 = vmatprep.subr.mxu0 0.0
    %337 = vmatpush1.msra.mxu0 0.0
    %338 = vmatprep.subr.mxu0 0.0
    %339 = vmatpush1.msra.mxu0 0.0
    %340 = vmatprep.subr.mxu0 0.0
    %341 = vmatpush1.msra.mxu0 0.0
    %342 = vmatprep.subr.mxu0 0.0
    %343 = vmatpush1.msra.mxu0 0.0
    %344 = vmatprep.subr.mxu0 0.0
    %345 = vmatpush1.msra.mxu0 0.0
    %346 = vmatprep.subr.mxu0 0.0
    %347 = vmatpush1.msra.mxu0 0.0
    %348 = vmatprep.subr.mxu0 0.0
    %349 = vmatpush1.msra.mxu0 0.0
    %350 = vmatprep.subr.mxu0 0.0
    %351 = vmatpush1.msra.mxu0 0.0
    %352 = vmatprep.subr.mxu0 0.0
    %353 = vmatpush1.msra.mxu0 0.0
    %354 = vmatprep.subr.mxu0 %v76
    %355 = vmatpush1.msra.mxu0 %v75
    %356 = vmatprep.subr.mxu0 %v72
    %357 = vmatpush1.msra.mxu0 %v71
    %358 = vmatprep.subr.mxu0 0.0
    %359 = vmatpush2.msra.mxu0 0.0
    %360 = vmatprep.subr.mxu0 0.0
    %361 = vmatpush2.msra.mxu0 0.0
    %362 = vmatprep.subr.mxu0 0.0
    %363 = vmatpush2.msra.mxu0 0.0
    %364 = vmatprep.subr.mxu0 0.0
    %365 = vmatpush2.msra.mxu0 0.0
    %366 = vmatprep.subr.mxu0 0.0
    %367 = vmatpush2.msra.mxu0 0.0
    %368 = vmatprep.subr.mxu0 0.0
    %369 = vmatpush2.msra.mxu0 0.0
    %370 = vmatprep.subr.mxu0 0.0
    %371 = vmatpush2.msra.mxu0 0.0
    %372 = vmatprep.subr.mxu0 0.0
    %373 = vmatpush2.msra.mxu0 0.0
    %374 = vmatprep.subr.mxu0 0.0
    %375 = vmatpush2.msra.mxu0 0.0
    %376 = vmatprep.subr.mxu0 0.0
    %377 = vmatpush2.msra.mxu0 0.0
    %378 = vmatprep.subr.mxu0 0.0
    %379 = vmatpush2.msra.mxu0 0.0
    %380 = vmatprep.subr.mxu0 0.0
    %381 = vmatpush2.msra.mxu0 0.0
    %382 = vmatprep.subr.mxu0 0.0
    %383 = vmatpush2.msra.mxu0 0.0
    %384 = vmatprep.subr.mxu0 0.0
    %385 = vmatpush2.msra.mxu0 0.0
    %386 = vmatprep.subr.mxu0 0.0
    %387 = vmatpush2.msra.mxu0 0.0
    %388 = vmatprep.subr.mxu0 0.0
    %389 = vmatpush2.msra.mxu0 0.0
    %390 = vmatprep.mubr.f32.mxu0 0.0
    %391 = vmatmul.mubr.f32.gmra.mxu0 %v253
    %v392 = vpop.f32.mrf.mxu0
    %v393 = vadd.f32 %v91, %v392
    %v394 = vpop.f32.mrf.mxu0
    %v395 = vadd.f32 %v95, %v394
    %396 = vdwg.mxu0
    %s397 = scalar_lea.vmem [#allocation2], 32
    %398 = vst [vmem:[%s397] sm:$0xff] %v322
    %399 = vst [vmem:[%s397 + $0x8] sm:$0xff] %v324
    %400 = vst [vmem:[%s397 + $0x10] sm:$0xff] %v393
    %401 = vst [vmem:[%s397 + $0x18] sm:$0xff] %v395
    %s402 = scalar_lea.vmem [#allocation5], 16
    %v403 = vld [vmem:[%s402] sm:$0xff]
    %v405 = vsel %vm100, %v403, 0
    %407 = vmatprep.subr.mxu0 0.0
    %408 = vmatpush1.msra.mxu0 0.0
    %409 = vmatprep.subr.mxu0 0.0
    %410 = vmatpush1.msra.mxu0 0.0
    %411 = vmatprep.subr.mxu0 0.0
    %412 = vmatpush1.msra.mxu0 0.0
    %413 = vmatprep.subr.mxu0 0.0
    %414 = vmatpush1.msra.mxu0 0.0
    %415 = vmatprep.subr.mxu0 0.0
    %416 = vmatpush1.msra.mxu0 0.0
    %417 = vmatprep.subr.mxu0 0.0
    %418 = vmatpush1.msra.mxu0 0.0
    %419 = vmatprep.subr.mxu0 0.0
    %420 = vmatpush1.msra.mxu0 0.0
    %421 = vmatprep.subr.mxu0 0.0
    %422 = vmatpush1.msra.mxu0 0.0
    %423 = vmatprep.subr.mxu0 0.0
    %424 = vmatpush1.msra.mxu0 0.0
    %425 = vmatprep.subr.mxu0 0.0
    %426 = vmatpush1.msra.mxu0 0.0
    %427 = vmatprep.subr.mxu0 0.0
    %428 = vmatpush1.msra.mxu0 0.0
    %429 = vmatprep.subr.mxu0 0.0
    %430 = vmatpush1.msra.mxu0 0.0
    %431 = vmatprep.subr.mxu0 0.0
    %432 = vmatpush1.msra.mxu0 0.0
    %433 = vmatprep.subr.mxu0 0.0
    %434 = vmatpush1.msra.mxu0 0.0
    %435 = vmatprep.subr.mxu0 %v74
    %436 = vmatpush1.msra.mxu0 %v73
    %437 = vmatprep.subr.mxu0 %v70
    %438 = vmatpush1.msra.mxu0 %v69
    %439 = vmatprep.subr.mxu0 0.0
    %440 = vmatpush2.msra.mxu0 0.0
    %441 = vmatprep.subr.mxu0 0.0
    %442 = vmatpush2.msra.mxu0 0.0
    %443 = vmatprep.subr.mxu0 0.0
    %444 = vmatpush2.msra.mxu0 0.0
    %445 = vmatprep.subr.mxu0 0.0
    %446 = vmatpush2.msra.mxu0 0.0
    %447 = vmatprep.subr.mxu0 0.0
    %448 = vmatpush2.msra.mxu0 0.0
    %449 = vmatprep.subr.mxu0 0.0
    %450 = vmatpush2.msra.mxu0 0.0
    %451 = vmatprep.subr.mxu0 0.0
    %452 = vmatpush2.msra.mxu0 0.0
    %453 = vmatprep.subr.mxu0 0.0
    %454 = vmatpush2.msra.mxu0 0.0
    %455 = vmatprep.subr.mxu0 0.0
    %456 = vmatpush2.msra.mxu0 0.0
    %457 = vmatprep.subr.mxu0 0.0
    %458 = vmatpush2.msra.mxu0 0.0
    %459 = vmatprep.subr.mxu0 0.0
    %460 = vmatpush2.msra.mxu0 0.0
    %461 = vmatprep.subr.mxu0 0.0
    %462 = vmatpush2.msra.mxu0 0.0
    %463 = vmatprep.subr.mxu0 0.0
    %464 = vmatpush2.msra.mxu0 0.0
    %465 = vmatprep.subr.mxu0 0.0
    %466 = vmatpush2.msra.mxu0 0.0
    %467 = vmatprep.subr.mxu0 0.0
    %468 = vmatpush2.msra.mxu0 0.0
    %469 = vmatprep.subr.mxu0 0.0
    %470 = vmatpush2.msra.mxu0 0.0
    %471 = vmatprep.mubr.f32.mxu0 0.0
    %472 = vmatmul.mubr.f32.gmra.mxu0 %v405
    %v473 = vpop.f32.mrf.mxu0
    %v474 = vadd.f32 %v83, %v473
    %v475 = vpop.f32.mrf.mxu0
    %v476 = vadd.f32 %v87, %v475
    %477 = vdwg.mxu0
    %478 = vmatprep.subr.mxu0 0.0
    %479 = vmatpush1.msra.mxu0 0.0
    %480 = vmatprep.subr.mxu0 0.0
    %481 = vmatpush1.msra.mxu0 0.0
    %482 = vmatprep.subr.mxu0 0.0
    %483 = vmatpush1.msra.mxu0 0.0
    %484 = vmatprep.subr.mxu0 0.0
    %485 = vmatpush1.msra.mxu0 0.0
    %486 = vmatprep.subr.mxu0 0.0
    %487 = vmatpush1.msra.mxu0 0.0
    %488 = vmatprep.subr.mxu0 0.0
    %489 = vmatpush1.msra.mxu0 0.0
    %490 = vmatprep.subr.mxu0 0.0
    %491 = vmatpush1.msra.mxu0 0.0
    %492 = vmatprep.subr.mxu0 0.0
    %493 = vmatpush1.msra.mxu0 0.0
    %494 = vmatprep.subr.mxu0 0.0
    %495 = vmatpush1.msra.mxu0 0.0
    %496 = vmatprep.subr.mxu0 0.0
    %497 = vmatpush1.msra.mxu0 0.0
    %498 = vmatprep.subr.mxu0 0.0
    %499 = vmatpush1.msra.mxu0 0.0
    %500 = vmatprep.subr.mxu0 0.0
    %501 = vmatpush1.msra.mxu0 0.0
    %502 = vmatprep.subr.mxu0 0.0
    %503 = vmatpush1.msra.mxu0 0.0
    %504 = vmatprep.subr.mxu0 0.0
    %505 = vmatpush1.msra.mxu0 0.0
    %506 = vmatprep.subr.mxu0 %v76
    %507 = vmatpush1.msra.mxu0 %v75
    %508 = vmatprep.subr.mxu0 %v72
    %509 = vmatpush1.msra.mxu0 %v71
    %510 = vmatprep.subr.mxu0 0.0
    %511 = vmatpush2.msra.mxu0 0.0
    %512 = vmatprep.subr.mxu0 0.0
    %513 = vmatpush2.msra.mxu0 0.0
    %514 = vmatprep.subr.mxu0 0.0
    %515 = vmatpush2.msra.mxu0 0.0
    %516 = vmatprep.subr.mxu0 0.0
    %517 = vmatpush2.msra.mxu0 0.0
    %518 = vmatprep.subr.mxu0 0.0
    %519 = vmatpush2.msra.mxu0 0.0
    %520 = vmatprep.subr.mxu0 0.0
    %521 = vmatpush2.msra.mxu0 0.0
    %522 = vmatprep.subr.mxu0 0.0
    %523 = vmatpush2.msra.mxu0 0.0
    %524 = vmatprep.subr.mxu0 0.0
    %525 = vmatpush2.msra.mxu0 0.0
    %526 = vmatprep.subr.mxu0 0.0
    %527 = vmatpush2.msra.mxu0 0.0
    %528 = vmatprep.subr.mxu0 0.0
    %529 = vmatpush2.msra.mxu0 0.0
    %530 = vmatprep.subr.mxu0 0.0
    %531 = vmatpush2.msra.mxu0 0.0
    %532 = vmatprep.subr.mxu0 0.0
    %533 = vmatpush2.msra.mxu0 0.0
    %534 = vmatprep.subr.mxu0 0.0
    %535 = vmatpush2.msra.mxu0 0.0
    %536 = vmatprep.subr.mxu0 0.0
    %537 = vmatpush2.msra.mxu0 0.0
    %538 = vmatprep.subr.mxu0 0.0
    %539 = vmatpush2.msra.mxu0 0.0
    %540 = vmatprep.subr.mxu0 0.0
    %541 = vmatpush2.msra.mxu0 0.0
    %542 = vmatprep.mubr.f32.mxu0 0.0
    %543 = vmatmul.mubr.f32.gmra.mxu0 %v405
    %v544 = vpop.f32.mrf.mxu0
    %v545 = vadd.f32 %v91, %v544
    %v546 = vpop.f32.mrf.mxu0
    %v547 = vadd.f32 %v95, %v546
    %548 = vdwg.mxu0
    %s549 = scalar_lea.vmem [#allocation2], 64
    %550 = vst [vmem:[%s549] sm:$0xff] %v474
    %551 = vst [vmem:[%s549 + $0x8] sm:$0xff] %v476
    %552 = vst [vmem:[%s549 + $0x10] sm:$0xff] %v545
    %553 = vst [vmem:[%s549 + $0x18] sm:$0xff] %v547
    %s554 = scalar_lea.vmem [#allocation5], 24
    %v555 = vld [vmem:[%s554] sm:$0xff]
    %v557 = vsel %vm100, %v555, 0
    %559 = vmatprep.subr.mxu0 0.0
    %560 = vmatpush1.msra.mxu0 0.0
    %561 = vmatprep.subr.mxu0 0.0
    %562 = vmatpush1.msra.mxu0 0.0
    %563 = vmatprep.subr.mxu0 0.0
    %564 = vmatpush1.msra.mxu0 0.0
    %565 = vmatprep.subr.mxu0 0.0
    %566 = vmatpush1.msra.mxu0 0.0
    %567 = vmatprep.subr.mxu0 0.0
    %568 = vmatpush1.msra.mxu0 0.0
    %569 = vmatprep.subr.mxu0 0.0
    %570 = vmatpush1.msra.mxu0 0.0
    %571 = vmatprep.subr.mxu0 0.0
    %572 = vmatpush1.msra.mxu0 0.0
    %573 = vmatprep.subr.mxu0 0.0
    %574 = vmatpush1.msra.mxu0 0.0
    %575 = vmatprep.subr.mxu0 0.0
    %576 = vmatpush1.msra.mxu0 0.0
    %577 = vmatprep.subr.mxu0 0.0
    %578 = vmatpush1.msra.mxu0 0.0
    %579 = vmatprep.subr.mxu0 0.0
    %580 = vmatpush1.msra.mxu0 0.0
    %581 = vmatprep.subr.mxu0 0.0
    %582 = vmatpush1.msra.mxu0 0.0
    %583 = vmatprep.subr.mxu0 0.0
    %584 = vmatpush1.msra.mxu0 0.0
    %585 = vmatprep.subr.mxu0 0.0
    %586 = vmatpush1.msra.mxu0 0.0
    %587 = vmatprep.subr.mxu0 %v74
    %588 = vmatpush1.msra.mxu0 %v73
    %589 = vmatprep.subr.mxu0 %v70
    %590 = vmatpush1.msra.mxu0 %v69
    %591 = vmatprep.subr.mxu0 0.0
    %592 = vmatpush2.msra.mxu0 0.0
    %593 = vmatprep.subr.mxu0 0.0
    %594 = vmatpush2.msra.mxu0 0.0
    %595 = vmatprep.subr.mxu0 0.0
    %596 = vmatpush2.msra.mxu0 0.0
    %597 = vmatprep.subr.mxu0 0.0
    %598 = vmatpush2.msra.mxu0 0.0
    %599 = vmatprep.subr.mxu0 0.0
    %600 = vmatpush2.msra.mxu0 0.0
    %601 = vmatprep.subr.mxu0 0.0
    %602 = vmatpush2.msra.mxu0 0.0
    %603 = vmatprep.subr.mxu0 0.0
    %604 = vmatpush2.msra.mxu0 0.0
    %605 = vmatprep.subr.mxu0 0.0
    %606 = vmatpush2.msra.mxu0 0.0
    %607 = vmatprep.subr.mxu0 0.0
    %608 = vmatpush2.msra.mxu0 0.0
    %609 = vmatprep.subr.mxu0 0.0
    %610 = vmatpush2.msra.mxu0 0.0
    %611 = vmatprep.subr.mxu0 0.0
    %612 = vmatpush2.msra.mxu0 0.0
    %613 = vmatprep.subr.mxu0 0.0
    %614 = vmatpush2.msra.mxu0 0.0
    %615 = vmatprep.subr.mxu0 0.0
    %616 = vmatpush2.msra.mxu0 0.0
    %617 = vmatprep.subr.mxu0 0.0
    %618 = vmatpush2.msra.mxu0 0.0
    %619 = vmatprep.subr.mxu0 0.0
    %620 = vmatpush2.msra.mxu0 0.0
    %621 = vmatprep.subr.mxu0 0.0
    %622 = vmatpush2.msra.mxu0 0.0
    %623 = vmatprep.mubr.f32.mxu0 0.0
    %624 = vmatmul.mubr.f32.gmra.mxu0 %v557
    %v625 = vpop.f32.mrf.mxu0
    %v626 = vadd.f32 %v83, %v625
    %v627 = vpop.f32.mrf.mxu0
    %v628 = vadd.f32 %v87, %v627
    %629 = vdwg.mxu0
    %630 = vmatprep.subr.mxu0 0.0
    %631 = vmatpush1.msra.mxu0 0.0
    %632 = vmatprep.subr.mxu0 0.0
    %633 = vmatpush1.msra.mxu0 0.0
    %634 = vmatprep.subr.mxu0 0.0
    %635 = vmatpush1.msra.mxu0 0.0
    %636 = vmatprep.subr.mxu0 0.0
    %637 = vmatpush1.msra.mxu0 0.0
    %638 = vmatprep.subr.mxu0 0.0
    %639 = vmatpush1.msra.mxu0 0.0
    %640 = vmatprep.subr.mxu0 0.0
    %641 = vmatpush1.msra.mxu0 0.0
    %642 = vmatprep.subr.mxu0 0.0
    %643 = vmatpush1.msra.mxu0 0.0
    %644 = vmatprep.subr.mxu0 0.0
    %645 = vmatpush1.msra.mxu0 0.0
    %646 = vmatprep.subr.mxu0 0.0
    %647 = vmatpush1.msra.mxu0 0.0
    %648 = vmatprep.subr.mxu0 0.0
    %649 = vmatpush1.msra.mxu0 0.0
    %650 = vmatprep.subr.mxu0 0.0
    %651 = vmatpush1.msra.mxu0 0.0
    %652 = vmatprep.subr.mxu0 0.0
    %653 = vmatpush1.msra.mxu0 0.0
    %654 = vmatprep.subr.mxu0 0.0
    %655 = vmatpush1.msra.mxu0 0.0
    %656 = vmatprep.subr.mxu0 0.0
    %657 = vmatpush1.msra.mxu0 0.0
    %658 = vmatprep.subr.mxu0 %v76
    %659 = vmatpush1.msra.mxu0 %v75
    %660 = vmatprep.subr.mxu0 %v72
    %661 = vmatpush1.msra.mxu0 %v71
    %662 = vmatprep.subr.mxu0 0.0
    %663 = vmatpush2.msra.mxu0 0.0
    %664 = vmatprep.subr.mxu0 0.0
    %665 = vmatpush2.msra.mxu0 0.0
    %666 = vmatprep.subr.mxu0 0.0
    %667 = vmatpush2.msra.mxu0 0.0
    %668 = vmatprep.subr.mxu0 0.0
    %669 = vmatpush2.msra.mxu0 0.0
    %670 = vmatprep.subr.mxu0 0.0
    %671 = vmatpush2.msra.mxu0 0.0
    %672 = vmatprep.subr.mxu0 0.0
    %673 = vmatpush2.msra.mxu0 0.0
    %674 = vmatprep.subr.mxu0 0.0
    %675 = vmatpush2.msra.mxu0 0.0
    %676 = vmatprep.subr.mxu0 0.0
    %677 = vmatpush2.msra.mxu0 0.0
    %678 = vmatprep.subr.mxu0 0.0
    %679 = vmatpush2.msra.mxu0 0.0
    %680 = vmatprep.subr.mxu0 0.0
    %681 = vmatpush2.msra.mxu0 0.0
    %682 = vmatprep.subr.mxu0 0.0
    %683 = vmatpush2.msra.mxu0 0.0
    %684 = vmatprep.subr.mxu0 0.0
    %685 = vmatpush2.msra.mxu0 0.0
    %686 = vmatprep.subr.mxu0 0.0
    %687 = vmatpush2.msra.mxu0 0.0
    %688 = vmatprep.subr.mxu0 0.0
    %689 = vmatpush2.msra.mxu0 0.0
    %690 = vmatprep.subr.mxu0 0.0
    %691 = vmatpush2.msra.mxu0 0.0
    %692 = vmatprep.subr.mxu0 0.0
    %693 = vmatpush2.msra.mxu0 0.0
    %694 = vmatprep.mubr.f32.mxu0 0.0
    %695 = vmatmul.mubr.f32.gmra.mxu0 %v557
    %v696 = vpop.f32.mrf.mxu0
    %v697 = vadd.f32 %v91, %v696
    %v698 = vpop.f32.mrf.mxu0
    %v699 = vadd.f32 %v95, %v698
    %700 = vdwg.mxu0
    %s701 = scalar_lea.vmem [#allocation2], 96
    %702 = vst [vmem:[%s701] sm:$0xff] %v626
    %703 = vst [vmem:[%s701 + $0x8] sm:$0xff] %v628
    %704 = vst [vmem:[%s701 + $0x10] sm:$0xff] %v697
    %705 = vst [vmem:[%s701 + $0x18] sm:$0xff] %v699
    %s706 = scalar_lea.vmem [#allocation5], 32
    %v707 = vld [vmem:[%s706] sm:$0xff]
    %v709 = vsel %vm100, %v707, 0
    %711 = vmatprep.subr.mxu0 0.0
    %712 = vmatpush1.msra.mxu0 0.0
    %713 = vmatprep.subr.mxu0 0.0
    %714 = vmatpush1.msra.mxu0 0.0
    %715 = vmatprep.subr.mxu0 0.0
    %716 = vmatpush1.msra.mxu0 0.0
    %717 = vmatprep.subr.mxu0 0.0
    %718 = vmatpush1.msra.mxu0 0.0
    %719 = vmatprep.subr.mxu0 0.0
    %720 = vmatpush1.msra.mxu0 0.0
    %721 = vmatprep.subr.mxu0 0.0
    %722 = vmatpush1.msra.mxu0 0.0
    %723 = vmatprep.subr.mxu0 0.0
    %724 = vmatpush1.msra.mxu0 0.0
    %725 = vmatprep.subr.mxu0 0.0
    %726 = vmatpush1.msra.mxu0 0.0
    %727 = vmatprep.subr.mxu0 0.0
    %728 = vmatpush1.msra.mxu0 0.0
    %729 = vmatprep.subr.mxu0 0.0
    %730 = vmatpush1.msra.mxu0 0.0
    %731 = vmatprep.subr.mxu0 0.0
    %732 = vmatpush1.msra.mxu0 0.0
    %733 = vmatprep.subr.mxu0 0.0
    %734 = vmatpush1.msra.mxu0 0.0
    %735 = vmatprep.subr.mxu0 0.0
    %736 = vmatpush1.msra.mxu0 0.0
    %737 = vmatprep.subr.mxu0 0.0
    %738 = vmatpush1.msra.mxu0 0.0
    %739 = vmatprep.subr.mxu0 %v74
    %740 = vmatpush1.msra.mxu0 %v73
    %741 = vmatprep.subr.mxu0 %v70
    %742 = vmatpush1.msra.mxu0 %v69
    %743 = vmatprep.subr.mxu0 0.0
    %744 = vmatpush2.msra.mxu0 0.0
    %745 = vmatprep.subr.mxu0 0.0
    %746 = vmatpush2.msra.mxu0 0.0
    %747 = vmatprep.subr.mxu0 0.0
    %748 = vmatpush2.msra.mxu0 0.0
    %749 = vmatprep.subr.mxu0 0.0
    %750 = vmatpush2.msra.mxu0 0.0
    %751 = vmatprep.subr.mxu0 0.0
    %752 = vmatpush2.msra.mxu0 0.0
    %753 = vmatprep.subr.mxu0 0.0
    %754 = vmatpush2.msra.mxu0 0.0
    %755 = vmatprep.subr.mxu0 0.0
    %756 = vmatpush2.msra.mxu0 0.0
    %757 = vmatprep.subr.mxu0 0.0
    %758 = vmatpush2.msra.mxu0 0.0
    %759 = vmatprep.subr.mxu0 0.0
    %760 = vmatpush2.msra.mxu0 0.0
    %761 = vmatprep.subr.mxu0 0.0
    %762 = vmatpush2.msra.mxu0 0.0
    %763 = vmatprep.subr.mxu0 0.0
    %764 = vmatpush2.msra.mxu0 0.0
    %765 = vmatprep.subr.mxu0 0.0
    %766 = vmatpush2.msra.mxu0 0.0
    %767 = vmatprep.subr.mxu0 0.0
    %768 = vmatpush2.msra.mxu0 0.0
    %769 = vmatprep.subr.mxu0 0.0
    %770 = vmatpush2.msra.mxu0 0.0
    %771 = vmatprep.subr.mxu0 0.0
    %772 = vmatpush2.msra.mxu0 0.0
    %773 = vmatprep.subr.mxu0 0.0
    %774 = vmatpush2.msra.mxu0 0.0
    %775 = vmatprep.mubr.f32.mxu0 0.0
    %776 = vmatmul.mubr.f32.gmra.mxu0 %v709
    %v777 = vpop.f32.mrf.mxu0
    %v778 = vadd.f32 %v83, %v777
    %v779 = vpop.f32.mrf.mxu0
    %v780 = vadd.f32 %v87, %v779
    %781 = vdwg.mxu0
    %782 = vmatprep.subr.mxu0 0.0
    %783 = vmatpush1.msra.mxu0 0.0
    %784 = vmatprep.subr.mxu0 0.0
    %785 = vmatpush1.msra.mxu0 0.0
    %786 = vmatprep.subr.mxu0 0.0
    %787 = vmatpush1.msra.mxu0 0.0
    %788 = vmatprep.subr.mxu0 0.0
    %789 = vmatpush1.msra.mxu0 0.0
    %790 = vmatprep.subr.mxu0 0.0
    %791 = vmatpush1.msra.mxu0 0.0
    %792 = vmatprep.subr.mxu0 0.0
    %793 = vmatpush1.msra.mxu0 0.0
    %794 = vmatprep.subr.mxu0 0.0
    %795 = vmatpush1.msra.mxu0 0.0
    %796 = vmatprep.subr.mxu0 0.0
    %797 = vmatpush1.msra.mxu0 0.0
    %798 = vmatprep.subr.mxu0 0.0
    %799 = vmatpush1.msra.mxu0 0.0
    %800 = vmatprep.subr.mxu0 0.0
    %801 = vmatpush1.msra.mxu0 0.0
    %802 = vmatprep.subr.mxu0 0.0
    %803 = vmatpush1.msra.mxu0 0.0
    %804 = vmatprep.subr.mxu0 0.0
    %805 = vmatpush1.msra.mxu0 0.0
    %806 = vmatprep.subr.mxu0 0.0
    %807 = vmatpush1.msra.mxu0 0.0
    %808 = vmatprep.subr.mxu0 0.0
    %809 = vmatpush1.msra.mxu0 0.0
    %810 = vmatprep.subr.mxu0 %v76
    %811 = vmatpush1.msra.mxu0 %v75
    %812 = vmatprep.subr.mxu0 %v72
    %813 = vmatpush1.msra.mxu0 %v71
    %814 = vmatprep.subr.mxu0 0.0
    %815 = vmatpush2.msra.mxu0 0.0
    %816 = vmatprep.subr.mxu0 0.0
    %817 = vmatpush2.msra.mxu0 0.0
    %818 = vmatprep.subr.mxu0 0.0
    %819 = vmatpush2.msra.mxu0 0.0
    %820 = vmatprep.subr.mxu0 0.0
    %821 = vmatpush2.msra.mxu0 0.0
    %822 = vmatprep.subr.mxu0 0.0
    %823 = vmatpush2.msra.mxu0 0.0
    %824 = vmatprep.subr.mxu0 0.0
    %825 = vmatpush2.msra.mxu0 0.0
    %826 = vmatprep.subr.mxu0 0.0
    %827 = vmatpush2.msra.mxu0 0.0
    %828 = vmatprep.subr.mxu0 0.0
    %829 = vmatpush2.msra.mxu0 0.0
    %830 = vmatprep.subr.mxu0 0.0
    %831 = vmatpush2.msra.mxu0 0.0
    %832 = vmatprep.subr.mxu0 0.0
    %833 = vmatpush2.msra.mxu0 0.0
    %834 = vmatprep.subr.mxu0 0.0
    %835 = vmatpush2.msra.mxu0 0.0
    %836 = vmatprep.subr.mxu0 0.0
    %837 = vmatpush2.msra.mxu0 0.0
    %838 = vmatprep.subr.mxu0 0.0
    %839 = vmatpush2.msra.mxu0 0.0
    %840 = vmatprep.subr.mxu0 0.0
    %841 = vmatpush2.msra.mxu0 0.0
    %842 = vmatprep.subr.mxu0 0.0
    %843 = vmatpush2.msra.mxu0 0.0
    %844 = vmatprep.subr.mxu0 0.0
    %845 = vmatpush2.msra.mxu0 0.0
    %846 = vmatprep.mubr.f32.mxu0 0.0
    %847 = vmatmul.mubr.f32.gmra.mxu0 %v709
    %v848 = vpop.f32.mrf.mxu0
    %v849 = vadd.f32 %v91, %v848
    %v850 = vpop.f32.mrf.mxu0
    %v851 = vadd.f32 %v95, %v850
    %852 = vdwg.mxu0
    %s853 = scalar_lea.vmem [#allocation2], 128
    %854 = vst [vmem:[%s853] sm:$0xff] %v778
    %855 = vst [vmem:[%s853 + $0x8] sm:$0xff] %v780
    %856 = vst [vmem:[%s853 + $0x10] sm:$0xff] %v849
    %857 = vst [vmem:[%s853 + $0x18] sm:$0xff] %v851
    %s858 = scalar_lea.vmem [#allocation5], 40
    %v859 = vld [vmem:[%s858] sm:$0xff]
    %v861 = vsel %vm100, %v859, 0
    %863 = vmatprep.subr.mxu0 0.0
    %864 = vmatpush1.msra.mxu0 0.0
    %865 = vmatprep.subr.mxu0 0.0
    %866 = vmatpush1.msra.mxu0 0.0
    %867 = vmatprep.subr.mxu0 0.0
    %868 = vmatpush1.msra.mxu0 0.0
    %869 = vmatprep.subr.mxu0 0.0
    %870 = vmatpush1.msra.mxu0 0.0
    %871 = vmatprep.subr.mxu0 0.0
    %872 = vmatpush1.msra.mxu0 0.0
    %873 = vmatprep.subr.mxu0 0.0
    %874 = vmatpush1.msra.mxu0 0.0
    %875 = vmatprep.subr.mxu0 0.0
    %876 = vmatpush1.msra.mxu0 0.0
    %877 = vmatprep.subr.mxu0 0.0
    %878 = vmatpush1.msra.mxu0 0.0
    %879 = vmatprep.subr.mxu0 0.0
    %880 = vmatpush1.msra.mxu0 0.0
    %881 = vmatprep.subr.mxu0 0.0
    %882 = vmatpush1.msra.mxu0 0.0
    %883 = vmatprep.subr.mxu0 0.0
    %884 = vmatpush1.msra.mxu0 0.0
    %885 = vmatprep.subr.mxu0 0.0
    %886 = vmatpush1.msra.mxu0 0.0
    %887 = vmatprep.subr.mxu0 0.0
    %888 = vmatpush1.msra.mxu0 0.0
    %889 = vmatprep.subr.mxu0 0.0
    %890 = vmatpush1.msra.mxu0 0.0
    %891 = vmatprep.subr.mxu0 %v74
    %892 = vmatpush1.msra.mxu0 %v73
    %893 = vmatprep.subr.mxu0 %v70
    %894 = vmatpush1.msra.mxu0 %v69
    %895 = vmatprep.subr.mxu0 0.0
    %896 = vmatpush2.msra.mxu0 0.0
    %897 = vmatprep.subr.mxu0 0.0
    %898 = vmatpush2.msra.mxu0 0.0
    %899 = vmatprep.subr.mxu0 0.0
    %900 = vmatpush2.msra.mxu0 0.0
    %901 = vmatprep.subr.mxu0 0.0
    %902 = vmatpush2.msra.mxu0 0.0
    %903 = vmatprep.subr.mxu0 0.0
    %904 = vmatpush2.msra.mxu0 0.0
    %905 = vmatprep.subr.mxu0 0.0
    %906 = vmatpush2.msra.mxu0 0.0
    %907 = vmatprep.subr.mxu0 0.0
    %908 = vmatpush2.msra.mxu0 0.0
    %909 = vmatprep.subr.mxu0 0.0
    %910 = vmatpush2.msra.mxu0 0.0
    %911 = vmatprep.subr.mxu0 0.0
    %912 = vmatpush2.msra.mxu0 0.0
    %913 = vmatprep.subr.mxu0 0.0
    %914 = vmatpush2.msra.mxu0 0.0
    %915 = vmatprep.subr.mxu0 0.0
    %916 = vmatpush2.msra.mxu0 0.0
    %917 = vmatprep.subr.mxu0 0.0
    %918 = vmatpush2.msra.mxu0 0.0
    %919 = vmatprep.subr.mxu0 0.0
    %920 = vmatpush2.msra.mxu0 0.0
    %921 = vmatprep.subr.mxu0 0.0
    %922 = vmatpush2.msra.mxu0 0.0
    %923 = vmatprep.subr.mxu0 0.0
    %924 = vmatpush2.msra.mxu0 0.0
    %925 = vmatprep.subr.mxu0 0.0
    %926 = vmatpush2.msra.mxu0 0.0
    %927 = vmatprep.mubr.f32.mxu0 0.0
    %928 = vmatmul.mubr.f32.gmra.mxu0 %v861
    %v929 = vpop.f32.mrf.mxu0
    %v930 = vadd.f32 %v83, %v929
    %v931 = vpop.f32.mrf.mxu0
    %v932 = vadd.f32 %v87, %v931
    %933 = vdwg.mxu0
    %934 = vmatprep.subr.mxu0 0.0
    %935 = vmatpush1.msra.mxu0 0.0
    %936 = vmatprep.subr.mxu0 0.0
    %937 = vmatpush1.msra.mxu0 0.0
    %938 = vmatprep.subr.mxu0 0.0
    %939 = vmatpush1.msra.mxu0 0.0
    %940 = vmatprep.subr.mxu0 0.0
    %941 = vmatpush1.msra.mxu0 0.0
    %942 = vmatprep.subr.mxu0 0.0
    %943 = vmatpush1.msra.mxu0 0.0
    %944 = vmatprep.subr.mxu0 0.0
    %945 = vmatpush1.msra.mxu0 0.0
    %946 = vmatprep.subr.mxu0 0.0
    %947 = vmatpush1.msra.mxu0 0.0
    %948 = vmatprep.subr.mxu0 0.0
    %949 = vmatpush1.msra.mxu0 0.0
    %950 = vmatprep.subr.mxu0 0.0
    %951 = vmatpush1.msra.mxu0 0.0
    %952 = vmatprep.subr.mxu0 0.0
    %953 = vmatpush1.msra.mxu0 0.0
    %954 = vmatprep.subr.mxu0 0.0
    %955 = vmatpush1.msra.mxu0 0.0
    %956 = vmatprep.subr.mxu0 0.0
    %957 = vmatpush1.msra.mxu0 0.0
    %958 = vmatprep.subr.mxu0 0.0
    %959 = vmatpush1.msra.mxu0 0.0
    %960 = vmatprep.subr.mxu0 0.0
    %961 = vmatpush1.msra.mxu0 0.0
    %962 = vmatprep.subr.mxu0 %v76
    %963 = vmatpush1.msra.mxu0 %v75
    %964 = vmatprep.subr.mxu0 %v72
    %965 = vmatpush1.msra.mxu0 %v71
    %966 = vmatprep.subr.mxu0 0.0
    %967 = vmatpush2.msra.mxu0 0.0
    %968 = vmatprep.subr.mxu0 0.0
    %969 = vmatpush2.msra.mxu0 0.0
    %970 = vmatprep.subr.mxu0 0.0
    %971 = vmatpush2.msra.mxu0 0.0
    %972 = vmatprep.subr.mxu0 0.0
    %973 = vmatpush2.msra.mxu0 0.0
    %974 = vmatprep.subr.mxu0 0.0
    %975 = vmatpush2.msra.mxu0 0.0
    %976 = vmatprep.subr.mxu0 0.0
    %977 = vmatpush2.msra.mxu0 0.0
    %978 = vmatprep.subr.mxu0 0.0
    %979 = vmatpush2.msra.mxu0 0.0
    %980 = vmatprep.subr.mxu0 0.0
    %981 = vmatpush2.msra.mxu0 0.0
    %982 = vmatprep.subr.mxu0 0.0
    %983 = vmatpush2.msra.mxu0 0.0
    %984 = vmatprep.subr.mxu0 0.0
    %985 = vmatpush2.msra.mxu0 0.0
    %986 = vmatprep.subr.mxu0 0.0
    %987 = vmatpush2.msra.mxu0 0.0
    %988 = vmatprep.subr.mxu0 0.0
    %989 = vmatpush2.msra.mxu0 0.0
    %990 = vmatprep.subr.mxu0 0.0
    %991 = vmatpush2.msra.mxu0 0.0
    %992 = vmatprep.subr.mxu0 0.0
    %993 = vmatpush2.msra.mxu0 0.0
    %994 = vmatprep.subr.mxu0 0.0
    %995 = vmatpush2.msra.mxu0 0.0
    %996 = vmatprep.subr.mxu0 0.0
    %997 = vmatpush2.msra.mxu0 0.0
    %998 = vmatprep.mubr.f32.mxu0 0.0
    %999 = vmatmul.mubr.f32.gmra.mxu0 %v861
    %v1000 = vpop.f32.mrf.mxu0
    %v1001 = vadd.f32 %v91, %v1000
    %v1002 = vpop.f32.mrf.mxu0
    %v1003 = vadd.f32 %v95, %v1002
    %1004 = vdwg.mxu0
    %s1005 = scalar_lea.vmem [#allocation2], 160
    %1006 = vst [vmem:[%s1005] sm:$0xff] %v930
    %1007 = vst [vmem:[%s1005 + $0x8] sm:$0xff] %v932
    %1008 = vst [vmem:[%s1005 + $0x10] sm:$0xff] %v1001
    %1009 = vst [vmem:[%s1005 + $0x18] sm:$0xff] %v1003
    %s1010 = scalar_lea.vmem [#allocation5], 48
    %v1011 = vld [vmem:[%s1010] sm:$0xff]
    %v1013 = vsel %vm100, %v1011, 0
    %1015 = vmatprep.subr.mxu0 0.0
    %1016 = vmatpush1.msra.mxu0 0.0
    %1017 = vmatprep.subr.mxu0 0.0
    %1018 = vmatpush1.msra.mxu0 0.0
    %1019 = vmatprep.subr.mxu0 0.0
    %1020 = vmatpush1.msra.mxu0 0.0
    %1021 = vmatprep.subr.mxu0 0.0
    %1022 = vmatpush1.msra.mxu0 0.0
    %1023 = vmatprep.subr.mxu0 0.0
    %1024 = vmatpush1.msra.mxu0 0.0
    %1025 = vmatprep.subr.mxu0 0.0
    %1026 = vmatpush1.msra.mxu0 0.0
    %1027 = vmatprep.subr.mxu0 0.0
    %1028 = vmatpush1.msra.mxu0 0.0
    %1029 = vmatprep.subr.mxu0 0.0
    %1030 = vmatpush1.msra.mxu0 0.0
    %1031 = vmatprep.subr.mxu0 0.0
    %1032 = vmatpush1.msra.mxu0 0.0
    %1033 = vmatprep.subr.mxu0 0.0
    %1034 = vmatpush1.msra.mxu0 0.0
    %1035 = vmatprep.subr.mxu0 0.0
    %1036 = vmatpush1.msra.mxu0 0.0
    %1037 = vmatprep.subr.mxu0 0.0
    %1038 = vmatpush1.msra.mxu0 0.0
    %1039 = vmatprep.subr.mxu0 0.0
    %1040 = vmatpush1.msra.mxu0 0.0
    %1041 = vmatprep.subr.mxu0 0.0
    %1042 = vmatpush1.msra.mxu0 0.0
    %1043 = vmatprep.subr.mxu0 %v74
    %1044 = vmatpush1.msra.mxu0 %v73
    %1045 = vmatprep.subr.mxu0 %v70
    %1046 = vmatpush1.msra.mxu0 %v69
    %1047 = vmatprep.subr.mxu0 0.0
    %1048 = vmatpush2.msra.mxu0 0.0
    %1049 = vmatprep.subr.mxu0 0.0
    %1050 = vmatpush2.msra.mxu0 0.0
    %1051 = vmatprep.subr.mxu0 0.0
    %1052 = vmatpush2.msra.mxu0 0.0
    %1053 = vmatprep.subr.mxu0 0.0
    %1054 = vmatpush2.msra.mxu0 0.0
    %1055 = vmatprep.subr.mxu0 0.0
    %1056 = vmatpush2.msra.mxu0 0.0
    %1057 = vmatprep.subr.mxu0 0.0
    %1058 = vmatpush2.msra.mxu0 0.0
    %1059 = vmatprep.subr.mxu0 0.0
    %1060 = vmatpush2.msra.mxu0 0.0
    %1061 = vmatprep.subr.mxu0 0.0
    %1062 = vmatpush2.msra.mxu0 0.0
    %1063 = vmatprep.subr.mxu0 0.0
    %1064 = vmatpush2.msra.mxu0 0.0
    %1065 = vmatprep.subr.mxu0 0.0
    %1066 = vmatpush2.msra.mxu0 0.0
    %1067 = vmatprep.subr.mxu0 0.0
    %1068 = vmatpush2.msra.mxu0 0.0
    %1069 = vmatprep.subr.mxu0 0.0
    %1070 = vmatpush2.msra.mxu0 0.0
    %1071 = vmatprep.subr.mxu0 0.0
    %1072 = vmatpush2.msra.mxu0 0.0
    %1073 = vmatprep.subr.mxu0 0.0
    %1074 = vmatpush2.msra.mxu0 0.0
    %1075 = vmatprep.subr.mxu0 0.0
    %1076 = vmatpush2.msra.mxu0 0.0
    %1077 = vmatprep.subr.mxu0 0.0
    %1078 = vmatpush2.msra.mxu0 0.0
    %1079 = vmatprep.mubr.f32.mxu0 0.0
    %1080 = vmatmul.mubr.f32.gmra.mxu0 %v1013
    %v1081 = vpop.f32.mrf.mxu0
    %v1082 = vadd.f32 %v83, %v1081
    %v1083 = vpop.f32.mrf.mxu0
    %v1084 = vadd.f32 %v87, %v1083
    %1085 = vdwg.mxu0
    %1086 = vmatprep.subr.mxu0 0.0
    %1087 = vmatpush1.msra.mxu0 0.0
    %1088 = vmatprep.subr.mxu0 0.0
    %1089 = vmatpush1.msra.mxu0 0.0
    %1090 = vmatprep.subr.mxu0 0.0
    %1091 = vmatpush1.msra.mxu0 0.0
    %1092 = vmatprep.subr.mxu0 0.0
    %1093 = vmatpush1.msra.mxu0 0.0
    %1094 = vmatprep.subr.mxu0 0.0
    %1095 = vmatpush1.msra.mxu0 0.0
    %1096 = vmatprep.subr.mxu0 0.0
    %1097 = vmatpush1.msra.mxu0 0.0
    %1098 = vmatprep.subr.mxu0 0.0
    %1099 = vmatpush1.msra.mxu0 0.0
    %1100 = vmatprep.subr.mxu0 0.0
    %1101 = vmatpush1.msra.mxu0 0.0
    %1102 = vmatprep.subr.mxu0 0.0
    %1103 = vmatpush1.msra.mxu0 0.0
    %1104 = vmatprep.subr.mxu0 0.0
    %1105 = vmatpush1.msra.mxu0 0.0
    %1106 = vmatprep.subr.mxu0 0.0
    %1107 = vmatpush1.msra.mxu0 0.0
    %1108 = vmatprep.subr.mxu0 0.0
    %1109 = vmatpush1.msra.mxu0 0.0
    %1110 = vmatprep.subr.mxu0 0.0
    %1111 = vmatpush1.msra.mxu0 0.0
    %1112 = vmatprep.subr.mxu0 0.0
    %1113 = vmatpush1.msra.mxu0 0.0
    %1114 = vmatprep.subr.mxu0 %v76
    %1115 = vmatpush1.msra.mxu0 %v75
    %1116 = vmatprep.subr.mxu0 %v72
    %1117 = vmatpush1.msra.mxu0 %v71
    %1118 = vmatprep.subr.mxu0 0.0
    %1119 = vmatpush2.msra.mxu0 0.0
    %1120 = vmatprep.subr.mxu0 0.0
    %1121 = vmatpush2.msra.mxu0 0.0
    %1122 = vmatprep.subr.mxu0 0.0
    %1123 = vmatpush2.msra.mxu0 0.0
    %1124 = vmatprep.subr.mxu0 0.0
    %1125 = vmatpush2.msra.mxu0 0.0
    %1126 = vmatprep.subr.mxu0 0.0
    %1127 = vmatpush2.msra.mxu0 0.0
    %1128 = vmatprep.subr.mxu0 0.0
    %1129 = vmatpush2.msra.mxu0 0.0
    %1130 = vmatprep.subr.mxu0 0.0
    %1131 = vmatpush2.msra.mxu0 0.0
    %1132 = vmatprep.subr.mxu0 0.0
    %1133 = vmatpush2.msra.mxu0 0.0
    %1134 = vmatprep.subr.mxu0 0.0
    %1135 = vmatpush2.msra.mxu0 0.0
    %1136 = vmatprep.subr.mxu0 0.0
    %1137 = vmatpush2.msra.mxu0 0.0
    %1138 = vmatprep.subr.mxu0 0.0
    %1139 = vmatpush2.msra.mxu0 0.0
    %1140 = vmatprep.subr.mxu0 0.0
    %1141 = vmatpush2.msra.mxu0 0.0
    %1142 = vmatprep.subr.mxu0 0.0
    %1143 = vmatpush2.msra.mxu0 0.0
    %1144 = vmatprep.subr.mxu0 0.0
    %1145 = vmatpush2.msra.mxu0 0.0
    %1146 = vmatprep.subr.mxu0 0.0
    %1147 = vmatpush2.msra.mxu0 0.0
    %1148 = vmatprep.subr.mxu0 0.0
    %1149 = vmatpush2.msra.mxu0 0.0
    %1150 = vmatprep.mubr.f32.mxu0 0.0
    %1151 = vmatmul.mubr.f32.gmra.mxu0 %v1013
    %v1152 = vpop.f32.mrf.mxu0
    %v1153 = vadd.f32 %v91, %v1152
    %v1154 = vpop.f32.mrf.mxu0
    %v1155 = vadd.f32 %v95, %v1154
    %1156 = vdwg.mxu0
    %s1157 = scalar_lea.vmem [#allocation2], 192
    %1158 = vst [vmem:[%s1157] sm:$0xff] %v1082
    %1159 = vst [vmem:[%s1157 + $0x8] sm:$0xff] %v1084
    %1160 = vst [vmem:[%s1157 + $0x10] sm:$0xff] %v1153
    %1161 = vst [vmem:[%s1157 + $0x18] sm:$0xff] %v1155
    %s1162 = scalar_lea.vmem [#allocation5], 56
    %v1163 = vld [vmem:[%s1162] sm:$0xff]
    %v1165 = vsel %vm100, %v1163, 0
    %1167 = vmatprep.subr.mxu0 0.0
    %1168 = vmatpush1.msra.mxu0 0.0
    %1169 = vmatprep.subr.mxu0 0.0
    %1170 = vmatpush1.msra.mxu0 0.0
    %1171 = vmatprep.subr.mxu0 0.0
    %1172 = vmatpush1.msra.mxu0 0.0
    %1173 = vmatprep.subr.mxu0 0.0
    %1174 = vmatpush1.msra.mxu0 0.0
    %1175 = vmatprep.subr.mxu0 0.0
    %1176 = vmatpush1.msra.mxu0 0.0
    %1177 = vmatprep.subr.mxu0 0.0
    %1178 = vmatpush1.msra.mxu0 0.0
    %1179 = vmatprep.subr.mxu0 0.0
    %1180 = vmatpush1.msra.mxu0 0.0
    %1181 = vmatprep.subr.mxu0 0.0
    %1182 = vmatpush1.msra.mxu0 0.0
    %1183 = vmatprep.subr.mxu0 0.0
    %1184 = vmatpush1.msra.mxu0 0.0
    %1185 = vmatprep.subr.mxu0 0.0
    %1186 = vmatpush1.msra.mxu0 0.0
    %1187 = vmatprep.subr.mxu0 0.0
    %1188 = vmatpush1.msra.mxu0 0.0
    %1189 = vmatprep.subr.mxu0 0.0
    %1190 = vmatpush1.msra.mxu0 0.0
    %1191 = vmatprep.subr.mxu0 0.0
    %1192 = vmatpush1.msra.mxu0 0.0
    %1193 = vmatprep.subr.mxu0 0.0
    %1194 = vmatpush1.msra.mxu0 0.0
    %1195 = vmatprep.subr.mxu0 %v74
    %1196 = vmatpush1.msra.mxu0 %v73
    %1197 = vmatprep.subr.mxu0 %v70
    %1198 = vmatpush1.msra.mxu0 %v69
    %1199 = vmatprep.subr.mxu0 0.0
    %1200 = vmatpush2.msra.mxu0 0.0
    %1201 = vmatprep.subr.mxu0 0.0
    %1202 = vmatpush2.msra.mxu0 0.0
    %1203 = vmatprep.subr.mxu0 0.0
    %1204 = vmatpush2.msra.mxu0 0.0
    %1205 = vmatprep.subr.mxu0 0.0
    %1206 = vmatpush2.msra.mxu0 0.0
    %1207 = vmatprep.subr.mxu0 0.0
    %1208 = vmatpush2.msra.mxu0 0.0
    %1209 = vmatprep.subr.mxu0 0.0
    %1210 = vmatpush2.msra.mxu0 0.0
    %1211 = vmatprep.subr.mxu0 0.0
    %1212 = vmatpush2.msra.mxu0 0.0
    %1213 = vmatprep.subr.mxu0 0.0
    %1214 = vmatpush2.msra.mxu0 0.0
    %1215 = vmatprep.subr.mxu0 0.0
    %1216 = vmatpush2.msra.mxu0 0.0
    %1217 = vmatprep.subr.mxu0 0.0
    %1218 = vmatpush2.msra.mxu0 0.0
    %1219 = vmatprep.subr.mxu0 0.0
    %1220 = vmatpush2.msra.mxu0 0.0
    %1221 = vmatprep.subr.mxu0 0.0
    %1222 = vmatpush2.msra.mxu0 0.0
    %1223 = vmatprep.subr.mxu0 0.0
    %1224 = vmatpush2.msra.mxu0 0.0
    %1225 = vmatprep.subr.mxu0 0.0
    %1226 = vmatpush2.msra.mxu0 0.0
    %1227 = vmatprep.subr.mxu0 0.0
    %1228 = vmatpush2.msra.mxu0 0.0
    %1229 = vmatprep.subr.mxu0 0.0
    %1230 = vmatpush2.msra.mxu0 0.0
    %1231 = vmatprep.mubr.f32.mxu0 0.0
    %1232 = vmatmul.mubr.f32.gmra.mxu0 %v1165
    %v1233 = vpop.f32.mrf.mxu0
    %v1234 = vadd.f32 %v83, %v1233
    %v1235 = vpop.f32.mrf.mxu0
    %v1236 = vadd.f32 %v87, %v1235
    %1237 = vdwg.mxu0
    %1238 = vmatprep.subr.mxu0 0.0
    %1239 = vmatpush1.msra.mxu0 0.0
    %1240 = vmatprep.subr.mxu0 0.0
    %1241 = vmatpush1.msra.mxu0 0.0
    %1242 = vmatprep.subr.mxu0 0.0
    %1243 = vmatpush1.msra.mxu0 0.0
    %1244 = vmatprep.subr.mxu0 0.0
    %1245 = vmatpush1.msra.mxu0 0.0
    %1246 = vmatprep.subr.mxu0 0.0
    %1247 = vmatpush1.msra.mxu0 0.0
    %1248 = vmatprep.subr.mxu0 0.0
    %1249 = vmatpush1.msra.mxu0 0.0
    %1250 = vmatprep.subr.mxu0 0.0
    %1251 = vmatpush1.msra.mxu0 0.0
    %1252 = vmatprep.subr.mxu0 0.0
    %1253 = vmatpush1.msra.mxu0 0.0
    %1254 = vmatprep.subr.mxu0 0.0
    %1255 = vmatpush1.msra.mxu0 0.0
    %1256 = vmatprep.subr.mxu0 0.0
    %1257 = vmatpush1.msra.mxu0 0.0
    %1258 = vmatprep.subr.mxu0 0.0
    %1259 = vmatpush1.msra.mxu0 0.0
    %1260 = vmatprep.subr.mxu0 0.0
    %1261 = vmatpush1.msra.mxu0 0.0
    %1262 = vmatprep.subr.mxu0 0.0
    %1263 = vmatpush1.msra.mxu0 0.0
    %1264 = vmatprep.subr.mxu0 0.0
    %1265 = vmatpush1.msra.mxu0 0.0
    %1266 = vmatprep.subr.mxu0 %v76
    %1267 = vmatpush1.msra.mxu0 %v75
    %1268 = vmatprep.subr.mxu0 %v72
    %1269 = vmatpush1.msra.mxu0 %v71
    %1270 = vmatprep.subr.mxu0 0.0
    %1271 = vmatpush2.msra.mxu0 0.0
    %1272 = vmatprep.subr.mxu0 0.0
    %1273 = vmatpush2.msra.mxu0 0.0
    %1274 = vmatprep.subr.mxu0 0.0
    %1275 = vmatpush2.msra.mxu0 0.0
    %1276 = vmatprep.subr.mxu0 0.0
    %1277 = vmatpush2.msra.mxu0 0.0
    %1278 = vmatprep.subr.mxu0 0.0
    %1279 = vmatpush2.msra.mxu0 0.0
    %1280 = vmatprep.subr.mxu0 0.0
    %1281 = vmatpush2.msra.mxu0 0.0
    %1282 = vmatprep.subr.mxu0 0.0
    %1283 = vmatpush2.msra.mxu0 0.0
    %1284 = vmatprep.subr.mxu0 0.0
    %1285 = vmatpush2.msra.mxu0 0.0
    %1286 = vmatprep.subr.mxu0 0.0
    %1287 = vmatpush2.msra.mxu0 0.0
    %1288 = vmatprep.subr.mxu0 0.0
    %1289 = vmatpush2.msra.mxu0 0.0
    %1290 = vmatprep.subr.mxu0 0.0
    %1291 = vmatpush2.msra.mxu0 0.0
    %1292 = vmatprep.subr.mxu0 0.0
    %1293 = vmatpush2.msra.mxu0 0.0
    %1294 = vmatprep.subr.mxu0 0.0
    %1295 = vmatpush2.msra.mxu0 0.0
    %1296 = vmatprep.subr.mxu0 0.0
    %1297 = vmatpush2.msra.mxu0 0.0
    %1298 = vmatprep.subr.mxu0 0.0
    %1299 = vmatpush2.msra.mxu0 0.0
    %1300 = vmatprep.subr.mxu0 0.0
    %1301 = vmatpush2.msra.mxu0 0.0
    %1302 = vmatprep.mubr.f32.mxu0 0.0
    %1303 = vmatmul.mubr.f32.gmra.mxu0 %v1165
    %v1304 = vpop.f32.mrf.mxu0
    %v1305 = vadd.f32 %v91, %v1304
    %v1306 = vpop.f32.mrf.mxu0
    %v1307 = vadd.f32 %v95, %v1306
    %1308 = vdwg.mxu0
    %s1309 = scalar_lea.vmem [#allocation2], 224
    %1310 = vst [vmem:[%s1309] sm:$0xff] %v1234
    %1311 = vst [vmem:[%s1309 + $0x8] sm:$0xff] %v1236
    %1312 = vst [vmem:[%s1309 + $0x10] sm:$0xff] %v1305
    %1313 = vst [vmem:[%s1309 + $0x18] sm:$0xff] %v1307
    %v1314 = vld [vmem:[#allocation10] sm:$0xff]
    %v1315 = vld [vmem:[#allocation10 + $0x8] sm:$0xff]
    %v1316 = vld [vmem:[#allocation10 + $0x10] sm:$0xff]
    %v1317 = vld [vmem:[#allocation10 + $0x18] sm:$0xff]
    %v1318 = vld [vmem:[#allocation10 + $0x20] sm:$0xff]
    %v1319 = vld [vmem:[#allocation10 + $0x28] sm:$0xff]
    %v1320 = vld [vmem:[#allocation10 + $0x30] sm:$0xff]
    %v1321 = vld [vmem:[#allocation10 + $0x38] sm:$0xff]
    %v1322 = vld [vmem:[#allocation10 + $0x40] sm:$0xff]
    %v1323 = vld [vmem:[#allocation10 + $0x48] sm:$0xff]
    %v1324 = vld [vmem:[#allocation10 + $0x50] sm:$0xff]
    %v1325 = vld [vmem:[#allocation10 + $0x58] sm:$0xff]
    %v1326 = vld [vmem:[#allocation10 + $0x60] sm:$0xff]
    %v1327 = vld [vmem:[#allocation10 + $0x68] sm:$0xff]
    %v1328 = vld [vmem:[#allocation10 + $0x70] sm:$0xff]
    %v1329 = vld [vmem:[#allocation10 + $0x78] sm:$0xff]
    %v1330 = vld [vmem:[#allocation10 + $0x80] sm:$0xff]
    %v1331 = vld [vmem:[#allocation10 + $0x88] sm:$0xff]
    %v1332 = vld [vmem:[#allocation10 + $0x90] sm:$0xff]
    %v1333 = vld [vmem:[#allocation10 + $0x98] sm:$0xff]
    %v1334 = vld [vmem:[#allocation10 + $0xa0] sm:$0xff]
    %v1335 = vld [vmem:[#allocation10 + $0xa8] sm:$0xff]
    %v1336 = vld [vmem:[#allocation10 + $0xb0] sm:$0xff]
    %v1337 = vld [vmem:[#allocation10 + $0xb8] sm:$0xff]
    %v1338 = vld [vmem:[#allocation10 + $0xc0] sm:$0xff]
    %v1339 = vld [vmem:[#allocation10 + $0xc8] sm:$0xff]
    %v1340 = vld [vmem:[#allocation10 + $0xd0] sm:$0xff]
    %v1341 = vld [vmem:[#allocation10 + $0xd8] sm:$0xff]
    %v1342 = vld [vmem:[#allocation10 + $0xe0] sm:$0xff]
    %v1343 = vld [vmem:[#allocation10 + $0xe8] sm:$0xff]
    %v1344 = vld [vmem:[#allocation10 + $0xf0] sm:$0xff]
    %v1345 = vld [vmem:[#allocation10 + $0xf8] sm:$0xff]
    %v1346 = vld [vmem:[#allocation10 + $0x100] sm:$0xff]
    %v1347 = vld [vmem:[#allocation10 + $0x108] sm:$0xff]
    %v1348 = vld [vmem:[#allocation10 + $0x110] sm:$0xff]
    %v1349 = vld [vmem:[#allocation10 + $0x118] sm:$0xff]
    %v1350 = vld [vmem:[#allocation10 + $0x120] sm:$0xff]
    %v1351 = vld [vmem:[#allocation10 + $0x128] sm:$0xff]
    %v1352 = vld [vmem:[#allocation10 + $0x130] sm:$0xff]
    %v1353 = vld [vmem:[#allocation10 + $0x138] sm:$0xff]
    %v1354 = vld [vmem:[#allocation10 + $0x140] sm:$0xff]
    %v1355 = vld [vmem:[#allocation10 + $0x148] sm:$0xff]
    %v1356 = vld [vmem:[#allocation10 + $0x150] sm:$0xff]
    %v1357 = vld [vmem:[#allocation10 + $0x158] sm:$0xff]
    %v1358 = vld [vmem:[#allocation10 + $0x160] sm:$0xff]
    %v1359 = vld [vmem:[#allocation10 + $0x168] sm:$0xff]
    %v1360 = vld [vmem:[#allocation10 + $0x170] sm:$0xff]
    %v1361 = vld [vmem:[#allocation10 + $0x178] sm:$0xff]
    %v1362 = vld [vmem:[#allocation10 + $0x180] sm:$0xff]
    %v1363 = vld [vmem:[#allocation10 + $0x188] sm:$0xff]
    %v1364 = vld [vmem:[#allocation10 + $0x190] sm:$0xff]
    %v1365 = vld [vmem:[#allocation10 + $0x198] sm:$0xff]
    %v1366 = vld [vmem:[#allocation10 + $0x1a0] sm:$0xff]
    %v1367 = vld [vmem:[#allocation10 + $0x1a8] sm:$0xff]
    %v1368 = vld [vmem:[#allocation10 + $0x1b0] sm:$0xff]
    %v1369 = vld [vmem:[#allocation10 + $0x1b8] sm:$0xff]
    %v1370 = vld [vmem:[#allocation10 + $0x1c0] sm:$0xff]
    %v1371 = vld [vmem:[#allocation10 + $0x1c8] sm:$0xff]
    %v1372 = vld [vmem:[#allocation10 + $0x1d0] sm:$0xff]
    %v1373 = vld [vmem:[#allocation10 + $0x1d8] sm:$0xff]
    %v1374 = vld [vmem:[#allocation10 + $0x1e0] sm:$0xff]
    %v1375 = vld [vmem:[#allocation10 + $0x1e8] sm:$0xff]
    %v1376 = vld [vmem:[#allocation10 + $0x1f0] sm:$0xff]
    %v1377 = vld [vmem:[#allocation10 + $0x1f8] sm:$0xff]
    %v1378 = vld [vmem:[#allocation3] sm:$0xff]
    %v1379 = vld [vmem:[#allocation4] sm:$0xff]
    %v1380 = vld [vmem:[#allocation2] sm:$0xff]
    %v1381 = vld [vmem:[#allocation2 + $0x8] sm:$0xff]
    %v1382 = vld [vmem:[#allocation2 + $0x10] sm:$0xff]
    %v1383 = vld [vmem:[#allocation2 + $0x18] sm:$0xff]
    %1384 = vmatprep.subr.mxu0 %v1375
    %1385 = vmatpush1.msra.mxu0 %v1374
    %1386 = vmatprep.subr.mxu0 %v1371
    %1387 = vmatpush1.msra.mxu0 %v1370
    %1388 = vmatprep.subr.mxu0 %v1367
    %1389 = vmatpush1.msra.mxu0 %v1366
    %1390 = vmatprep.subr.mxu0 %v1363
    %1391 = vmatpush1.msra.mxu0 %v1362
    %1392 = vmatprep.subr.mxu0 %v1359
    %1393 = vmatpush1.msra.mxu0 %v1358
    %1394 = vmatprep.subr.mxu0 %v1355
    %1395 = vmatpush1.msra.mxu0 %v1354
    %1396 = vmatprep.subr.mxu0 %v1351
    %1397 = vmatpush1.msra.mxu0 %v1350
    %1398 = vmatprep.subr.mxu0 %v1347
    %1399 = vmatpush1.msra.mxu0 %v1346
    %1400 = vmatprep.subr.mxu0 %v1343
    %1401 = vmatpush1.msra.mxu0 %v1342
    %1402 = vmatprep.subr.mxu0 %v1339
    %1403 = vmatpush1.msra.mxu0 %v1338
    %1404 = vmatprep.subr.mxu0 %v1335
    %1405 = vmatpush1.msra.mxu0 %v1334
    %1406 = vmatprep.subr.mxu0 %v1331
    %1407 = vmatpush1.msra.mxu0 %v1330
    %1408 = vmatprep.subr.mxu0 %v1327
    %1409 = vmatpush1.msra.mxu0 %v1326
    %1410 = vmatprep.subr.mxu0 %v1323
    %1411 = vmatpush1.msra.mxu0 %v1322
    %1412 = vmatprep.subr.mxu0 %v1319
    %1413 = vmatpush1.msra.mxu0 %v1318
    %1414 = vmatprep.subr.mxu0 %v1315
    %1415 = vmatpush1.msra.mxu0 %v1314
    %1416 = vmatprep.subr.mxu0 0.0
    %1417 = vmatpush2.msra.mxu0 0.0
    %1418 = vmatprep.subr.mxu0 0.0
    %1419 = vmatpush2.msra.mxu0 0.0
    %1420 = vmatprep.subr.mxu0 0.0
    %1421 = vmatpush2.msra.mxu0 0.0
    %1422 = vmatprep.subr.mxu0 0.0
    %1423 = vmatpush2.msra.mxu0 0.0
    %1424 = vmatprep.subr.mxu0 0.0
    %1425 = vmatpush2.msra.mxu0 0.0
    %1426 = vmatprep.subr.mxu0 0.0
    %1427 = vmatpush2.msra.mxu0 0.0
    %1428 = vmatprep.subr.mxu0 0.0
    %1429 = vmatpush2.msra.mxu0 0.0
    %1430 = vmatprep.subr.mxu0 0.0
    %1431 = vmatpush2.msra.mxu0 0.0
    %1432 = vmatprep.subr.mxu0 0.0
    %1433 = vmatpush2.msra.mxu0 0.0
    %1434 = vmatprep.subr.mxu0 0.0
    %1435 = vmatpush2.msra.mxu0 0.0
    %1436 = vmatprep.subr.mxu0 0.0
    %1437 = vmatpush2.msra.mxu0 0.0
    %1438 = vmatprep.subr.mxu0 0.0
    %1439 = vmatpush2.msra.mxu0 0.0
    %1440 = vmatprep.subr.mxu0 0.0
    %1441 = vmatpush2.msra.mxu0 0.0
    %1442 = vmatprep.subr.mxu0 0.0
    %1443 = vmatpush2.msra.mxu0 0.0
    %1444 = vmatprep.subr.mxu0 0.0
    %1445 = vmatpush2.msra.mxu0 0.0
    %1446 = vmatprep.subr.mxu0 0.0
    %1447 = vmatpush2.msra.mxu0 0.0
    %1448 = vmatprep.mubr.f32.mxu0 0.0
    %1449 = vmatmul.mubr.f32.gmra.mxu0 %v1378
    %v1450 = vpop.f32.mrf.mxu0
    %v1451 = vadd.f32 0.0, %v1450
    %v1452 = vpop.f32.mrf.mxu0
    %v1453 = vadd.f32 0.0, %v1452
    %1454 = vdwg.mxu0
    %1455 = vmatprep.subr.mxu0 %v1377
    %1456 = vmatpush1.msra.mxu0 %v1376
    %1457 = vmatprep.subr.mxu0 %v1373
    %1458 = vmatpush1.msra.mxu0 %v1372
    %1459 = vmatprep.subr.mxu0 %v1369
    %1460 = vmatpush1.msra.mxu0 %v1368
    %1461 = vmatprep.subr.mxu0 %v1365
    %1462 = vmatpush1.msra.mxu0 %v1364
    %1463 = vmatprep.subr.mxu0 %v1361
    %1464 = vmatpush1.msra.mxu0 %v1360
    %1465 = vmatprep.subr.mxu0 %v1357
    %1466 = vmatpush1.msra.mxu0 %v1356
    %1467 = vmatprep.subr.mxu0 %v1353
    %1468 = vmatpush1.msra.mxu0 %v1352
    %1469 = vmatprep.subr.mxu0 %v1349
    %1470 = vmatpush1.msra.mxu0 %v1348
    %1471 = vmatprep.subr.mxu0 %v1345
    %1472 = vmatpush1.msra.mxu0 %v1344
    %1473 = vmatprep.subr.mxu0 %v1341
    %1474 = vmatpush1.msra.mxu0 %v1340
    %1475 = vmatprep.subr.mxu0 %v1337
    %1476 = vmatpush1.msra.mxu0 %v1336
    %1477 = vmatprep.subr.mxu0 %v1333
    %1478 = vmatpush1.msra.mxu0 %v1332
    %1479 = vmatprep.subr.mxu0 %v1329
    %1480 = vmatpush1.msra.mxu0 %v1328
    %1481 = vmatprep.subr.mxu0 %v1325
    %1482 = vmatpush1.msra.mxu0 %v1324
    %1483 = vmatprep.subr.mxu0 %v1321
    %1484 = vmatpush1.msra.mxu0 %v1320
    %1485 = vmatprep.subr.mxu0 %v1317
    %1486 = vmatpush1.msra.mxu0 %v1316
    %1487 = vmatprep.subr.mxu0 0.0
    %1488 = vmatpush2.msra.mxu0 0.0
    %1489 = vmatprep.subr.mxu0 0.0
    %1490 = vmatpush2.msra.mxu0 0.0
    %1491 = vmatprep.subr.mxu0 0.0
    %1492 = vmatpush2.msra.mxu0 0.0
    %1493 = vmatprep.subr.mxu0 0.0
    %1494 = vmatpush2.msra.mxu0 0.0
    %1495 = vmatprep.subr.mxu0 0.0
    %1496 = vmatpush2.msra.mxu0 0.0
    %1497 = vmatprep.subr.mxu0 0.0
    %1498 = vmatpush2.msra.mxu0 0.0
    %1499 = vmatprep.subr.mxu0 0.0
    %1500 = vmatpush2.msra.mxu0 0.0
    %1501 = vmatprep.subr.mxu0 0.0
    %1502 = vmatpush2.msra.mxu0 0.0
    %1503 = vmatprep.subr.mxu0 0.0
    %1504 = vmatpush2.msra.mxu0 0.0
    %1505 = vmatprep.subr.mxu0 0.0
    %1506 = vmatpush2.msra.mxu0 0.0
    %1507 = vmatprep.subr.mxu0 0.0
    %1508 = vmatpush2.msra.mxu0 0.0
    %1509 = vmatprep.subr.mxu0 0.0
    %1510 = vmatpush2.msra.mxu0 0.0
    %1511 = vmatprep.subr.mxu0 0.0
    %1512 = vmatpush2.msra.mxu0 0.0
    %1513 = vmatprep.subr.mxu0 0.0
    %1514 = vmatpush2.msra.mxu0 0.0
    %1515 = vmatprep.subr.mxu0 0.0
    %1516 = vmatpush2.msra.mxu0 0.0
    %1517 = vmatprep.subr.mxu0 0.0
    %1518 = vmatpush2.msra.mxu0 0.0
    %1519 = vmatprep.mubr.f32.mxu0 0.0
    %1520 = vmatmul.mubr.f32.gmra.mxu0 %v1378
    %v1521 = vpop.f32.mrf.mxu0
    %v1522 = vadd.f32 0.0, %v1521
    %v1523 = vpop.f32.mrf.mxu0
    %v1524 = vadd.f32 0.0, %v1523
    %1525 = vdwg.mxu0
    %v1526 = vadd.f32 %v1380, %v1451
    %v1527 = vadd.f32 %v1381, %v1453
    %v1528 = vadd.f32 %v1382, %v1522
    %v1529 = vadd.f32 %v1383, %v1524
    %v1530 = vmul.f32 %v1526, 0.5
    %v1531 = vtanh.pop %v1530
    %v1532 = vadd.f32 %v1531, 1.0
    %v1533 = vmul.f32 %v1532, 0.5
    %v1534 = vmul.f32 %v1527, 0.5
    %v1535 = vtanh.pop %v1534
    %v1536 = vadd.f32 %v1535, 1.0
    %v1537 = vmul.f32 %v1536, 0.5
    %v1538 = vtanh.pop %v1528
    %v1539 = vmul.f32 %v1529, 0.5
    %v1540 = vtanh.pop %v1539
    %v1541 = vadd.f32 %v1540, 1.0
    %v1542 = vmul.f32 %v1541, 0.5
    %v1543 = vmul.f32 %v1537, %v1379
    %v1544 = vmul.f32 %v1533, %v1538
    %v1545 = vadd.f32 %v1543, %v1544
    %v1546 = vtanh.pop %v1545
    %v1547 = vmul.f32 %v1542, %v1546
    %1548 = vst [vmem:[#allocation4] sm:$0xff] %v1545
    %1549 = vst [vmem:[#allocation3] sm:$0xff] %v1547
    %1550 = vst [vmem:[#allocation11] sm:$0xff] %v1547
    %v1551 = vld [vmem:[#allocation3] sm:$0xff]
    %v1552 = vld [vmem:[#allocation4] sm:$0xff]
    %v1553 = vld [vmem:[%s397] sm:$0xff]
    %v1554 = vld [vmem:[%s397 + $0x8] sm:$0xff]
    %v1555 = vld [vmem:[%s397 + $0x10] sm:$0xff]
    %v1556 = vld [vmem:[%s397 + $0x18] sm:$0xff]
    %1557 = vmatprep.subr.mxu0 %v1375
    %1558 = vmatpush1.msra.mxu0 %v1374
    %1559 = vmatprep.subr.mxu0 %v1371
    %1560 = vmatpush1.msra.mxu0 %v1370
    %1561 = vmatprep.subr.mxu0 %v1367
    %1562 = vmatpush1.msra.mxu0 %v1366
    %1563 = vmatprep.subr.mxu0 %v1363
    %1564 = vmatpush1.msra.mxu0 %v1362
    %1565 = vmatprep.subr.mxu0 %v1359
    %1566 = vmatpush1.msra.mxu0 %v1358
    %1567 = vmatprep.subr.mxu0 %v1355
    %1568 = vmatpush1.msra.mxu0 %v1354
    %1569 = vmatprep.subr.mxu0 %v1351
    %1570 = vmatpush1.msra.mxu0 %v1350
    %1571 = vmatprep.subr.mxu0 %v1347
    %1572 = vmatpush1.msra.mxu0 %v1346
    %1573 = vmatprep.subr.mxu0 %v1343
    %1574 = vmatpush1.msra.mxu0 %v1342
    %1575 = vmatprep.subr.mxu0 %v1339
    %1576 = vmatpush1.msra.mxu0 %v1338
    %1577 = vmatprep.subr.mxu0 %v1335
    %1578 = vmatpush1.msra.mxu0 %v1334
    %1579 = vmatprep.subr.mxu0 %v1331
    %1580 = vmatpush1.msra.mxu0 %v1330
    %1581 = vmatprep.subr.mxu0 %v1327
    %1582 = vmatpush1.msra.mxu0 %v1326
    %1583 = vmatprep.subr.mxu0 %v1323
    %1584 = vmatpush1.msra.mxu0 %v1322
    %1585 = vmatprep.subr.mxu0 %v1319
    %1586 = vmatpush1.msra.mxu0 %v1318
    %1587 = vmatprep.subr.mxu0 %v1315
    %1588 = vmatpush1.msra.mxu0 %v1314
    %1589 = vmatprep.subr.mxu0 0.0
    %1590 = vmatpush2.msra.mxu0 0.0
    %1591 = vmatprep.subr.mxu0 0.0
    %1592 = vmatpush2.msra.mxu0 0.0
    %1593 = vmatprep.subr.mxu0 0.0
    %1594 = vmatpush2.msra.mxu0 0.0
    %1595 = vmatprep.subr.mxu0 0.0
    %1596 = vmatpush2.msra.mxu0 0.0
    %1597 = vmatprep.subr.mxu0 0.0
    %1598 = vmatpush2.msra.mxu0 0.0
    %1599 = vmatprep.subr.mxu0 0.0
    %1600 = vmatpush2.msra.mxu0 0.0
    %1601 = vmatprep.subr.mxu0 0.0
    %1602 = vmatpush2.msra.mxu0 0.0
    %1603 = vmatprep.subr.mxu0 0.0
    %1604 = vmatpush2.msra.mxu0 0.0
    %1605 = vmatprep.subr.mxu0 0.0
    %1606 = vmatpush2.msra.mxu0 0.0
    %1607 = vmatprep.subr.mxu0 0.0
    %1608 = vmatpush2.msra.mxu0 0.0
    %1609 = vmatprep.subr.mxu0 0.0
    %1610 = vmatpush2.msra.mxu0 0.0
    %1611 = vmatprep.subr.mxu0 0.0
    %1612 = vmatpush2.msra.mxu0 0.0
    %1613 = vmatprep.subr.mxu0 0.0
    %1614 = vmatpush2.msra.mxu0 0.0
    %1615 = vmatprep.subr.mxu0 0.0
    %1616 = vmatpush2.msra.mxu0 0.0
    %1617 = vmatprep.subr.mxu0 0.0
    %1618 = vmatpush2.msra.mxu0 0.0
    %1619 = vmatprep.subr.mxu0 0.0
    %1620 = vmatpush2.msra.mxu0 0.0
    %1621 = vmatprep.mubr.f32.mxu0 0.0
    %1622 = vmatmul.mubr.f32.gmra.mxu0 %v1551
    %v1623 = vpop.f32.mrf.mxu0
    %v1624 = vadd.f32 0.0, %v1623
    %v1625 = vpop.f32.mrf.mxu0
    %v1626 = vadd.f32 0.0, %v1625
    %1627 = vdwg.mxu0
    %1628 = vmatprep.subr.mxu0 %v1377
    %1629 = vmatpush1.msra.mxu0 %v1376
    %1630 = vmatprep.subr.mxu0 %v1373
    %1631 = vmatpush1.msra.mxu0 %v1372
    %1632 = vmatprep.subr.mxu0 %v1369
    %1633 = vmatpush1.msra.mxu0 %v1368
    %1634 = vmatprep.subr.mxu0 %v1365
    %1635 = vmatpush1.msra.mxu0 %v1364
    %1636 = vmatprep.subr.mxu0 %v1361
    %1637 = vmatpush1.msra.mxu0 %v1360
    %1638 = vmatprep.subr.mxu0 %v1357
    %1639 = vmatpush1.msra.mxu0 %v1356
    %1640 = vmatprep.subr.mxu0 %v1353
    %1641 = vmatpush1.msra.mxu0 %v1352
    %1642 = vmatprep.subr.mxu0 %v1349
    %1643 = vmatpush1.msra.mxu0 %v1348
    %1644 = vmatprep.subr.mxu0 %v1345
    %1645 = vmatpush1.msra.mxu0 %v1344
    %1646 = vmatprep.subr.mxu0 %v1341
    %1647 = vmatpush1.msra.mxu0 %v1340
    %1648 = vmatprep.subr.mxu0 %v1337
    %1649 = vmatpush1.msra.mxu0 %v1336
    %1650 = vmatprep.subr.mxu0 %v1333
    %1651 = vmatpush1.msra.mxu0 %v1332
    %1652 = vmatprep.subr.mxu0 %v1329
    %1653 = vmatpush1.msra.mxu0 %v1328
    %1654 = vmatprep.subr.mxu0 %v1325
    %1655 = vmatpush1.msra.mxu0 %v1324
    %1656 = vmatprep.subr.mxu0 %v1321
    %1657 = vmatpush1.msra.mxu0 %v1320
    %1658 = vmatprep.subr.mxu0 %v1317
    %1659 = vmatpush1.msra.mxu0 %v1316
    %1660 = vmatprep.subr.mxu0 0.0
    %1661 = vmatpush2.msra.mxu0 0.0
    %1662 = vmatprep.subr.mxu0 0.0
    %1663 = vmatpush2.msra.mxu0 0.0
    %1664 = vmatprep.subr.mxu0 0.0
    %1665 = vmatpush2.msra.mxu0 0.0
    %1666 = vmatprep.subr.mxu0 0.0
    %1667 = vmatpush2.msra.mxu0 0.0
    %1668 = vmatprep.subr.mxu0 0.0
    %1669 = vmatpush2.msra.mxu0 0.0
    %1670 = vmatprep.subr.mxu0 0.0
    %1671 = vmatpush2.msra.mxu0 0.0
    %1672 = vmatprep.subr.mxu0 0.0
    %1673 = vmatpush2.msra.mxu0 0.0
    %1674 = vmatprep.subr.mxu0 0.0
    %1675 = vmatpush2.msra.mxu0 0.0
    %1676 = vmatprep.subr.mxu0 0.0
    %1677 = vmatpush2.msra.mxu0 0.0
    %1678 = vmatprep.subr.mxu0 0.0
    %1679 = vmatpush2.msra.mxu0 0.0
    %1680 = vmatprep.subr.mxu0 0.0
    %1681 = vmatpush2.msra.mxu0 0.0
    %1682 = vmatprep.subr.mxu0 0.0
    %1683 = vmatpush2.msra.mxu0 0.0
    %1684 = vmatprep.subr.mxu0 0.0
    %1685 = vmatpush2.msra.mxu0 0.0
    %1686 = vmatprep.subr.mxu0 0.0
    %1687 = vmatpush2.msra.mxu0 0.0
    %1688 = vmatprep.subr.mxu0 0.0
    %1689 = vmatpush2.msra.mxu0 0.0
    %1690 = vmatprep.subr.mxu0 0.0
    %1691 = vmatpush2.msra.mxu0 0.0
    %1692 = vmatprep.mubr.f32.mxu0 0.0
    %1693 = vmatmul.mubr.f32.gmra.mxu0 %v1551
    %v1694 = vpop.f32.mrf.mxu0
    %v1695 = vadd.f32 0.0, %v1694
    %v1696 = vpop.f32.mrf.mxu0
    %v1697 = vadd.f32 0.0, %v1696
    %1698 = vdwg.mxu0
    %v1699 = vadd.f32 %v1553, %v1624
    %v1700 = vadd.f32 %v1554, %v1626
    %v1701 = vadd.f32 %v1555, %v1695
    %v1702 = vadd.f32 %v1556, %v1697
    %v1703 = vmul.f32 %v1699, 0.5
    %v1704 = vtanh.pop %v1703
    %v1705 = vadd.f32 %v1704, 1.0
    %v1706 = vmul.f32 %v1705, 0.5
    %v1707 = vmul.f32 %v1700, 0.5
    %v1708 = vtanh.pop %v1707
    %v1709 = vadd.f32 %v1708, 1.0
    %v1710 = vmul.f32 %v1709, 0.5
    %v1711 = vtanh.pop %v1701
    %v1712 = vmul.f32 %v1702, 0.5
    %v1713 = vtanh.pop %v1712
    %v1714 = vadd.f32 %v1713, 1.0
    %v1715 = vmul.f32 %v1714, 0.5
    %v1716 = vmul.f32 %v1710, %v1552
    %v1717 = vmul.f32 %v1706, %v1711
    %v1718 = vadd.f32 %v1716, %v1717
    %v1719 = vtanh.pop %v1718
    %v1720 = vmul.f32 %v1715, %v1719
    %1721 = vst [vmem:[#allocation4] sm:$0xff] %v1718
    %1722 = vst [vmem:[#allocation3] sm:$0xff] %v1720
    %s1723 = scalar_lea.vmem [#allocation11], 8
    %1724 = vst [vmem:[%s1723] sm:$0xff] %v1720
    %v1725 = vld [vmem:[#allocation3] sm:$0xff]
    %v1726 = vld [vmem:[#allocation4] sm:$0xff]
    %v1727 = vld [vmem:[%s549] sm:$0xff]
    %v1728 = vld [vmem:[%s549 + $0x8] sm:$0xff]
    %v1729 = vld [vmem:[%s549 + $0x10] sm:$0xff]
    %v1730 = vld [vmem:[%s549 + $0x18] sm:$0xff]
    %1731 = vmatprep.subr.mxu0 %v1375
    %1732 = vmatpush1.msra.mxu0 %v1374
    %1733 = vmatprep.subr.mxu0 %v1371
    %1734 = vmatpush1.msra.mxu0 %v1370
    %1735 = vmatprep.subr.mxu0 %v1367
    %1736 = vmatpush1.msra.mxu0 %v1366
    %1737 = vmatprep.subr.mxu0 %v1363
    %1738 = vmatpush1.msra.mxu0 %v1362
    %1739 = vmatprep.subr.mxu0 %v1359
    %1740 = vmatpush1.msra.mxu0 %v1358
    %1741 = vmatprep.subr.mxu0 %v1355
    %1742 = vmatpush1.msra.mxu0 %v1354
    %1743 = vmatprep.subr.mxu0 %v1351
    %1744 = vmatpush1.msra.mxu0 %v1350
    %1745 = vmatprep.subr.mxu0 %v1347
    %1746 = vmatpush1.msra.mxu0 %v1346
    %1747 = vmatprep.subr.mxu0 %v1343
    %1748 = vmatpush1.msra.mxu0 %v1342
    %1749 = vmatprep.subr.mxu0 %v1339
    %1750 = vmatpush1.msra.mxu0 %v1338
    %1751 = vmatprep.subr.mxu0 %v1335
    %1752 = vmatpush1.msra.mxu0 %v1334
    %1753 = vmatprep.subr.mxu0 %v1331
    %1754 = vmatpush1.msra.mxu0 %v1330
    %1755 = vmatprep.subr.mxu0 %v1327
    %1756 = vmatpush1.msra.mxu0 %v1326
    %1757 = vmatprep.subr.mxu0 %v1323
    %1758 = vmatpush1.msra.mxu0 %v1322
    %1759 = vmatprep.subr.mxu0 %v1319
    %1760 = vmatpush1.msra.mxu0 %v1318
    %1761 = vmatprep.subr.mxu0 %v1315
    %1762 = vmatpush1.msra.mxu0 %v1314
    %1763 = vmatprep.subr.mxu0 0.0
    %1764 = vmatpush2.msra.mxu0 0.0
    %1765 = vmatprep.subr.mxu0 0.0
    %1766 = vmatpush2.msra.mxu0 0.0
    %1767 = vmatprep.subr.mxu0 0.0
    %1768 = vmatpush2.msra.mxu0 0.0
    %1769 = vmatprep.subr.mxu0 0.0
    %1770 = vmatpush2.msra.mxu0 0.0
    %1771 = vmatprep.subr.mxu0 0.0
    %1772 = vmatpush2.msra.mxu0 0.0
    %1773 = vmatprep.subr.mxu0 0.0
    %1774 = vmatpush2.msra.mxu0 0.0
    %1775 = vmatprep.subr.mxu0 0.0
    %1776 = vmatpush2.msra.mxu0 0.0
    %1777 = vmatprep.subr.mxu0 0.0
    %1778 = vmatpush2.msra.mxu0 0.0
    %1779 = vmatprep.subr.mxu0 0.0
    %1780 = vmatpush2.msra.mxu0 0.0
    %1781 = vmatprep.subr.mxu0 0.0
    %1782 = vmatpush2.msra.mxu0 0.0
    %1783 = vmatprep.subr.mxu0 0.0
    %1784 = vmatpush2.msra.mxu0 0.0
    %1785 = vmatprep.subr.mxu0 0.0
    %1786 = vmatpush2.msra.mxu0 0.0
    %1787 = vmatprep.subr.mxu0 0.0
    %1788 = vmatpush2.msra.mxu0 0.0
    %1789 = vmatprep.subr.mxu0 0.0
    %1790 = vmatpush2.msra.mxu0 0.0
    %1791 = vmatprep.subr.mxu0 0.0
    %1792 = vmatpush2.msra.mxu0 0.0
    %1793 = vmatprep.subr.mxu0 0.0
    %1794 = vmatpush2.msra.mxu0 0.0
    %1795 = vmatprep.mubr.f32.mxu0 0.0
    %1796 = vmatmul.mubr.f32.gmra.mxu0 %v1725
    %v1797 = vpop.f32.mrf.mxu0
    %v1798 = vadd.f32 0.0, %v1797
    %v1799 = vpop.f32.mrf.mxu0
    %v1800 = vadd.f32 0.0, %v1799
    %1801 = vdwg.mxu0
    %1802 = vmatprep.subr.mxu0 %v1377
    %1803 = vmatpush1.msra.mxu0 %v1376
    %1804 = vmatprep.subr.mxu0 %v1373
    %1805 = vmatpush1.msra.mxu0 %v1372
    %1806 = vmatprep.subr.mxu0 %v1369
    %1807 = vmatpush1.msra.mxu0 %v1368
    %1808 = vmatprep.subr.mxu0 %v1365
    %1809 = vmatpush1.msra.mxu0 %v1364
    %1810 = vmatprep.subr.mxu0 %v1361
    %1811 = vmatpush1.msra.mxu0 %v1360
    %1812 = vmatprep.subr.mxu0 %v1357
    %1813 = vmatpush1.msra.mxu0 %v1356
    %1814 = vmatprep.subr.mxu0 %v1353
    %1815 = vmatpush1.msra.mxu0 %v1352
    %1816 = vmatprep.subr.mxu0 %v1349
    %1817 = vmatpush1.msra.mxu0 %v1348
    %1818 = vmatprep.subr.mxu0 %v1345
    %1819 = vmatpush1.msra.mxu0 %v1344
    %1820 = vmatprep.subr.mxu0 %v1341
    %1821 = vmatpush1.msra.mxu0 %v1340
    %1822 = vmatprep.subr.mxu0 %v1337
    %1823 = vmatpush1.msra.mxu0 %v1336
    %1824 = vmatprep.subr.mxu0 %v1333
    %1825 = vmatpush1.msra.mxu0 %v1332
    %1826 = vmatprep.subr.mxu0 %v1329
    %1827 = vmatpush1.msra.mxu0 %v1328
    %1828 = vmatprep.subr.mxu0 %v1325
    %1829 = vmatpush1.msra.mxu0 %v1324
    %1830 = vmatprep.subr.mxu0 %v1321
    %1831 = vmatpush1.msra.mxu0 %v1320
    %1832 = vmatprep.subr.mxu0 %v1317
    %1833 = vmatpush1.msra.mxu0 %v1316
    %1834 = vmatprep.subr.mxu0 0.0
    %1835 = vmatpush2.msra.mxu0 0.0
    %1836 = vmatprep.subr.mxu0 0.0
    %1837 = vmatpush2.msra.mxu0 0.0
    %1838 = vmatprep.subr.mxu0 0.0
    %1839 = vmatpush2.msra.mxu0 0.0
    %1840 = vmatprep.subr.mxu0 0.0
    %1841 = vmatpush2.msra.mxu0 0.0
    %1842 = vmatprep.subr.mxu0 0.0
    %1843 = vmatpush2.msra.mxu0 0.0
    %1844 = vmatprep.subr.mxu0 0.0
    %1845 = vmatpush2.msra.mxu0 0.0
    %1846 = vmatprep.subr.mxu0 0.0
    %1847 = vmatpush2.msra.mxu0 0.0
    %1848 = vmatprep.subr.mxu0 0.0
    %1849 = vmatpush2.msra.mxu0 0.0
    %1850 = vmatprep.subr.mxu0 0.0
    %1851 = vmatpush2.msra.mxu0 0.0
    %1852 = vmatprep.subr.mxu0 0.0
    %1853 = vmatpush2.msra.mxu0 0.0
    %1854 = vmatprep.subr.mxu0 0.0
    %1855 = vmatpush2.msra.mxu0 0.0
    %1856 = vmatprep.subr.mxu0 0.0
    %1857 = vmatpush2.msra.mxu0 0.0
    %1858 = vmatprep.subr.mxu0 0.0
    %1859 = vmatpush2.msra.mxu0 0.0
    %1860 = vmatprep.subr.mxu0 0.0
    %1861 = vmatpush2.msra.mxu0 0.0
    %1862 = vmatprep.subr.mxu0 0.0
    %1863 = vmatpush2.msra.mxu0 0.0
    %1864 = vmatprep.subr.mxu0 0.0
    %1865 = vmatpush2.msra.mxu0 0.0
    %1866 = vmatprep.mubr.f32.mxu0 0.0
    %1867 = vmatmul.mubr.f32.gmra.mxu0 %v1725
    %v1868 = vpop.f32.mrf.mxu0
    %v1869 = vadd.f32 0.0, %v1868
    %v1870 = vpop.f32.mrf.mxu0
    %v1871 = vadd.f32 0.0, %v1870
    %1872 = vdwg.mxu0
    %v1873 = vadd.f32 %v1727, %v1798
    %v1874 = vadd.f32 %v1728, %v1800
    %v1875 = vadd.f32 %v1729, %v1869
    %v1876 = vadd.f32 %v1730, %v1871
    %v1877 = vmul.f32 %v1873, 0.5
    %v1878 = vtanh.pop %v1877
    %v1879 = vadd.f32 %v1878, 1.0
    %v1880 = vmul.f32 %v1879, 0.5
    %v1881 = vmul.f32 %v1874, 0.5
    %v1882 = vtanh.pop %v1881
    %v1883 = vadd.f32 %v1882, 1.0
    %v1884 = vmul.f32 %v1883, 0.5
    %v1885 = vtanh.pop %v1875
    %v1886 = vmul.f32 %v1876, 0.5
    %v1887 = vtanh.pop %v1886
    %v1888 = vadd.f32 %v1887, 1.0
    %v1889 = vmul.f32 %v1888, 0.5
    %v1890 = vmul.f32 %v1884, %v1726
    %v1891 = vmul.f32 %v1880, %v1885
    %v1892 = vadd.f32 %v1890, %v1891
    %v1893 = vtanh.pop %v1892
    %v1894 = vmul.f32 %v1889, %v1893
    %1895 = vst [vmem:[#allocation4] sm:$0xff] %v1892
    %1896 = vst [vmem:[#allocation3] sm:$0xff] %v1894
    %s1897 = scalar_lea.vmem [#allocation11], 16
    %1898 = vst [vmem:[%s1897] sm:$0xff] %v1894
    %v1899 = vld [vmem:[#allocation3] sm:$0xff]
    %v1900 = vld [vmem:[#allocation4] sm:$0xff]
    %v1901 = vld [vmem:[%s701] sm:$0xff]
    %v1902 = vld [vmem:[%s701 + $0x8] sm:$0xff]
    %v1903 = vld [vmem:[%s701 + $0x10] sm:$0xff]
    %v1904 = vld [vmem:[%s701 + $0x18] sm:$0xff]
    %1905 = vmatprep.subr.mxu0 %v1375
    %1906 = vmatpush1.msra.mxu0 %v1374
    %1907 = vmatprep.subr.mxu0 %v1371
    %1908 = vmatpush1.msra.mxu0 %v1370
    %1909 = vmatprep.subr.mxu0 %v1367
    %1910 = vmatpush1.msra.mxu0 %v1366
    %1911 = vmatprep.subr.mxu0 %v1363
    %1912 = vmatpush1.msra.mxu0 %v1362
    %1913 = vmatprep.subr.mxu0 %v1359
    %1914 = vmatpush1.msra.mxu0 %v1358
    %1915 = vmatprep.subr.mxu0 %v1355
    %1916 = vmatpush1.msra.mxu0 %v1354
    %1917 = vmatprep.subr.mxu0 %v1351
    %1918 = vmatpush1.msra.mxu0 %v1350
    %1919 = vmatprep.subr.mxu0 %v1347
    %1920 = vmatpush1.msra.mxu0 %v1346
    %1921 = vmatprep.subr.mxu0 %v1343
    %1922 = vmatpush1.msra.mxu0 %v1342
    %1923 = vmatprep.subr.mxu0 %v1339
    %1924 = vmatpush1.msra.mxu0 %v1338
    %1925 = vmatprep.subr.mxu0 %v1335
    %1926 = vmatpush1.msra.mxu0 %v1334
    %1927 = vmatprep.subr.mxu0 %v1331
    %1928 = vmatpush1.msra.mxu0 %v1330
    %1929 = vmatprep.subr.mxu0 %v1327
    %1930 = vmatpush1.msra.mxu0 %v1326
    %1931 = vmatprep.subr.mxu0 %v1323
    %1932 = vmatpush1.msra.mxu0 %v1322
    %1933 = vmatprep.subr.mxu0 %v1319
    %1934 = vmatpush1.msra.mxu0 %v1318
    %1935 = vmatprep.subr.mxu0 %v1315
    %1936 = vmatpush1.msra.mxu0 %v1314
    %1937 = vmatprep.subr.mxu0 0.0
    %1938 = vmatpush2.msra.mxu0 0.0
    %1939 = vmatprep.subr.mxu0 0.0
    %1940 = vmatpush2.msra.mxu0 0.0
    %1941 = vmatprep.subr.mxu0 0.0
    %1942 = vmatpush2.msra.mxu0 0.0
    %1943 = vmatprep.subr.mxu0 0.0
    %1944 = vmatpush2.msra.mxu0 0.0
    %1945 = vmatprep.subr.mxu0 0.0
    %1946 = vmatpush2.msra.mxu0 0.0
    %1947 = vmatprep.subr.mxu0 0.0
    %1948 = vmatpush2.msra.mxu0 0.0
    %1949 = vmatprep.subr.mxu0 0.0
    %1950 = vmatpush2.msra.mxu0 0.0
    %1951 = vmatprep.subr.mxu0 0.0
    %1952 = vmatpush2.msra.mxu0 0.0
    %1953 = vmatprep.subr.mxu0 0.0
    %1954 = vmatpush2.msra.mxu0 0.0
    %1955 = vmatprep.subr.mxu0 0.0
    %1956 = vmatpush2.msra.mxu0 0.0
    %1957 = vmatprep.subr.mxu0 0.0
    %1958 = vmatpush2.msra.mxu0 0.0
    %1959 = vmatprep.subr.mxu0 0.0
    %1960 = vmatpush2.msra.mxu0 0.0
    %1961 = vmatprep.subr.mxu0 0.0
    %1962 = vmatpush2.msra.mxu0 0.0
    %1963 = vmatprep.subr.mxu0 0.0
    %1964 = vmatpush2.msra.mxu0 0.0
    %1965 = vmatprep.subr.mxu0 0.0
    %1966 = vmatpush2.msra.mxu0 0.0
    %1967 = vmatprep.subr.mxu0 0.0
    %1968 = vmatpush2.msra.mxu0 0.0
    %1969 = vmatprep.mubr.f32.mxu0 0.0
    %1970 = vmatmul.mubr.f32.gmra.mxu0 %v1899
    %v1971 = vpop.f32.mrf.mxu0
    %v1972 = vadd.f32 0.0, %v1971
    %v1973 = vpop.f32.mrf.mxu0
    %v1974 = vadd.f32 0.0, %v1973
    %1975 = vdwg.mxu0
    %1976 = vmatprep.subr.mxu0 %v1377
    %1977 = vmatpush1.msra.mxu0 %v1376
    %1978 = vmatprep.subr.mxu0 %v1373
    %1979 = vmatpush1.msra.mxu0 %v1372
    %1980 = vmatprep.subr.mxu0 %v1369
    %1981 = vmatpush1.msra.mxu0 %v1368
    %1982 = vmatprep.subr.mxu0 %v1365
    %1983 = vmatpush1.msra.mxu0 %v1364
    %1984 = vmatprep.subr.mxu0 %v1361
    %1985 = vmatpush1.msra.mxu0 %v1360
    %1986 = vmatprep.subr.mxu0 %v1357
    %1987 = vmatpush1.msra.mxu0 %v1356
    %1988 = vmatprep.subr.mxu0 %v1353
    %1989 = vmatpush1.msra.mxu0 %v1352
    %1990 = vmatprep.subr.mxu0 %v1349
    %1991 = vmatpush1.msra.mxu0 %v1348
    %1992 = vmatprep.subr.mxu0 %v1345
    %1993 = vmatpush1.msra.mxu0 %v1344
    %1994 = vmatprep.subr.mxu0 %v1341
    %1995 = vmatpush1.msra.mxu0 %v1340
    %1996 = vmatprep.subr.mxu0 %v1337
    %1997 = vmatpush1.msra.mxu0 %v1336
    %1998 = vmatprep.subr.mxu0 %v1333
    %1999 = vmatpush1.msra.mxu0 %v1332
    %2000 = vmatprep.subr.mxu0 %v1329
    %2001 = vmatpush1.msra.mxu0 %v1328
    %2002 = vmatprep.subr.mxu0 %v1325
    %2003 = vmatpush1.msra.mxu0 %v1324
    %2004 = vmatprep.subr.mxu0 %v1321
    %2005 = vmatpush1.msra.mxu0 %v1320
    %2006 = vmatprep.subr.mxu0 %v1317
    %2007 = vmatpush1.msra.mxu0 %v1316
    %2008 = vmatprep.subr.mxu0 0.0
    %2009 = vmatpush2.msra.mxu0 0.0
    %2010 = vmatprep.subr.mxu0 0.0
    %2011 = vmatpush2.msra.mxu0 0.0
    %2012 = vmatprep.subr.mxu0 0.0
    %2013 = vmatpush2.msra.mxu0 0.0
    %2014 = vmatprep.subr.mxu0 0.0
    %2015 = vmatpush2.msra.mxu0 0.0
    %2016 = vmatprep.subr.mxu0 0.0
    %2017 = vmatpush2.msra.mxu0 0.0
    %2018 = vmatprep.subr.mxu0 0.0
    %2019 = vmatpush2.msra.mxu0 0.0
    %2020 = vmatprep.subr.mxu0 0.0
    %2021 = vmatpush2.msra.mxu0 0.0
    %2022 = vmatprep.subr.mxu0 0.0
    %2023 = vmatpush2.msra.mxu0 0.0
    %2024 = vmatprep.subr.mxu0 0.0
    %2025 = vmatpush2.msra.mxu0 0.0
    %2026 = vmatprep.subr.mxu0 0.0
    %2027 = vmatpush2.msra.mxu0 0.0
    %2028 = vmatprep.subr.mxu0 0.0
    %2029 = vmatpush2.msra.mxu0 0.0
    %2030 = vmatprep.subr.mxu0 0.0
    %2031 = vmatpush2.msra.mxu0 0.0
    %2032 = vmatprep.subr.mxu0 0.0
    %2033 = vmatpush2.msra.mxu0 0.0
    %2034 = vmatprep.subr.mxu0 0.0
    %2035 = vmatpush2.msra.mxu0 0.0
    %2036 = vmatprep.subr.mxu0 0.0
    %2037 = vmatpush2.msra.mxu0 0.0
    %2038 = vmatprep.subr.mxu0 0.0
    %2039 = vmatpush2.msra.mxu0 0.0
    %2040 = vmatprep.mubr.f32.mxu0 0.0
    %2041 = vmatmul.mubr.f32.gmra.mxu0 %v1899
    %v2042 = vpop.f32.mrf.mxu0
    %v2043 = vadd.f32 0.0, %v2042
    %v2044 = vpop.f32.mrf.mxu0
    %v2045 = vadd.f32 0.0, %v2044
    %2046 = vdwg.mxu0
    %v2047 = vadd.f32 %v1901, %v1972
    %v2048 = vadd.f32 %v1902, %v1974
    %v2049 = vadd.f32 %v1903, %v2043
    %v2050 = vadd.f32 %v1904, %v2045
    %v2051 = vmul.f32 %v2047, 0.5
    %v2052 = vtanh.pop %v2051
    %v2053 = vadd.f32 %v2052, 1.0
    %v2054 = vmul.f32 %v2053, 0.5
    %v2055 = vmul.f32 %v2048, 0.5
    %v2056 = vtanh.pop %v2055
    %v2057 = vadd.f32 %v2056, 1.0
    %v2058 = vmul.f32 %v2057, 0.5
    %v2059 = vtanh.pop %v2049
    %v2060 = vmul.f32 %v2050, 0.5
    %v2061 = vtanh.pop %v2060
    %v2062 = vadd.f32 %v2061, 1.0
    %v2063 = vmul.f32 %v2062, 0.5
    %v2064 = vmul.f32 %v2058, %v1900
    %v2065 = vmul.f32 %v2054, %v2059
    %v2066 = vadd.f32 %v2064, %v2065
    %v2067 = vtanh.pop %v2066
    %v2068 = vmul.f32 %v2063, %v2067
    %2069 = vst [vmem:[#allocation4] sm:$0xff] %v2066
    %2070 = vst [vmem:[#allocation3] sm:$0xff] %v2068
    %s2071 = scalar_lea.vmem [#allocation11], 24
    %2072 = vst [vmem:[%s2071] sm:$0xff] %v2068
    %v2073 = vld [vmem:[#allocation3] sm:$0xff]
    %v2074 = vld [vmem:[#allocation4] sm:$0xff]
    %v2075 = vld [vmem:[%s853] sm:$0xff]
    %v2076 = vld [vmem:[%s853 + $0x8] sm:$0xff]
    %v2077 = vld [vmem:[%s853 + $0x10] sm:$0xff]
    %v2078 = vld [vmem:[%s853 + $0x18] sm:$0xff]
    %2079 = vmatprep.subr.mxu0 %v1375
    %2080 = vmatpush1.msra.mxu0 %v1374
    %2081 = vmatprep.subr.mxu0 %v1371
    %2082 = vmatpush1.msra.mxu0 %v1370
    %2083 = vmatprep.subr.mxu0 %v1367
    %2084 = vmatpush1.msra.mxu0 %v1366
    %2085 = vmatprep.subr.mxu0 %v1363
    %2086 = vmatpush1.msra.mxu0 %v1362
    %2087 = vmatprep.subr.mxu0 %v1359
    %2088 = vmatpush1.msra.mxu0 %v1358
    %2089 = vmatprep.subr.mxu0 %v1355
    %2090 = vmatpush1.msra.mxu0 %v1354
    %2091 = vmatprep.subr.mxu0 %v1351
    %2092 = vmatpush1.msra.mxu0 %v1350
    %2093 = vmatprep.subr.mxu0 %v1347
    %2094 = vmatpush1.msra.mxu0 %v1346
    %2095 = vmatprep.subr.mxu0 %v1343
    %2096 = vmatpush1.msra.mxu0 %v1342
    %2097 = vmatprep.subr.mxu0 %v1339
    %2098 = vmatpush1.msra.mxu0 %v1338
    %2099 = vmatprep.subr.mxu0 %v1335
    %2100 = vmatpush1.msra.mxu0 %v1334
    %2101 = vmatprep.subr.mxu0 %v1331
    %2102 = vmatpush1.msra.mxu0 %v1330
    %2103 = vmatprep.subr.mxu0 %v1327
    %2104 = vmatpush1.msra.mxu0 %v1326
    %2105 = vmatprep.subr.mxu0 %v1323
    %2106 = vmatpush1.msra.mxu0 %v1322
    %2107 = vmatprep.subr.mxu0 %v1319
    %2108 = vmatpush1.msra.mxu0 %v1318
    %2109 = vmatprep.subr.mxu0 %v1315
    %2110 = vmatpush1.msra.mxu0 %v1314
    %2111 = vmatprep.subr.mxu0 0.0
    %2112 = vmatpush2.msra.mxu0 0.0
    %2113 = vmatprep.subr.mxu0 0.0
    %2114 = vmatpush2.msra.mxu0 0.0
    %2115 = vmatprep.subr.mxu0 0.0
    %2116 = vmatpush2.msra.mxu0 0.0
    %2117 = vmatprep.subr.mxu0 0.0
    %2118 = vmatpush2.msra.mxu0 0.0
    %2119 = vmatprep.subr.mxu0 0.0
    %2120 = vmatpush2.msra.mxu0 0.0
    %2121 = vmatprep.subr.mxu0 0.0
    %2122 = vmatpush2.msra.mxu0 0.0
    %2123 = vmatprep.subr.mxu0 0.0
    %2124 = vmatpush2.msra.mxu0 0.0
    %2125 = vmatprep.subr.mxu0 0.0
    %2126 = vmatpush2.msra.mxu0 0.0
    %2127 = vmatprep.subr.mxu0 0.0
    %2128 = vmatpush2.msra.mxu0 0.0
    %2129 = vmatprep.subr.mxu0 0.0
    %2130 = vmatpush2.msra.mxu0 0.0
    %2131 = vmatprep.subr.mxu0 0.0
    %2132 = vmatpush2.msra.mxu0 0.0
    %2133 = vmatprep.subr.mxu0 0.0
    %2134 = vmatpush2.msra.mxu0 0.0
    %2135 = vmatprep.subr.mxu0 0.0
    %2136 = vmatpush2.msra.mxu0 0.0
    %2137 = vmatprep.subr.mxu0 0.0
    %2138 = vmatpush2.msra.mxu0 0.0
    %2139 = vmatprep.subr.mxu0 0.0
    %2140 = vmatpush2.msra.mxu0 0.0
    %2141 = vmatprep.subr.mxu0 0.0
    %2142 = vmatpush2.msra.mxu0 0.0
    %2143 = vmatprep.mubr.f32.mxu0 0.0
    %2144 = vmatmul.mubr.f32.gmra.mxu0 %v2073
    %v2145 = vpop.f32.mrf.mxu0
    %v2146 = vadd.f32 0.0, %v2145
    %v2147 = vpop.f32.mrf.mxu0
    %v2148 = vadd.f32 0.0, %v2147
    %2149 = vdwg.mxu0
    %2150 = vmatprep.subr.mxu0 %v1377
    %2151 = vmatpush1.msra.mxu0 %v1376
    %2152 = vmatprep.subr.mxu0 %v1373
    %2153 = vmatpush1.msra.mxu0 %v1372
    %2154 = vmatprep.subr.mxu0 %v1369
    %2155 = vmatpush1.msra.mxu0 %v1368
    %2156 = vmatprep.subr.mxu0 %v1365
    %2157 = vmatpush1.msra.mxu0 %v1364
    %2158 = vmatprep.subr.mxu0 %v1361
    %2159 = vmatpush1.msra.mxu0 %v1360
    %2160 = vmatprep.subr.mxu0 %v1357
    %2161 = vmatpush1.msra.mxu0 %v1356
    %2162 = vmatprep.subr.mxu0 %v1353
    %2163 = vmatpush1.msra.mxu0 %v1352
    %2164 = vmatprep.subr.mxu0 %v1349
    %2165 = vmatpush1.msra.mxu0 %v1348
    %2166 = vmatprep.subr.mxu0 %v1345
    %2167 = vmatpush1.msra.mxu0 %v1344
    %2168 = vmatprep.subr.mxu0 %v1341
    %2169 = vmatpush1.msra.mxu0 %v1340
    %2170 = vmatprep.subr.mxu0 %v1337
    %2171 = vmatpush1.msra.mxu0 %v1336
    %2172 = vmatprep.subr.mxu0 %v1333
    %2173 = vmatpush1.msra.mxu0 %v1332
    %2174 = vmatprep.subr.mxu0 %v1329
    %2175 = vmatpush1.msra.mxu0 %v1328
    %2176 = vmatprep.subr.mxu0 %v1325
    %2177 = vmatpush1.msra.mxu0 %v1324
    %2178 = vmatprep.subr.mxu0 %v1321
    %2179 = vmatpush1.msra.mxu0 %v1320
    %2180 = vmatprep.subr.mxu0 %v1317
    %2181 = vmatpush1.msra.mxu0 %v1316
    %2182 = vmatprep.subr.mxu0 0.0
    %2183 = vmatpush2.msra.mxu0 0.0
    %2184 = vmatprep.subr.mxu0 0.0
    %2185 = vmatpush2.msra.mxu0 0.0
    %2186 = vmatprep.subr.mxu0 0.0
    %2187 = vmatpush2.msra.mxu0 0.0
    %2188 = vmatprep.subr.mxu0 0.0
    %2189 = vmatpush2.msra.mxu0 0.0
    %2190 = vmatprep.subr.mxu0 0.0
    %2191 = vmatpush2.msra.mxu0 0.0
    %2192 = vmatprep.subr.mxu0 0.0
    %2193 = vmatpush2.msra.mxu0 0.0
    %2194 = vmatprep.subr.mxu0 0.0
    %2195 = vmatpush2.msra.mxu0 0.0
    %2196 = vmatprep.subr.mxu0 0.0
    %2197 = vmatpush2.msra.mxu0 0.0
    %2198 = vmatprep.subr.mxu0 0.0
    %2199 = vmatpush2.msra.mxu0 0.0
    %2200 = vmatprep.subr.mxu0 0.0
    %2201 = vmatpush2.msra.mxu0 0.0
    %2202 = vmatprep.subr.mxu0 0.0
    %2203 = vmatpush2.msra.mxu0 0.0
    %2204 = vmatprep.subr.mxu0 0.0
    %2205 = vmatpush2.msra.mxu0 0.0
    %2206 = vmatprep.subr.mxu0 0.0
    %2207 = vmatpush2.msra.mxu0 0.0
    %2208 = vmatprep.subr.mxu0 0.0
    %2209 = vmatpush2.msra.mxu0 0.0
    %2210 = vmatprep.subr.mxu0 0.0
    %2211 = vmatpush2.msra.mxu0 0.0
    %2212 = vmatprep.subr.mxu0 0.0
    %2213 = vmatpush2.msra.mxu0 0.0
    %2214 = vmatprep.mubr.f32.mxu0 0.0
    %2215 = vmatmul.mubr.f32.gmra.mxu0 %v2073
    %v2216 = vpop.f32.mrf.mxu0
    %v2217 = vadd.f32 0.0, %v2216
    %v2218 = vpop.f32.mrf.mxu0
    %v2219 = vadd.f32 0.0, %v2218
    %2220 = vdwg.mxu0
    %v2221 = vadd.f32 %v2075, %v2146
    %v2222 = vadd.f32 %v2076, %v2148
    %v2223 = vadd.f32 %v2077, %v2217
    %v2224 = vadd.f32 %v2078, %v2219
    %v2225 = vmul.f32 %v2221, 0.5
    %v2226 = vtanh.pop %v2225
    %v2227 = vadd.f32 %v2226, 1.0
    %v2228 = vmul.f32 %v2227, 0.5
    %v2229 = vmul.f32 %v2222, 0.5
    %v2230 = vtanh.pop %v2229
    %v2231 = vadd.f32 %v2230, 1.0
    %v2232 = vmul.f32 %v2231, 0.5
    %v2233 = vtanh.pop %v2223
    %v2234 = vmul.f32 %v2224, 0.5
    %v2235 = vtanh.pop %v2234
    %v2236 = vadd.f32 %v2235, 1.0
    %v2237 = vmul.f32 %v2236, 0.5
    %v2238 = vmul.f32 %v2232, %v2074
    %v2239 = vmul.f32 %v2228, %v2233
    %v2240 = vadd.f32 %v2238, %v2239
    %v2241 = vtanh.pop %v2240
    %v2242 = vmul.f32 %v2237, %v2241
    %2243 = vst [vmem:[#allocation4] sm:$0xff] %v2240
    %2244 = vst [vmem:[#allocation3] sm:$0xff] %v2242
    %s2245 = scalar_lea.vmem [#allocation11], 32
    %2246 = vst [vmem:[%s2245] sm:$0xff] %v2242
    %v2247 = vld [vmem:[#allocation3] sm:$0xff]
    %v2248 = vld [vmem:[#allocation4] sm:$0xff]
    %v2249 = vld [vmem:[%s1005] sm:$0xff]
    %v2250 = vld [vmem:[%s1005 + $0x8] sm:$0xff]
    %v2251 = vld [vmem:[%s1005 + $0x10] sm:$0xff]
    %v2252 = vld [vmem:[%s1005 + $0x18] sm:$0xff]
    %2253 = vmatprep.subr.mxu0 %v1375
    %2254 = vmatpush1.msra.mxu0 %v1374
    %2255 = vmatprep.subr.mxu0 %v1371
    %2256 = vmatpush1.msra.mxu0 %v1370
    %2257 = vmatprep.subr.mxu0 %v1367
    %2258 = vmatpush1.msra.mxu0 %v1366
    %2259 = vmatprep.subr.mxu0 %v1363
    %2260 = vmatpush1.msra.mxu0 %v1362
    %2261 = vmatprep.subr.mxu0 %v1359
    %2262 = vmatpush1.msra.mxu0 %v1358
    %2263 = vmatprep.subr.mxu0 %v1355
    %2264 = vmatpush1.msra.mxu0 %v1354
    %2265 = vmatprep.subr.mxu0 %v1351
    %2266 = vmatpush1.msra.mxu0 %v1350
    %2267 = vmatprep.subr.mxu0 %v1347
    %2268 = vmatpush1.msra.mxu0 %v1346
    %2269 = vmatprep.subr.mxu0 %v1343
    %2270 = vmatpush1.msra.mxu0 %v1342
    %2271 = vmatprep.subr.mxu0 %v1339
    %2272 = vmatpush1.msra.mxu0 %v1338
    %2273 = vmatprep.subr.mxu0 %v1335
    %2274 = vmatpush1.msra.mxu0 %v1334
    %2275 = vmatprep.subr.mxu0 %v1331
    %2276 = vmatpush1.msra.mxu0 %v1330
    %2277 = vmatprep.subr.mxu0 %v1327
    %2278 = vmatpush1.msra.mxu0 %v1326
    %2279 = vmatprep.subr.mxu0 %v1323
    %2280 = vmatpush1.msra.mxu0 %v1322
    %2281 = vmatprep.subr.mxu0 %v1319
    %2282 = vmatpush1.msra.mxu0 %v1318
    %2283 = vmatprep.subr.mxu0 %v1315
    %2284 = vmatpush1.msra.mxu0 %v1314
    %2285 = vmatprep.subr.mxu0 0.0
    %2286 = vmatpush2.msra.mxu0 0.0
    %2287 = vmatprep.subr.mxu0 0.0
    %2288 = vmatpush2.msra.mxu0 0.0
    %2289 = vmatprep.subr.mxu0 0.0
    %2290 = vmatpush2.msra.mxu0 0.0
    %2291 = vmatprep.subr.mxu0 0.0
    %2292 = vmatpush2.msra.mxu0 0.0
    %2293 = vmatprep.subr.mxu0 0.0
    %2294 = vmatpush2.msra.mxu0 0.0
    %2295 = vmatprep.subr.mxu0 0.0
    %2296 = vmatpush2.msra.mxu0 0.0
    %2297 = vmatprep.subr.mxu0 0.0
    %2298 = vmatpush2.msra.mxu0 0.0
    %2299 = vmatprep.subr.mxu0 0.0
    %2300 = vmatpush2.msra.mxu0 0.0
    %2301 = vmatprep.subr.mxu0 0.0
    %2302 = vmatpush2.msra.mxu0 0.0
    %2303 = vmatprep.subr.mxu0 0.0
    %2304 = vmatpush2.msra.mxu0 0.0
    %2305 = vmatprep.subr.mxu0 0.0
    %2306 = vmatpush2.msra.mxu0 0.0
    %2307 = vmatprep.subr.mxu0 0.0
    %2308 = vmatpush2.msra.mxu0 0.0
    %2309 = vmatprep.subr.mxu0 0.0
    %2310 = vmatpush2.msra.mxu0 0.0
    %2311 = vmatprep.subr.mxu0 0.0
    %2312 = vmatpush2.msra.mxu0 0.0
    %2313 = vmatprep.subr.mxu0 0.0
    %2314 = vmatpush2.msra.mxu0 0.0
    %2315 = vmatprep.subr.mxu0 0.0
    %2316 = vmatpush2.msra.mxu0 0.0
    %2317 = vmatprep.mubr.f32.mxu0 0.0
    %2318 = vmatmul.mubr.f32.gmra.mxu0 %v2247
    %v2319 = vpop.f32.mrf.mxu0
    %v2320 = vadd.f32 0.0, %v2319
    %v2321 = vpop.f32.mrf.mxu0
    %v2322 = vadd.f32 0.0, %v2321
    %2323 = vdwg.mxu0
    %2324 = vmatprep.subr.mxu0 %v1377
    %2325 = vmatpush1.msra.mxu0 %v1376
    %2326 = vmatprep.subr.mxu0 %v1373
    %2327 = vmatpush1.msra.mxu0 %v1372
    %2328 = vmatprep.subr.mxu0 %v1369
    %2329 = vmatpush1.msra.mxu0 %v1368
    %2330 = vmatprep.subr.mxu0 %v1365
    %2331 = vmatpush1.msra.mxu0 %v1364
    %2332 = vmatprep.subr.mxu0 %v1361
    %2333 = vmatpush1.msra.mxu0 %v1360
    %2334 = vmatprep.subr.mxu0 %v1357
    %2335 = vmatpush1.msra.mxu0 %v1356
    %2336 = vmatprep.subr.mxu0 %v1353
    %2337 = vmatpush1.msra.mxu0 %v1352
    %2338 = vmatprep.subr.mxu0 %v1349
    %2339 = vmatpush1.msra.mxu0 %v1348
    %2340 = vmatprep.subr.mxu0 %v1345
    %2341 = vmatpush1.msra.mxu0 %v1344
    %2342 = vmatprep.subr.mxu0 %v1341
    %2343 = vmatpush1.msra.mxu0 %v1340
    %2344 = vmatprep.subr.mxu0 %v1337
    %2345 = vmatpush1.msra.mxu0 %v1336
    %2346 = vmatprep.subr.mxu0 %v1333
    %2347 = vmatpush1.msra.mxu0 %v1332
    %2348 = vmatprep.subr.mxu0 %v1329
    %2349 = vmatpush1.msra.mxu0 %v1328
    %2350 = vmatprep.subr.mxu0 %v1325
    %2351 = vmatpush1.msra.mxu0 %v1324
    %2352 = vmatprep.subr.mxu0 %v1321
    %2353 = vmatpush1.msra.mxu0 %v1320
    %2354 = vmatprep.subr.mxu0 %v1317
    %2355 = vmatpush1.msra.mxu0 %v1316
    %2356 = vmatprep.subr.mxu0 0.0
    %2357 = vmatpush2.msra.mxu0 0.0
    %2358 = vmatprep.subr.mxu0 0.0
    %2359 = vmatpush2.msra.mxu0 0.0
    %2360 = vmatprep.subr.mxu0 0.0
    %2361 = vmatpush2.msra.mxu0 0.0
    %2362 = vmatprep.subr.mxu0 0.0
    %2363 = vmatpush2.msra.mxu0 0.0
    %2364 = vmatprep.subr.mxu0 0.0
    %2365 = vmatpush2.msra.mxu0 0.0
    %2366 = vmatprep.subr.mxu0 0.0
    %2367 = vmatpush2.msra.mxu0 0.0
    %2368 = vmatprep.subr.mxu0 0.0
    %2369 = vmatpush2.msra.mxu0 0.0
    %2370 = vmatprep.subr.mxu0 0.0
    %2371 = vmatpush2.msra.mxu0 0.0
    %2372 = vmatprep.subr.mxu0 0.0
    %2373 = vmatpush2.msra.mxu0 0.0
    %2374 = vmatprep.subr.mxu0 0.0
    %2375 = vmatpush2.msra.mxu0 0.0
    %2376 = vmatprep.subr.mxu0 0.0
    %2377 = vmatpush2.msra.mxu0 0.0
    %2378 = vmatprep.subr.mxu0 0.0
    %2379 = vmatpush2.msra.mxu0 0.0
    %2380 = vmatprep.subr.mxu0 0.0
    %2381 = vmatpush2.msra.mxu0 0.0
    %2382 = vmatprep.subr.mxu0 0.0
    %2383 = vmatpush2.msra.mxu0 0.0
    %2384 = vmatprep.subr.mxu0 0.0
    %2385 = vmatpush2.msra.mxu0 0.0
    %2386 = vmatprep.subr.mxu0 0.0
    %2387 = vmatpush2.msra.mxu0 0.0
    %2388 = vmatprep.mubr.f32.mxu0 0.0
    %2389 = vmatmul.mubr.f32.gmra.mxu0 %v2247
    %v2390 = vpop.f32.mrf.mxu0
    %v2391 = vadd.f32 0.0, %v2390
    %v2392 = vpop.f32.mrf.mxu0
    %v2393 = vadd.f32 0.0, %v2392
    %2394 = vdwg.mxu0
    %v2395 = vadd.f32 %v2249, %v2320
    %v2396 = vadd.f32 %v2250, %v2322
    %v2397 = vadd.f32 %v2251, %v2391
    %v2398 = vadd.f32 %v2252, %v2393
    %v2399 = vmul.f32 %v2395, 0.5
    %v2400 = vtanh.pop %v2399
    %v2401 = vadd.f32 %v2400, 1.0
    %v2402 = vmul.f32 %v2401, 0.5
    %v2403 = vmul.f32 %v2396, 0.5
    %v2404 = vtanh.pop %v2403
    %v2405 = vadd.f32 %v2404, 1.0
    %v2406 = vmul.f32 %v2405, 0.5
    %v2407 = vtanh.pop %v2397
    %v2408 = vmul.f32 %v2398, 0.5
    %v2409 = vtanh.pop %v2408
    %v2410 = vadd.f32 %v2409, 1.0
    %v2411 = vmul.f32 %v2410, 0.5
    %v2412 = vmul.f32 %v2406, %v2248
    %v2413 = vmul.f32 %v2402, %v2407
    %v2414 = vadd.f32 %v2412, %v2413
    %v2415 = vtanh.pop %v2414
    %v2416 = vmul.f32 %v2411, %v2415
    %2417 = vst [vmem:[#allocation4] sm:$0xff] %v2414
    %2418 = vst [vmem:[#allocation3] sm:$0xff] %v2416
    %s2419 = scalar_lea.vmem [#allocation11], 40
    %2420 = vst [vmem:[%s2419] sm:$0xff] %v2416
    %v2421 = vld [vmem:[#allocation3] sm:$0xff]
    %v2422 = vld [vmem:[#allocation4] sm:$0xff]
    %v2423 = vld [vmem:[%s1157] sm:$0xff]
    %v2424 = vld [vmem:[%s1157 + $0x8] sm:$0xff]
    %v2425 = vld [vmem:[%s1157 + $0x10] sm:$0xff]
    %v2426 = vld [vmem:[%s1157 + $0x18] sm:$0xff]
    %2427 = vmatprep.subr.mxu0 %v1375
    %2428 = vmatpush1.msra.mxu0 %v1374
    %2429 = vmatprep.subr.mxu0 %v1371
    %2430 = vmatpush1.msra.mxu0 %v1370
    %2431 = vmatprep.subr.mxu0 %v1367
    %2432 = vmatpush1.msra.mxu0 %v1366
    %2433 = vmatprep.subr.mxu0 %v1363
    %2434 = vmatpush1.msra.mxu0 %v1362
    %2435 = vmatprep.subr.mxu0 %v1359
    %2436 = vmatpush1.msra.mxu0 %v1358
    %2437 = vmatprep.subr.mxu0 %v1355
    %2438 = vmatpush1.msra.mxu0 %v1354
    %2439 = vmatprep.subr.mxu0 %v1351
    %2440 = vmatpush1.msra.mxu0 %v1350
    %2441 = vmatprep.subr.mxu0 %v1347
    %2442 = vmatpush1.msra.mxu0 %v1346
    %2443 = vmatprep.subr.mxu0 %v1343
    %2444 = vmatpush1.msra.mxu0 %v1342
    %2445 = vmatprep.subr.mxu0 %v1339
    %2446 = vmatpush1.msra.mxu0 %v1338
    %2447 = vmatprep.subr.mxu0 %v1335
    %2448 = vmatpush1.msra.mxu0 %v1334
    %2449 = vmatprep.subr.mxu0 %v1331
    %2450 = vmatpush1.msra.mxu0 %v1330
    %2451 = vmatprep.subr.mxu0 %v1327
    %2452 = vmatpush1.msra.mxu0 %v1326
    %2453 = vmatprep.subr.mxu0 %v1323
    %2454 = vmatpush1.msra.mxu0 %v1322
    %2455 = vmatprep.subr.mxu0 %v1319
    %2456 = vmatpush1.msra.mxu0 %v1318
    %2457 = vmatprep.subr.mxu0 %v1315
    %2458 = vmatpush1.msra.mxu0 %v1314
    %2459 = vmatprep.subr.mxu0 0.0
    %2460 = vmatpush2.msra.mxu0 0.0
    %2461 = vmatprep.subr.mxu0 0.0
    %2462 = vmatpush2.msra.mxu0 0.0
    %2463 = vmatprep.subr.mxu0 0.0
    %2464 = vmatpush2.msra.mxu0 0.0
    %2465 = vmatprep.subr.mxu0 0.0
    %2466 = vmatpush2.msra.mxu0 0.0
    %2467 = vmatprep.subr.mxu0 0.0
    %2468 = vmatpush2.msra.mxu0 0.0
    %2469 = vmatprep.subr.mxu0 0.0
    %2470 = vmatpush2.msra.mxu0 0.0
    %2471 = vmatprep.subr.mxu0 0.0
    %2472 = vmatpush2.msra.mxu0 0.0
    %2473 = vmatprep.subr.mxu0 0.0
    %2474 = vmatpush2.msra.mxu0 0.0
    %2475 = vmatprep.subr.mxu0 0.0
    %2476 = vmatpush2.msra.mxu0 0.0
    %2477 = vmatprep.subr.mxu0 0.0
    %2478 = vmatpush2.msra.mxu0 0.0
    %2479 = vmatprep.subr.mxu0 0.0
    %2480 = vmatpush2.msra.mxu0 0.0
    %2481 = vmatprep.subr.mxu0 0.0
    %2482 = vmatpush2.msra.mxu0 0.0
    %2483 = vmatprep.subr.mxu0 0.0
    %2484 = vmatpush2.msra.mxu0 0.0
    %2485 = vmatprep.subr.mxu0 0.0
    %2486 = vmatpush2.msra.mxu0 0.0
    %2487 = vmatprep.subr.mxu0 0.0
    %2488 = vmatpush2.msra.mxu0 0.0
    %2489 = vmatprep.subr.mxu0 0.0
    %2490 = vmatpush2.msra.mxu0 0.0
    %2491 = vmatprep.mubr.f32.mxu0 0.0
    %2492 = vmatmul.mubr.f32.gmra.mxu0 %v2421
    %v2493 = vpop.f32.mrf.mxu0
    %v2494 = vadd.f32 0.0, %v2493
    %v2495 = vpop.f32.mrf.mxu0
    %v2496 = vadd.f32 0.0, %v2495
    %2497 = vdwg.mxu0
    %2498 = vmatprep.subr.mxu0 %v1377
    %2499 = vmatpush1.msra.mxu0 %v1376
    %2500 = vmatprep.subr.mxu0 %v1373
    %2501 = vmatpush1.msra.mxu0 %v1372
    %2502 = vmatprep.subr.mxu0 %v1369
    %2503 = vmatpush1.msra.mxu0 %v1368
    %2504 = vmatprep.subr.mxu0 %v1365
    %2505 = vmatpush1.msra.mxu0 %v1364
    %2506 = vmatprep.subr.mxu0 %v1361
    %2507 = vmatpush1.msra.mxu0 %v1360
    %2508 = vmatprep.subr.mxu0 %v1357
    %2509 = vmatpush1.msra.mxu0 %v1356
    %2510 = vmatprep.subr.mxu0 %v1353
    %2511 = vmatpush1.msra.mxu0 %v1352
    %2512 = vmatprep.subr.mxu0 %v1349
    %2513 = vmatpush1.msra.mxu0 %v1348
    %2514 = vmatprep.subr.mxu0 %v1345
    %2515 = vmatpush1.msra.mxu0 %v1344
    %2516 = vmatprep.subr.mxu0 %v1341
    %2517 = vmatpush1.msra.mxu0 %v1340
    %2518 = vmatprep.subr.mxu0 %v1337
    %2519 = vmatpush1.msra.mxu0 %v1336
    %2520 = vmatprep.subr.mxu0 %v1333
    %2521 = vmatpush1.msra.mxu0 %v1332
    %2522 = vmatprep.subr.mxu0 %v1329
    %2523 = vmatpush1.msra.mxu0 %v1328
    %2524 = vmatprep.subr.mxu0 %v1325
    %2525 = vmatpush1.msra.mxu0 %v1324
    %2526 = vmatprep.subr.mxu0 %v1321
    %2527 = vmatpush1.msra.mxu0 %v1320
    %2528 = vmatprep.subr.mxu0 %v1317
    %2529 = vmatpush1.msra.mxu0 %v1316
    %2530 = vmatprep.subr.mxu0 0.0
    %2531 = vmatpush2.msra.mxu0 0.0
    %2532 = vmatprep.subr.mxu0 0.0
    %2533 = vmatpush2.msra.mxu0 0.0
    %2534 = vmatprep.subr.mxu0 0.0
    %2535 = vmatpush2.msra.mxu0 0.0
    %2536 = vmatprep.subr.mxu0 0.0
    %2537 = vmatpush2.msra.mxu0 0.0
    %2538 = vmatprep.subr.mxu0 0.0
    %2539 = vmatpush2.msra.mxu0 0.0
    %2540 = vmatprep.subr.mxu0 0.0
    %2541 = vmatpush2.msra.mxu0 0.0
    %2542 = vmatprep.subr.mxu0 0.0
    %2543 = vmatpush2.msra.mxu0 0.0
    %2544 = vmatprep.subr.mxu0 0.0
    %2545 = vmatpush2.msra.mxu0 0.0
    %2546 = vmatprep.subr.mxu0 0.0
    %2547 = vmatpush2.msra.mxu0 0.0
    %2548 = vmatprep.subr.mxu0 0.0
    %2549 = vmatpush2.msra.mxu0 0.0
    %2550 = vmatprep.subr.mxu0 0.0
    %2551 = vmatpush2.msra.mxu0 0.0
    %2552 = vmatprep.subr.mxu0 0.0
    %2553 = vmatpush2.msra.mxu0 0.0
    %2554 = vmatprep.subr.mxu0 0.0
    %2555 = vmatpush2.msra.mxu0 0.0
    %2556 = vmatprep.subr.mxu0 0.0
    %2557 = vmatpush2.msra.mxu0 0.0
    %2558 = vmatprep.subr.mxu0 0.0
    %2559 = vmatpush2.msra.mxu0 0.0
    %2560 = vmatprep.subr.mxu0 0.0
    %2561 = vmatpush2.msra.mxu0 0.0
    %2562 = vmatprep.mubr.f32.mxu0 0.0
    %2563 = vmatmul.mubr.f32.gmra.mxu0 %v2421
    %v2564 = vpop.f32.mrf.mxu0
    %v2565 = vadd.f32 0.0, %v2564
    %v2566 = vpop.f32.mrf.mxu0
    %v2567 = vadd.f32 0.0, %v2566
    %2568 = vdwg.mxu0
    %v2569 = vadd.f32 %v2423, %v2494
    %v2570 = vadd.f32 %v2424, %v2496
    %v2571 = vadd.f32 %v2425, %v2565
    %v2572 = vadd.f32 %v2426, %v2567
    %v2573 = vmul.f32 %v2569, 0.5
    %v2574 = vtanh.pop %v2573
    %v2575 = vadd.f32 %v2574, 1.0
    %v2576 = vmul.f32 %v2575, 0.5
    %v2577 = vmul.f32 %v2570, 0.5
    %v2578 = vtanh.pop %v2577
    %v2579 = vadd.f32 %v2578, 1.0
    %v2580 = vmul.f32 %v2579, 0.5
    %v2581 = vtanh.pop %v2571
    %v2582 = vmul.f32 %v2572, 0.5
    %v2583 = vtanh.pop %v2582
    %v2584 = vadd.f32 %v2583, 1.0
    %v2585 = vmul.f32 %v2584, 0.5
    %v2586 = vmul.f32 %v2580, %v2422
    %v2587 = vmul.f32 %v2576, %v2581
    %v2588 = vadd.f32 %v2586, %v2587
    %v2589 = vtanh.pop %v2588
    %v2590 = vmul.f32 %v2585, %v2589
    %2591 = vst [vmem:[#allocation4] sm:$0xff] %v2588
    %2592 = vst [vmem:[#allocation3] sm:$0xff] %v2590
    %s2593 = scalar_lea.vmem [#allocation11], 48
    %2594 = vst [vmem:[%s2593] sm:$0xff] %v2590
    %v2595 = vld [vmem:[#allocation3] sm:$0xff]
    %v2596 = vld [vmem:[#allocation4] sm:$0xff]
    %v2597 = vld [vmem:[%s1309] sm:$0xff]
    %v2598 = vld [vmem:[%s1309 + $0x8] sm:$0xff]
    %v2599 = vld [vmem:[%s1309 + $0x10] sm:$0xff]
    %v2600 = vld [vmem:[%s1309 + $0x18] sm:$0xff]
    %2601 = vmatprep.subr.mxu0 %v1375
    %2602 = vmatpush1.msra.mxu0 %v1374
    %2603 = vmatprep.subr.mxu0 %v1371
    %2604 = vmatpush1.msra.mxu0 %v1370
    %2605 = vmatprep.subr.mxu0 %v1367
    %2606 = vmatpush1.msra.mxu0 %v1366
    %2607 = vmatprep.subr.mxu0 %v1363
    %2608 = vmatpush1.msra.mxu0 %v1362
    %2609 = vmatprep.subr.mxu0 %v1359
    %2610 = vmatpush1.msra.mxu0 %v1358
    %2611 = vmatprep.subr.mxu0 %v1355
    %2612 = vmatpush1.msra.mxu0 %v1354
    %2613 = vmatprep.subr.mxu0 %v1351
    %2614 = vmatpush1.msra.mxu0 %v1350
    %2615 = vmatprep.subr.mxu0 %v1347
    %2616 = vmatpush1.msra.mxu0 %v1346
    %2617 = vmatprep.subr.mxu0 %v1343
    %2618 = vmatpush1.msra.mxu0 %v1342
    %2619 = vmatprep.subr.mxu0 %v1339
    %2620 = vmatpush1.msra.mxu0 %v1338
    %2621 = vmatprep.subr.mxu0 %v1335
    %2622 = vmatpush1.msra.mxu0 %v1334
    %2623 = vmatprep.subr.mxu0 %v1331
    %2624 = vmatpush1.msra.mxu0 %v1330
    %2625 = vmatprep.subr.mxu0 %v1327
    %2626 = vmatpush1.msra.mxu0 %v1326
    %2627 = vmatprep.subr.mxu0 %v1323
    %2628 = vmatpush1.msra.mxu0 %v1322
    %2629 = vmatprep.subr.mxu0 %v1319
    %2630 = vmatpush1.msra.mxu0 %v1318
    %2631 = vmatprep.subr.mxu0 %v1315
    %2632 = vmatpush1.msra.mxu0 %v1314
    %2633 = vmatprep.subr.mxu0 0.0
    %2634 = vmatpush2.msra.mxu0 0.0
    %2635 = vmatprep.subr.mxu0 0.0
    %2636 = vmatpush2.msra.mxu0 0.0
    %2637 = vmatprep.subr.mxu0 0.0
    %2638 = vmatpush2.msra.mxu0 0.0
    %2639 = vmatprep.subr.mxu0 0.0
    %2640 = vmatpush2.msra.mxu0 0.0
    %2641 = vmatprep.subr.mxu0 0.0
    %2642 = vmatpush2.msra.mxu0 0.0
    %2643 = vmatprep.subr.mxu0 0.0
    %2644 = vmatpush2.msra.mxu0 0.0
    %2645 = vmatprep.subr.mxu0 0.0
    %2646 = vmatpush2.msra.mxu0 0.0
    %2647 = vmatprep.subr.mxu0 0.0
    %2648 = vmatpush2.msra.mxu0 0.0
    %2649 = vmatprep.subr.mxu0 0.0
    %2650 = vmatpush2.msra.mxu0 0.0
    %2651 = vmatprep.subr.mxu0 0.0
    %2652 = vmatpush2.msra.mxu0 0.0
    %2653 = vmatprep.subr.mxu0 0.0
    %2654 = vmatpush2.msra.mxu0 0.0
    %2655 = vmatprep.subr.mxu0 0.0
    %2656 = vmatpush2.msra.mxu0 0.0
    %2657 = vmatprep.subr.mxu0 0.0
    %2658 = vmatpush2.msra.mxu0 0.0
    %2659 = vmatprep.subr.mxu0 0.0
    %2660 = vmatpush2.msra.mxu0 0.0
    %2661 = vmatprep.subr.mxu0 0.0
    %2662 = vmatpush2.msra.mxu0 0.0
    %2663 = vmatprep.subr.mxu0 0.0
    %2664 = vmatpush2.msra.mxu0 0.0
    %2665 = vmatprep.mubr.f32.mxu0 0.0
    %2666 = vmatmul.mubr.f32.gmra.mxu0 %v2595
    %v2667 = vpop.f32.mrf.mxu0
    %v2668 = vadd.f32 0.0, %v2667
    %v2669 = vpop.f32.mrf.mxu0
    %v2670 = vadd.f32 0.0, %v2669
    %2671 = vdwg.mxu0
    %2672 = vmatprep.subr.mxu0 %v1377
    %2673 = vmatpush1.msra.mxu0 %v1376
    %2674 = vmatprep.subr.mxu0 %v1373
    %2675 = vmatpush1.msra.mxu0 %v1372
    %2676 = vmatprep.subr.mxu0 %v1369
    %2677 = vmatpush1.msra.mxu0 %v1368
    %2678 = vmatprep.subr.mxu0 %v1365
    %2679 = vmatpush1.msra.mxu0 %v1364
    %2680 = vmatprep.subr.mxu0 %v1361
    %2681 = vmatpush1.msra.mxu0 %v1360
    %2682 = vmatprep.subr.mxu0 %v1357
    %2683 = vmatpush1.msra.mxu0 %v1356
    %2684 = vmatprep.subr.mxu0 %v1353
    %2685 = vmatpush1.msra.mxu0 %v1352
    %2686 = vmatprep.subr.mxu0 %v1349
    %2687 = vmatpush1.msra.mxu0 %v1348
    %2688 = vmatprep.subr.mxu0 %v1345
    %2689 = vmatpush1.msra.mxu0 %v1344
    %2690 = vmatprep.subr.mxu0 %v1341
    %2691 = vmatpush1.msra.mxu0 %v1340
    %2692 = vmatprep.subr.mxu0 %v1337
    %2693 = vmatpush1.msra.mxu0 %v1336
    %2694 = vmatprep.subr.mxu0 %v1333
    %2695 = vmatpush1.msra.mxu0 %v1332
    %2696 = vmatprep.subr.mxu0 %v1329
    %2697 = vmatpush1.msra.mxu0 %v1328
    %2698 = vmatprep.subr.mxu0 %v1325
    %2699 = vmatpush1.msra.mxu0 %v1324
    %2700 = vmatprep.subr.mxu0 %v1321
    %2701 = vmatpush1.msra.mxu0 %v1320
    %2702 = vmatprep.subr.mxu0 %v1317
    %2703 = vmatpush1.msra.mxu0 %v1316
    %2704 = vmatprep.subr.mxu0 0.0
    %2705 = vmatpush2.msra.mxu0 0.0
    %2706 = vmatprep.subr.mxu0 0.0
    %2707 = vmatpush2.msra.mxu0 0.0
    %2708 = vmatprep.subr.mxu0 0.0
    %2709 = vmatpush2.msra.mxu0 0.0
    %2710 = vmatprep.subr.mxu0 0.0
    %2711 = vmatpush2.msra.mxu0 0.0
    %2712 = vmatprep.subr.mxu0 0.0
    %2713 = vmatpush2.msra.mxu0 0.0
    %2714 = vmatprep.subr.mxu0 0.0
    %2715 = vmatpush2.msra.mxu0 0.0
    %2716 = vmatprep.subr.mxu0 0.0
    %2717 = vmatpush2.msra.mxu0 0.0
    %2718 = vmatprep.subr.mxu0 0.0
    %2719 = vmatpush2.msra.mxu0 0.0
    %2720 = vmatprep.subr.mxu0 0.0
    %2721 = vmatpush2.msra.mxu0 0.0
    %2722 = vmatprep.subr.mxu0 0.0
    %2723 = vmatpush2.msra.mxu0 0.0
    %2724 = vmatprep.subr.mxu0 0.0
    %2725 = vmatpush2.msra.mxu0 0.0
    %2726 = vmatprep.subr.mxu0 0.0
    %2727 = vmatpush2.msra.mxu0 0.0
    %2728 = vmatprep.subr.mxu0 0.0
    %2729 = vmatpush2.msra.mxu0 0.0
    %2730 = vmatprep.subr.mxu0 0.0
    %2731 = vmatpush2.msra.mxu0 0.0
    %2732 = vmatprep.subr.mxu0 0.0
    %2733 = vmatpush2.msra.mxu0 0.0
    %2734 = vmatprep.subr.mxu0 0.0
    %2735 = vmatpush2.msra.mxu0 0.0
    %2736 = vmatprep.mubr.f32.mxu0 0.0
    %2737 = vmatmul.mubr.f32.gmra.mxu0 %v2595
    %v2738 = vpop.f32.mrf.mxu0
    %v2739 = vadd.f32 0.0, %v2738
    %v2740 = vpop.f32.mrf.mxu0
    %v2741 = vadd.f32 0.0, %v2740
    %2742 = vdwg.mxu0
    %v2743 = vadd.f32 %v2597, %v2668
    %v2744 = vadd.f32 %v2598, %v2670
    %v2745 = vadd.f32 %v2599, %v2739
    %v2746 = vadd.f32 %v2600, %v2741
    %v2747 = vmul.f32 %v2743, 0.5
    %v2748 = vtanh.pop %v2747
    %v2749 = vadd.f32 %v2748, 1.0
    %v2750 = vmul.f32 %v2749, 0.5
    %v2751 = vmul.f32 %v2744, 0.5
    %v2752 = vtanh.pop %v2751
    %v2753 = vadd.f32 %v2752, 1.0
    %v2754 = vmul.f32 %v2753, 0.5
    %v2755 = vtanh.pop %v2745
    %v2756 = vmul.f32 %v2746, 0.5
    %v2757 = vtanh.pop %v2756
    %v2758 = vadd.f32 %v2757, 1.0
    %v2759 = vmul.f32 %v2758, 0.5
    %v2760 = vmul.f32 %v2754, %v2596
    %v2761 = vmul.f32 %v2750, %v2755
    %v2762 = vadd.f32 %v2760, %v2761
    %v2763 = vtanh.pop %v2762
    %v2764 = vmul.f32 %v2759, %v2763
    %2765 = vst [vmem:[#allocation4] sm:$0xff] %v2762
    %2766 = vst [vmem:[#allocation3] sm:$0xff] %v2764
    %s2767 = scalar_lea.vmem [#allocation11], 56
    %2768 = vst [vmem:[%s2767] sm:$0xff] %v2764
    // Predicated region
    $region34: #{tpu_custom_call.1} parent=1 // pred_check
      %p2769 = pneg %p63
    $region35: #{tpu_custom_call.1} parent=1 // pred_check_branch
      %2771 = sbr.rel (%p2769) target = $region37
    $region36: #{tpu_custom_call.1} parent=1 // pred_region
      %v2772 = vld [vmem:[#allocation3] sm:$0xff]
      %2773 = vst [vmem:[#allocation12] sm:$0xff] %v2772
      %v2774 = vld [vmem:[#allocation4] sm:$0xff]
      %2775 = vst [vmem:[#allocation14] sm:$0xff] %v2774
    $region37: #{tpu_custom_call.1} parent=1 // pred_fallthru
      _
    // Predicated region
    $region38: #{tpu_custom_call.1} parent=1 // pred_check
      _
    $region39: #{tpu_custom_call.1} parent=1 // pred_check_branch
      %2777 = sbr.rel (0) target = $region41
    $region40: #{tpu_custom_call.1} parent=1 // pred_region
      %s2779 = ssub.s32 1024, 1024
      %2780 = vsyncadd [#allocation7], %s2779
      %s2781 = sshll.u32 [#allocation11], 4
      %s2782 = int_to_ptr.vmem [resolvable:$true] %s2781
      %2787 = dma.vmem_to_hbm [thread:$0]  %s2782, 1024, %s4, [#allocation7], 128, 128, 8
    $region41: #{tpu_custom_call.1} parent=1 // pred_fallthru
      _
    // Predicated region
    $region42: #{tpu_custom_call.1} parent=1 // pred_check
      _
    $region43: #{tpu_custom_call.1} parent=1 // pred_check_branch
      %2789 = sbr.rel (0) target = $region45
    $region44: #{tpu_custom_call.1} parent=1 // pred_region
      %s2791 = ssub.s32 128, 128
      %2792 = vsyncadd [#allocation13], %s2791
      %s2794 = sshll.u32 [#allocation12], 4
      %s2795 = int_to_ptr.vmem [resolvable:$true] %s2794
      %2797 = dma.vmem_to_hbm [thread:$0]  %s2795, 128, %s5, [#allocation13]
    $region45: #{tpu_custom_call.1} parent=1 // pred_fallthru
      _
    // Predicated region
    $region46: #{tpu_custom_call.1} parent=1 // pred_check
      _
    $region47: #{tpu_custom_call.1} parent=1 // pred_check_branch
      %2799 = sbr.rel (0) target = $region49
    $region48: #{tpu_custom_call.1} parent=1 // pred_region
      %s2801 = ssub.s32 128, 128
      %2802 = vsyncadd [#allocation13], %s2801
      %s2804 = sshll.u32 [#allocation14], 4
      %s2805 = int_to_ptr.vmem [resolvable:$true] %s2804
      %2807 = dma.vmem_to_hbm [thread:$0]  %s2805, 128, %s6, [#allocation13]
    $region49: #{tpu_custom_call.1} parent=1 // pred_fallthru
      _
    // Predicated region
    $region50: #{tpu_custom_call.1} parent=1 // pred_check
      _
    $region51: #{tpu_custom_call.1} parent=1 // pred_check_branch
      %2809 = sbr.rel (0) target = $region53
    $region52: #{tpu_custom_call.1} parent=1 // pred_region
      %2810 = dma.done [#allocation7], 1024
    $region53: #{tpu_custom_call.1} parent=1 // pred_fallthru
      _
    // Predicated region
    $region54: #{tpu_custom_call.1} parent=1 // pred_check
      _
    $region55: #{tpu_custom_call.1} parent=1 // pred_check_branch
      %2812 = sbr.rel (0) target = $region57
    $region56: #{tpu_custom_call.1} parent=1 // pred_region
      %2813 = dma.done [#allocation13], 128
    $region57: #{tpu_custom_call.1} parent=1 // pred_fallthru
      _
    // Predicated region
    $region58: #{tpu_custom_call.1} parent=1 // pred_check
      _
    $region59: #{tpu_custom_call.1} parent=1 // pred_check_branch
      %2815 = sbr.rel (0) target = $region61
    $region60: #{tpu_custom_call.1} parent=1 // pred_region
      %2816 = dma.done [#allocation13], 128
    $region61: #{tpu_custom_call.1} parent=1 // pred_fallthru
      _
    %2817 = vsyncpa [#allocation6], 1
    %2818 = vsyncpa [#allocation9], 1
    %2819 = vsyncpa [#allocation7], 1
    %2820 = vsyncpa [#allocation13], 1

</llo_original>
